<compile_context>
chip_gen: v6e
topology: v6e:2x2x1
jax: 0.10.0
libtpu: 0.0.40
codegen_flags: <defaults>
</compile_context>

<pallas_src>
import functools

import jax
import jax.numpy as jnp
from jax.experimental import pallas as pl
from jax.experimental.pallas import tpu as pltpu


_NEG_BIG = -1e30  # padding-class logit; exp(-1e30 - m) == 0 exactly in f32


def fsgnn_kernel(x_ref, w1_ref, b1_ref, w2_ref, b2_ref, out_ref):
    """One node tile of the FSGNN forward.

    x_ref : (L, TILE_N, F)   mxu dtype (bf16 or f32)
    w1_ref: (L, F, H)        mxu dtype
    b1_ref: (L, 1, H)        f32
    w2_ref: (L, H, C_PAD)    mxu dtype
    b2_ref: (1, C_PAD)       f32 (padded classes hold -1e30)
    out_ref:(TILE_N, C_PAD)  f32
    """
    L, tile_n, _ = x_ref.shape
    c_pad = w2_ref.shape[-1]
    mxu_dtype = w2_ref.dtype

    acc = jnp.zeros((tile_n, c_pad), jnp.float32)
    for l in range(L):  # L is static -> unrolled
        # fc1[l] on the MXU, f32 accumulation.
        h = jnp.dot(x_ref[l], w1_ref[l],
                    preferred_element_type=jnp.float32) + b1_ref[l]
        # F.normalize(p=2, dim=1): h / max(||h||, eps) == h * rsqrt(max(ss, eps^2))
        sumsq = jnp.sum(h * h, axis=1, keepdims=True)
        h = h * jax.lax.rsqrt(jnp.maximum(sumsq, 1e-24))
        # ReLU (elementwise -> equivalent pre/post concatenation).
        h = jnp.maximum(h, 0.0)
        # This layer's slice of cat(...) @ W2, accumulated in f32.
        acc = acc + jnp.dot(h.astype(mxu_dtype), w2_ref[l],
                            preferred_element_type=jnp.float32)

    logits = acc + b2_ref[...]

    # log_softmax along dim=1 (padded classes are -1e30 -> contribute nothing).
    m = jnp.max(logits, axis=1, keepdims=True)
    z = logits - m
    lse = jnp.log(jnp.sum(jnp.exp(z), axis=1, keepdims=True))
    out_ref[...] = (z - lse).astype(out_ref.dtype)


def _round_up(v, m):
    return ((v + m - 1) // m) * m


def _vmem_budget_bytes():
    """~85% of per-TensorCore VMEM for this generation (v7x 64MiB, v5e/v6e 128MiB)."""
    cap = None
    try:
        cap = getattr(pltpu.get_tpu_info(), "vmem_capacity_bytes", None)
    except Exception:  # noqa: BLE001 - best-effort hardware query
        cap = None
    if not cap:
        cap = 64 * 1024 * 1024  # conservative fallback == smallest (v7x per-TC)
    return int(0.85 * int(cap))


def _pick_tile_n(N, L, F, H, c_pad, itemsize, vmem_budget, max_tile_n):
    """Largest 128-multiple node tile fitting VMEM; >=2 tiles when N allows."""
    granule = 128
    # Resident weights (single-buffered via pl.Buffered(1)), per TensorCore.
    weight_bytes = (L * F * H * itemsize + L * H * 4
                    + L * H * c_pad * itemsize + c_pad * 4)
    avail = vmem_budget - weight_bytes - (2 << 20)  # slack for compiler scratch
    # Per-node-row bytes: double-buffered x tile + double-buffered f32 output
    # tile + live f32 intermediates (h, temps, acc, logits).
    per_row = (2 * L * F * itemsize + 2 * c_pad * 4
               + 4 * H * 4 + 2 * c_pad * 4)
    tile = avail // per_row if avail > 0 else granule
    tile = max(granule, (int(tile) // granule) * granule)
    tile = min(tile, int(max_tile_n), _round_up(N, granule))
    if N > granule:
        # Keep >= 2 node tiles so both v7x TensorCores get work.
        tile = min(tile, _round_up((N + 1) // 2, granule))
    return max(int(tile), granule)


@functools.partial(
    jax.jit,
    static_argnames=("tile_n", "c_pad", "single_buffer_weights",
                     "vmem_limit_bytes"))
def _fsgnn_pallas(x_p, w1_c, b1_c, w2_c, b2_p, *, tile_n, c_pad,
                  single_buffer_weights, vmem_limit_bytes):
    L, n_pad, F = x_p.shape
    H = w1_c.shape[-1]
    itemsize = jnp.dtype(x_p.dtype).itemsize

    # Resident operands are DMA'd once (constant index_map); drop their
    # useless second pipeline buffer when the API supports it.
    wkw = dict(pipeline_mode=pl.Buffered(1)) if single_buffer_weights else {}

    grid = (n_pad // tile_n,)
    cost = pl.CostEstimate(
        flops=2 * L * n_pad * F * H + 2 * L * n_pad * H * c_pad,
        transcendentals=n_pad * (L + c_pad + 1),
        bytes_accessed=(x_p.size * itemsize + w1_c.size * itemsize
                        + w2_c.size * itemsize + b1_c.size * 4
                        + b2_p.size * 4 + n_pad * c_pad * 4),
    )

    return pl.pallas_call(
        fsgnn_kernel,
        out_shape=jax.ShapeDtypeStruct((n_pad, c_pad), jnp.float32),
        grid_spec=pltpu.PrefetchScalarGridSpec(
            num_scalar_prefetch=0,
            grid=grid,
            in_specs=[
                pl.BlockSpec((L, tile_n, F), lambda i: (0, i, 0)),        # x (streamed)
                pl.BlockSpec((L, F, H), lambda i: (0, 0, 0), **wkw),      # W1 (resident)
                pl.BlockSpec((L, 1, H), lambda i: (0, 0, 0), **wkw),      # b1 (resident)
                pl.BlockSpec((L, H, c_pad), lambda i: (0, 0, 0), **wkw),  # W2 (resident)
                pl.BlockSpec((1, c_pad), lambda i: (0, 0), **wkw),        # b2 (resident)
            ],
            out_specs=pl.BlockSpec((tile_n, c_pad), lambda i: (i, 0)),
        ),
        compiler_params=pltpu.CompilerParams(
            dimension_semantics=("parallel",),   # shard node tiles over TCs
            vmem_limit_bytes=int(vmem_limit_bytes),
        ),
        cost_estimate=cost,
    )(x_p, w1_c, b1_c, w2_c, b2_p)


def fsgnn_forward(x_stack, w1, b1, w2, b2, *, max_tile_n=1024,
                  mxu_dtype=jnp.bfloat16):
    """x_stack [L,N,F], w1 [L,F,H], b1 [L,1,H], w2 [L,H,C], b2 [1,C] -> [N,C]."""
    L, N, F = x_stack.shape
    H = w1.shape[-1]
    C = w2.shape[-1]
    itemsize = jnp.dtype(mxu_dtype).itemsize

    # ---- host-side layout prep (padding is sliced off at the end) ----------
    c_pad = _round_up(max(C, 128), 128)       # lane-dense logits / output
    vmem_budget = _vmem_budget_bytes()        # generation-aware VMEM cap
    tile_n = _pick_tile_n(N, L, F, H, c_pad, itemsize, vmem_budget, max_tile_n)
    n_pad = _round_up(N, tile_n)

    x_p = jnp.pad(x_stack, ((0, 0), (0, n_pad - N), (0, 0))).astype(mxu_dtype)
    w1_c = w1.astype(mxu_dtype)
    b1_c = b1.astype(jnp.float32)
    # fc2 weight [L,H,C] -> [L,H,C_PAD]; padded-class columns are zero.
    w2_c = jnp.pad(w2, ((0, 0), (0, 0), (0, c_pad - C))).astype(mxu_dtype)
    # Padded-class biases are -1e30 so they never win the max / add to lse.
    b2_p = jnp.pad(b2.astype(jnp.float32), ((0, 0), (0, c_pad - C)),
                   constant_values=_NEG_BIG)

    out_pad = None
    last_err = None
    # Prefer single-buffered resident weights (pl.Buffered(1)); fall back to
    # default double-buffering if this JAX build rejects the pipeline_mode.
    for single_buf in (True, False):
        try:
            out_pad = _fsgnn_pallas(x_p, w1_c, b1_c, w2_c, b2_p,
                                    tile_n=tile_n, c_pad=c_pad,
                                    single_buffer_weights=single_buf,
                                    vmem_limit_bytes=vmem_budget)
            out_pad = jax.block_until_ready(out_pad)
            break
        except Exception as e:  # noqa: BLE001 - compile-time API fallback only
            last_err = e
            out_pad = None
    if out_pad is None:
        raise last_err
    return out_pad[:N, :C]


def fsgnn_reference(x_stack, w1, b1, w2, b2):
    """Pure-JAX f32 reference mirroring the PyTorch forward (cat agg)."""
    outs = []
    for l in range(x_stack.shape[0]):
        h = x_stack[l] @ w1[l] + b1[l]
        h = h / jnp.maximum(jnp.linalg.norm(h, axis=1, keepdims=True), 1e-12)
        outs.append(h)
    final = jnp.concatenate(outs, axis=1)
    final = jnp.maximum(final, 0.0)
    w2_flat = w2.reshape(-1, w2.shape[-1])      # [L*H, C]
    logits = final @ w2_flat + b2[0]
    return jax.nn.log_softmax(logits, axis=1)


if __name__ == "__main__":
    def make_inputs(key, L, N, F, H, C):
        k_x, k_w1, k_b1, k_w2, k_b2 = jax.random.split(key, 5)
        # Stacked input "list_mat": [L, N, F]
        x_stack = jax.random.normal(k_x, (L, N, F), jnp.float32)
        # fc1: L x Linear(F, H).  Torch weight [H, F] -> store [L, F, H].
        w1 = jax.random.normal(k_w1, (L, F, H), jnp.float32) * 0.1
        b1 = jax.random.normal(k_b1, (L, 1, H), jnp.float32) * 0.1
        # fc2 (agg_oper='cat'): Linear(H*L, C).  Torch [C, L*H] -> [L, H, C].
        w2 = jax.random.normal(k_w2, (L, H, C), jnp.float32) * 0.1
        b2 = jax.random.normal(k_b2, (1, C), jnp.float32) * 0.1
        return x_stack, w1, b1, w2, b2

    # ---- config 1: tiny shapes (single node tile) ---------------------------
    L, N, F, H, C = 3, 8, 32, 32, 4
    x_stack, w1, b1, w2, b2 = make_inputs(jax.random.PRNGKey(0), L, N, F, H, C)
    ref = fsgnn_reference(x_stack, w1, b1, w2, b2)

    out_f32 = jax.block_until_ready(
        fsgnn_forward(x_stack, w1, b1, w2, b2, mxu_dtype=jnp.float32))
    assert out_f32.shape == (N, C)
    assert jnp.allclose(out_f32, ref, atol=1e-4, rtol=1e-4), "f32 mismatch vs reference"

    out_bf16 = jax.block_until_ready(
        fsgnn_forward(x_stack, w1, b1, w2, b2, mxu_dtype=jnp.bfloat16))
    assert out_bf16.shape == (N, C)
    assert jnp.allclose(out_bf16, ref, atol=3e-2, rtol=3e-2), "bf16 mismatch vs reference"

    # ---- config 2: multi-tile node grid (>= 2 tiles, megacore path) ---------
    L2, N2, F2, H2, C2 = 4, 300, 64, 48, 7
    x2, w12, b12, w22, b22 = make_inputs(jax.random.PRNGKey(1), L2, N2, F2, H2, C2)
    ref2 = fsgnn_reference(x2, w12, b12, w22, b22)

    out2_f32 = jax.block_until_ready(
        fsgnn_forward(x2, w12, b12, w22, b22, mxu_dtype=jnp.float32))
    assert out2_f32.shape == (N2, C2)
    assert jnp.allclose(out2_f32, ref2, atol=1e-3, rtol=1e-3), "f32 mismatch (multi-tile)"

    out2_bf16 = jax.block_until_ready(
        fsgnn_forward(x2, w12, b12, w22, b22, mxu_dtype=jnp.bfloat16))
    assert out2_bf16.shape == (N2, C2)
    assert jnp.allclose(out2_bf16, ref2, atol=5e-2, rtol=5e-2), "bf16 mismatch (multi-tile)"

    print("KERNEL_OK")
</pallas_src>

<mosaic_0001>
module attributes {stable_mosaic.version = 11 : i64} {
  func.func @fsgnn_kernel(%arg0: i32, %arg1: memref<3x128x32xf32, #tpu.memory_space<vmem>>, %arg2: memref<3x32x32xf32, #tpu.memory_space<vmem>>, %arg3: memref<3x1x32xf32, #tpu.memory_space<vmem>>, %arg4: memref<3x32x128xf32, #tpu.memory_space<vmem>>, %arg5: memref<1x128xf32, #tpu.memory_space<vmem>>, %arg6: memref<128x128xf32, #tpu.memory_space<vmem>>) attributes {dimension_semantics = [#tpu.dimension_semantics<parallel>], iteration_bounds = array<i64: 1>, scalar_prefetch = 0 : i64, scratch_operands = 0 : i64, tpu.core_type = #tpu.core_type<tc>, window_params = [{transform_indices = @transform_0, window_bounds = array<i64: 3, 128, 32>}, {pipeline_mode = #tpu.pipeline_mode<synchronous>, transform_indices = @transform_1, window_bounds = array<i64: 3, 32, 32>}, {pipeline_mode = #tpu.pipeline_mode<synchronous>, transform_indices = @transform_2, window_bounds = array<i64: 3, 1, 32>}, {pipeline_mode = #tpu.pipeline_mode<synchronous>, transform_indices = @transform_3, window_bounds = array<i64: 3, 32, 128>}, {pipeline_mode = #tpu.pipeline_mode<synchronous>, transform_indices = @transform_4, window_bounds = array<i64: 1, 128>}, {transform_indices = @transform_5, window_bounds = array<i64: 128, 128>}]} {
    %cst = arith.constant 0.000000e+00 : f32
    %0 = vector.broadcast %cst : f32 to vector<128x128xf32>
    %c0 = arith.constant 0 : index
    %c0_0 = arith.constant 0 : index
    %c0_1 = arith.constant 0 : index
    %1 = vector.load %arg1[%c0, %c0_0, %c0_1] : memref<3x128x32xf32, #tpu.memory_space<vmem>>, vector<1x128x32xf32>
    %2 = vector.shape_cast %1 : vector<1x128x32xf32> to vector<128x32xf32>
    %c0_2 = arith.constant 0 : index
    %c0_3 = arith.constant 0 : index
    %c0_4 = arith.constant 0 : index
    %3 = vector.load %arg2[%c0_2, %c0_3, %c0_4] : memref<3x32x32xf32, #tpu.memory_space<vmem>>, vector<1x32x32xf32>
    %4 = vector.shape_cast %3 : vector<1x32x32xf32> to vector<32x32xf32>
    %cst_5 = arith.constant dense<0.000000e+00> : vector<128x32xf32>
    %5 = tpu.matmul %2, %4, %cst_5 {dimension_numbers = #tpu.dot_dimension_numbers<[1], [0], [0], [1], [0, 0, 1, 1], [], []>} : vector<128x32xf32>, vector<32x32xf32>, vector<128x32xf32> -> vector<128x32xf32>
    %c0_6 = arith.constant 0 : index
    %c0_7 = arith.constant 0 : index
    %c0_8 = arith.constant 0 : index
    %6 = vector.load %arg3[%c0_6, %c0_7, %c0_8] : memref<3x1x32xf32, #tpu.memory_space<vmem>>, vector<1x1x32xf32>
    %7 = vector.shape_cast %6 : vector<1x1x32xf32> to vector<1x32xf32>
    %8 = vector.broadcast %7 : vector<1x32xf32> to vector<128x32xf32>
    %9 = arith.addf %5, %8 : vector<128x32xf32>
    %10 = arith.mulf %9, %9 : vector<128x32xf32>
    %cst_9 = arith.constant dense<0.000000e+00> : vector<128xf32>
    %11 = vector.multi_reduction <add>, %10, %cst_9 [1] : vector<128x32xf32> to vector<128xf32>
    %12 = vector.shape_cast %11 : vector<128xf32> to vector<128x1xf32>
    %cst_10 = arith.constant 1.000000e-24 : f32
    %13 = vector.broadcast %cst_10 : f32 to vector<128x1xf32>
    %14 = arith.maximumf %12, %13 : vector<128x1xf32>
    %15 = math.rsqrt %14 : vector<128x1xf32>
    %16 = vector.broadcast %15 : vector<128x1xf32> to vector<128x32xf32>
    %17 = arith.mulf %9, %16 : vector<128x32xf32>
    %cst_11 = arith.constant 0.000000e+00 : f32
    %18 = vector.broadcast %cst_11 : f32 to vector<128x32xf32>
    %19 = arith.maximumf %17, %18 : vector<128x32xf32>
    %c0_12 = arith.constant 0 : index
    %c0_13 = arith.constant 0 : index
    %c0_14 = arith.constant 0 : index
    %20 = vector.load %arg4[%c0_12, %c0_13, %c0_14] : memref<3x32x128xf32, #tpu.memory_space<vmem>>, vector<1x32x128xf32>
    %21 = vector.shape_cast %20 : vector<1x32x128xf32> to vector<32x128xf32>
    %cst_15 = arith.constant dense<0.000000e+00> : vector<128x128xf32>
    %22 = tpu.matmul %19, %21, %cst_15 {dimension_numbers = #tpu.dot_dimension_numbers<[1], [0], [0], [1], [0, 0, 1, 1], [], []>} : vector<128x32xf32>, vector<32x128xf32>, vector<128x128xf32> -> vector<128x128xf32>
    %23 = arith.addf %0, %22 : vector<128x128xf32>
    %c1 = arith.constant 1 : index
    %c0_16 = arith.constant 0 : index
    %c0_17 = arith.constant 0 : index
    %24 = vector.load %arg1[%c1, %c0_16, %c0_17] : memref<3x128x32xf32, #tpu.memory_space<vmem>>, vector<1x128x32xf32>
    %25 = vector.shape_cast %24 : vector<1x128x32xf32> to vector<128x32xf32>
    %c1_18 = arith.constant 1 : index
    %c0_19 = arith.constant 0 : index
    %c0_20 = arith.constant 0 : index
    %26 = vector.load %arg2[%c1_18, %c0_19, %c0_20] : memref<3x32x32xf32, #tpu.memory_space<vmem>>, vector<1x32x32xf32>
    %27 = vector.shape_cast %26 : vector<1x32x32xf32> to vector<32x32xf32>
    %cst_21 = arith.constant dense<0.000000e+00> : vector<128x32xf32>
    %28 = tpu.matmul %25, %27, %cst_21 {dimension_numbers = #tpu.dot_dimension_numbers<[1], [0], [0], [1], [0, 0, 1, 1], [], []>} : vector<128x32xf32>, vector<32x32xf32>, vector<128x32xf32> -> vector<128x32xf32>
    %c1_22 = arith.constant 1 : index
    %c0_23 = arith.constant 0 : index
    %c0_24 = arith.constant 0 : index
    %29 = vector.load %arg3[%c1_22, %c0_23, %c0_24] : memref<3x1x32xf32, #tpu.memory_space<vmem>>, vector<1x1x32xf32>
    %30 = vector.shape_cast %29 : vector<1x1x32xf32> to vector<1x32xf32>
    %31 = vector.broadcast %30 : vector<1x32xf32> to vector<128x32xf32>
    %32 = arith.addf %28, %31 : vector<128x32xf32>
    %33 = arith.mulf %32, %32 : vector<128x32xf32>
    %cst_25 = arith.constant dense<0.000000e+00> : vector<128xf32>
    %34 = vector.multi_reduction <add>, %33, %cst_25 [1] : vector<128x32xf32> to vector<128xf32>
    %35 = vector.shape_cast %34 : vector<128xf32> to vector<128x1xf32>
    %cst_26 = arith.constant 1.000000e-24 : f32
    %36 = vector.broadcast %cst_26 : f32 to vector<128x1xf32>
    %37 = arith.maximumf %35, %36 : vector<128x1xf32>
    %38 = math.rsqrt %37 : vector<128x1xf32>
    %39 = vector.broadcast %38 : vector<128x1xf32> to vector<128x32xf32>
    %40 = arith.mulf %32, %39 : vector<128x32xf32>
    %cst_27 = arith.constant 0.000000e+00 : f32
    %41 = vector.broadcast %cst_27 : f32 to vector<128x32xf32>
    %42 = arith.maximumf %40, %41 : vector<128x32xf32>
    %c1_28 = arith.constant 1 : index
    %c0_29 = arith.constant 0 : index
    %c0_30 = arith.constant 0 : index
    %43 = vector.load %arg4[%c1_28, %c0_29, %c0_30] : memref<3x32x128xf32, #tpu.memory_space<vmem>>, vector<1x32x128xf32>
    %44 = vector.shape_cast %43 : vector<1x32x128xf32> to vector<32x128xf32>
    %cst_31 = arith.constant dense<0.000000e+00> : vector<128x128xf32>
    %45 = tpu.matmul %42, %44, %cst_31 {dimension_numbers = #tpu.dot_dimension_numbers<[1], [0], [0], [1], [0, 0, 1, 1], [], []>} : vector<128x32xf32>, vector<32x128xf32>, vector<128x128xf32> -> vector<128x128xf32>
    %46 = arith.addf %23, %45 : vector<128x128xf32>
    %c2 = arith.constant 2 : index
    %c0_32 = arith.constant 0 : index
    %c0_33 = arith.constant 0 : index
    %47 = vector.load %arg1[%c2, %c0_32, %c0_33] : memref<3x128x32xf32, #tpu.memory_space<vmem>>, vector<1x128x32xf32>
    %48 = vector.shape_cast %47 : vector<1x128x32xf32> to vector<128x32xf32>
    %c2_34 = arith.constant 2 : index
    %c0_35 = arith.constant 0 : index
    %c0_36 = arith.constant 0 : index
    %49 = vector.load %arg2[%c2_34, %c0_35, %c0_36] : memref<3x32x32xf32, #tpu.memory_space<vmem>>, vector<1x32x32xf32>
    %50 = vector.shape_cast %49 : vector<1x32x32xf32> to vector<32x32xf32>
    %cst_37 = arith.constant dense<0.000000e+00> : vector<128x32xf32>
    %51 = tpu.matmul %48, %50, %cst_37 {dimension_numbers = #tpu.dot_dimension_numbers<[1], [0], [0], [1], [0, 0, 1, 1], [], []>} : vector<128x32xf32>, vector<32x32xf32>, vector<128x32xf32> -> vector<128x32xf32>
    %c2_38 = arith.constant 2 : index
    %c0_39 = arith.constant 0 : index
    %c0_40 = arith.constant 0 : index
    %52 = vector.load %arg3[%c2_38, %c0_39, %c0_40] : memref<3x1x32xf32, #tpu.memory_space<vmem>>, vector<1x1x32xf32>
    %53 = vector.shape_cast %52 : vector<1x1x32xf32> to vector<1x32xf32>
    %54 = vector.broadcast %53 : vector<1x32xf32> to vector<128x32xf32>
    %55 = arith.addf %51, %54 : vector<128x32xf32>
    %56 = arith.mulf %55, %55 : vector<128x32xf32>
    %cst_41 = arith.constant dense<0.000000e+00> : vector<128xf32>
    %57 = vector.multi_reduction <add>, %56, %cst_41 [1] : vector<128x32xf32> to vector<128xf32>
    %58 = vector.shape_cast %57 : vector<128xf32> to vector<128x1xf32>
    %cst_42 = arith.constant 1.000000e-24 : f32
    %59 = vector.broadcast %cst_42 : f32 to vector<128x1xf32>
    %60 = arith.maximumf %58, %59 : vector<128x1xf32>
    %61 = math.rsqrt %60 : vector<128x1xf32>
    %62 = vector.broadcast %61 : vector<128x1xf32> to vector<128x32xf32>
    %63 = arith.mulf %55, %62 : vector<128x32xf32>
    %cst_43 = arith.constant 0.000000e+00 : f32
    %64 = vector.broadcast %cst_43 : f32 to vector<128x32xf32>
    %65 = arith.maximumf %63, %64 : vector<128x32xf32>
    %c2_44 = arith.constant 2 : index
    %c0_45 = arith.constant 0 : index
    %c0_46 = arith.constant 0 : index
    %66 = vector.load %arg4[%c2_44, %c0_45, %c0_46] : memref<3x32x128xf32, #tpu.memory_space<vmem>>, vector<1x32x128xf32>
    %67 = vector.shape_cast %66 : vector<1x32x128xf32> to vector<32x128xf32>
    %cst_47 = arith.constant dense<0.000000e+00> : vector<128x128xf32>
    %68 = tpu.matmul %65, %67, %cst_47 {dimension_numbers = #tpu.dot_dimension_numbers<[1], [0], [0], [1], [0, 0, 1, 1], [], []>} : vector<128x32xf32>, vector<32x128xf32>, vector<128x128xf32> -> vector<128x128xf32>
    %69 = arith.addf %46, %68 : vector<128x128xf32>
    %c0_48 = arith.constant 0 : index
    %c0_49 = arith.constant 0 : index
    %70 = vector.load %arg5[%c0_48, %c0_49] : memref<1x128xf32, #tpu.memory_space<vmem>>, vector<1x128xf32>
    %71 = vector.broadcast %70 : vector<1x128xf32> to vector<128x128xf32>
    %72 = arith.addf %69, %71 : vector<128x128xf32>
    %cst_50 = arith.constant dense<0xFF800000> : vector<128xf32>
    %73 = vector.multi_reduction <maximumf>, %72, %cst_50 [1] : vector<128x128xf32> to vector<128xf32>
    %74 = vector.shape_cast %73 : vector<128xf32> to vector<128x1xf32>
    %75 = vector.broadcast %74 : vector<128x1xf32> to vector<128x128xf32>
    %76 = arith.subf %72, %75 : vector<128x128xf32>
    %77 = math.exp %76 : vector<128x128xf32>
    %cst_51 = arith.constant dense<0.000000e+00> : vector<128xf32>
    %78 = vector.multi_reduction <add>, %77, %cst_51 [1] : vector<128x128xf32> to vector<128xf32>
    %79 = vector.shape_cast %78 : vector<128xf32> to vector<128x1xf32>
    %80 = math.log %79 : vector<128x1xf32>
    %81 = vector.broadcast %80 : vector<128x1xf32> to vector<128x128xf32>
    %82 = arith.subf %76, %81 : vector<128x128xf32>
    %c0_52 = arith.constant 0 : index
    %c0_53 = arith.constant 0 : index
    %83 = vector.load %arg6[%c0_52, %c0_53] : memref<128x128xf32, #tpu.memory_space<vmem>>, vector<128x128xf32>
    tpu.vector_store %arg6[%c0_52, %c0_53], %82 {strides = array<i32>} : memref<128x128xf32, #tpu.memory_space<vmem>>, vector<128x128xf32>,
    return
  }
  func.func @transform_0(%arg0: i32) -> (i32, i32, i32) {
    %c0_i32 = arith.constant 0 : i32
    %c0_i32_0 = arith.constant 0 : i32
    %c0_i32_1 = arith.constant 0 : i32
    return %c0_i32, %arg0, %c0_i32_0 : i32, i32, i32
  }
  func.func @transform_1(%arg0: i32) -> (i32, i32, i32) {
    %c0_i32 = arith.constant 0 : i32
    %c0_i32_0 = arith.constant 0 : i32
    %c0_i32_1 = arith.constant 0 : i32
    %c0_i32_2 = arith.constant 0 : i32
    return %c0_i32, %c0_i32_0, %c0_i32_1 : i32, i32, i32
  }
  func.func @transform_2(%arg0: i32) -> (i32, i32, i32) {
    %c0_i32 = arith.constant 0 : i32
    %c0_i32_0 = arith.constant 0 : i32
    %c0_i32_1 = arith.constant 0 : i32
    %c0_i32_2 = arith.constant 0 : i32
    return %c0_i32, %c0_i32_0, %c0_i32_1 : i32, i32, i32
  }
  func.func @transform_3(%arg0: i32) -> (i32, i32, i32) {
    %c0_i32 = arith.constant 0 : i32
    %c0_i32_0 = arith.constant 0 : i32
    %c0_i32_1 = arith.constant 0 : i32
    %c0_i32_2 = arith.constant 0 : i32
    return %c0_i32, %c0_i32_0, %c0_i32_1 : i32, i32, i32
  }
  func.func @transform_4(%arg0: i32) -> (i32, i32) {
    %c0_i32 = arith.constant 0 : i32
    %c0_i32_0 = arith.constant 0 : i32
    %c0_i32_1 = arith.constant 0 : i32
    return %c0_i32, %c0_i32_0 : i32, i32
  }
  func.func @transform_5(%arg0: i32) -> (i32, i32) {
    %c0_i32 = arith.constant 0 : i32
    %c0_i32_0 = arith.constant 0 : i32
    return %arg0, %c0_i32 : i32, i32
  }
}

module attributes {stable_mosaic.version = 11 : i64} {
  func.func @fsgnn_kernel(%arg0: i32, %arg1: memref<3x128x32xf32, #tpu.memory_space<vmem>>, %arg2: memref<3x32x32xf32, #tpu.memory_space<vmem>>, %arg3: memref<3x1x32xf32, #tpu.memory_space<vmem>>, %arg4: memref<3x32x128xf32, #tpu.memory_space<vmem>>, %arg5: memref<1x128xf32, #tpu.memory_space<vmem>>, %arg6: memref<128x128xf32, #tpu.memory_space<vmem>>) attributes {dimension_semantics = [#tpu.dimension_semantics<parallel>], iteration_bounds = array<i64: 1>, scalar_prefetch = 0 : i64, scratch_operands = 0 : i64, tpu.core_type = #tpu.core_type<tc>, window_params = [{transform_indices = @transform_0, window_bounds = array<i64: 3, 128, 32>}, {pipeline_mode = #tpu.pipeline_mode<synchronous>, transform_indices = @transform_1, window_bounds = array<i64: 3, 32, 32>}, {pipeline_mode = #tpu.pipeline_mode<synchronous>, transform_indices = @transform_2, window_bounds = array<i64: 3, 1, 32>}, {pipeline_mode = #tpu.pipeline_mode<synchronous>, transform_indices = @transform_3, window_bounds = array<i64: 3, 32, 128>}, {pipeline_mode = #tpu.pipeline_mode<synchronous>, transform_indices = @transform_4, window_bounds = array<i64: 1, 128>}, {transform_indices = @transform_5, window_bounds = array<i64: 128, 128>}]} {
    %cst = arith.constant 0.000000e+00 : f32
    %0 = vector.broadcast %cst : f32 to vector<128x128xf32>
    %c0 = arith.constant 0 : index
    %c0_0 = arith.constant 0 : index
    %c0_1 = arith.constant 0 : index
    %1 = vector.load %arg1[%c0, %c0_0, %c0_1] : memref<3x128x32xf32, #tpu.memory_space<vmem>>, vector<1x128x32xf32>
    %2 = vector.shape_cast %1 : vector<1x128x32xf32> to vector<128x32xf32>
    %c0_2 = arith.constant 0 : index
    %c0_3 = arith.constant 0 : index
    %c0_4 = arith.constant 0 : index
    %3 = vector.load %arg2[%c0_2, %c0_3, %c0_4] : memref<3x32x32xf32, #tpu.memory_space<vmem>>, vector<1x32x32xf32>
    %4 = vector.shape_cast %3 : vector<1x32x32xf32> to vector<32x32xf32>
    %cst_5 = arith.constant dense<0.000000e+00> : vector<128x32xf32>
    %5 = tpu.matmul %2, %4, %cst_5 {dimension_numbers = #tpu.dot_dimension_numbers<[1], [0], [0], [1], [0, 0, 1, 1], [], []>} : vector<128x32xf32>, vector<32x32xf32>, vector<128x32xf32> -> vector<128x32xf32>
    %c0_6 = arith.constant 0 : index
    %c0_7 = arith.constant 0 : index
    %c0_8 = arith.constant 0 : index
    %6 = vector.load %arg3[%c0_6, %c0_7, %c0_8] : memref<3x1x32xf32, #tpu.memory_space<vmem>>, vector<1x1x32xf32>
    %7 = vector.shape_cast %6 : vector<1x1x32xf32> to vector<1x32xf32>
    %8 = vector.broadcast %7 : vector<1x32xf32> to vector<128x32xf32>
    %9 = arith.addf %5, %8 : vector<128x32xf32>
    %10 = arith.mulf %9, %9 : vector<128x32xf32>
    %cst_9 = arith.constant dense<0.000000e+00> : vector<128xf32>
    %11 = vector.multi_reduction <add>, %10, %cst_9 [1] : vector<128x32xf32> to vector<128xf32>
    %12 = vector.shape_cast %11 : vector<128xf32> to vector<128x1xf32>
    %cst_10 = arith.constant 1.000000e-24 : f32
    %13 = vector.broadcast %cst_10 : f32 to vector<128x1xf32>
    %14 = arith.maximumf %12, %13 : vector<128x1xf32>
    %15 = math.rsqrt %14 : vector<128x1xf32>
    %16 = vector.broadcast %15 : vector<128x1xf32> to vector<128x32xf32>
    %17 = arith.mulf %9, %16 : vector<128x32xf32>
    %cst_11 = arith.constant 0.000000e+00 : f32
    %18 = vector.broadcast %cst_11 : f32 to vector<128x32xf32>
    %19 = arith.maximumf %17, %18 : vector<128x32xf32>
    %c0_12 = arith.constant 0 : index
    %c0_13 = arith.constant 0 : index
    %c0_14 = arith.constant 0 : index
    %20 = vector.load %arg4[%c0_12, %c0_13, %c0_14] : memref<3x32x128xf32, #tpu.memory_space<vmem>>, vector<1x32x128xf32>
    %21 = vector.shape_cast %20 : vector<1x32x128xf32> to vector<32x128xf32>
    %cst_15 = arith.constant dense<0.000000e+00> : vector<128x128xf32>
    %22 = tpu.matmul %19, %21, %cst_15 {dimension_numbers = #tpu.dot_dimension_numbers<[1], [0], [0], [1], [0, 0, 1, 1], [], []>} : vector<128x32xf32>, vector<32x128xf32>, vector<128x128xf32> -> vector<128x128xf32>
    %23 = arith.addf %0, %22 : vector<128x128xf32>
    %c1 = arith.constant 1 : index
    %c0_16 = arith.constant 0 : index
    %c0_17 = arith.constant 0 : index
    %24 = vector.load %arg1[%c1, %c0_16, %c0_17] : memref<3x128x32xf32, #tpu.memory_space<vmem>>, vector<1x128x32xf32>
    %25 = vector.shape_cast %24 : vector<1x128x32xf32> to vector<128x32xf32>
    %c1_18 = arith.constant 1 : index
    %c0_19 = arith.constant 0 : index
    %c0_20 = arith.constant 0 : index
    %26 = vector.load %arg2[%c1_18, %c0_19, %c0_20] : memref<3x32x32xf32, #tpu.memory_space<vmem>>, vector<1x32x32xf32>
    %27 = vector.shape_cast %26 : vector<1x32x32xf32> to vector<32x32xf32>
    %cst_21 = arith.constant dense<0.000000e+00> : vector<128x32xf32>
    %28 = tpu.matmul %25, %27, %cst_21 {dimension_numbers = #tpu.dot_dimension_numbers<[1], [0], [0], [1], [0, 0, 1, 1], [], []>} : vector<128x32xf32>, vector<32x32xf32>, vector<128x32xf32> -> vector<128x32xf32>
    %c1_22 = arith.constant 1 : index
    %c0_23 = arith.constant 0 : index
    %c0_24 = arith.constant 0 : index
    %29 = vector.load %arg3[%c1_22, %c0_23, %c0_24] : memref<3x1x32xf32, #tpu.memory_space<vmem>>, vector<1x1x32xf32>
    %30 = vector.shape_cast %29 : vector<1x1x32xf32> to vector<1x32xf32>
    %31 = vector.broadcast %30 : vector<1x32xf32> to vector<128x32xf32>
    %32 = arith.addf %28, %31 : vector<128x32xf32>
    %33 = arith.mulf %32, %32 : vector<128x32xf32>
    %cst_25 = arith.constant dense<0.000000e+00> : vector<128xf32>
    %34 = vector.multi_reduction <add>, %33, %cst_25 [1] : vector<128x32xf32> to vector<128xf32>
    %35 = vector.shape_cast %34 : vector<128xf32> to vector<128x1xf32>
    %cst_26 = arith.constant 1.000000e-24 : f32
    %36 = vector.broadcast %cst_26 : f32 to vector<128x1xf32>
    %37 = arith.maximumf %35, %36 : vector<128x1xf32>
    %38 = math.rsqrt %37 : vector<128x1xf32>
    %39 = vector.broadcast %38 : vector<128x1xf32> to vector<128x32xf32>
    %40 = arith.mulf %32, %39 : vector<128x32xf32>
    %cst_27 = arith.constant 0.000000e+00 : f32
    %41 = vector.broadcast %cst_27 : f32 to vector<128x32xf32>
    %42 = arith.maximumf %40, %41 : vector<128x32xf32>
    %c1_28 = arith.constant 1 : index
    %c0_29 = arith.constant 0 : index
    %c0_30 = arith.constant 0 : index
    %43 = vector.load %arg4[%c1_28, %c0_29, %c0_30] : memref<3x32x128xf32, #tpu.memory_space<vmem>>, vector<1x32x128xf32>
    %44 = vector.shape_cast %43 : vector<1x32x128xf32> to vector<32x128xf32>
    %cst_31 = arith.constant dense<0.000000e+00> : vector<128x128xf32>
    %45 = tpu.matmul %42, %44, %cst_31 {dimension_numbers = #tpu.dot_dimension_numbers<[1], [0], [0], [1], [0, 0, 1, 1], [], []>} : vector<128x32xf32>, vector<32x128xf32>, vector<128x128xf32> -> vector<128x128xf32>
    %46 = arith.addf %23, %45 : vector<128x128xf32>
    %c2 = arith.constant 2 : index
    %c0_32 = arith.constant 0 : index
    %c0_33 = arith.constant 0 : index
    %47 = vector.load %arg1[%c2, %c0_32, %c0_33] : memref<3x128x32xf32, #tpu.memory_space<vmem>>, vector<1x128x32xf32>
    %48 = vector.shape_cast %47 : vector<1x128x32xf32> to vector<128x32xf32>
    %c2_34 = arith.constant 2 : index
    %c0_35 = arith.constant 0 : index
    %c0_36 = arith.constant 0 : index
    %49 = vector.load %arg2[%c2_34, %c0_35, %c0_36] : memref<3x32x32xf32, #tpu.memory_space<vmem>>, vector<1x32x32xf32>
    %50 = vector.shape_cast %49 : vector<1x32x32xf32> to vector<32x32xf32>
    %cst_37 = arith.constant dense<0.000000e+00> : vector<128x32xf32>
    %51 = tpu.matmul %48, %50, %cst_37 {dimension_numbers = #tpu.dot_dimension_numbers<[1], [0], [0], [1], [0, 0, 1, 1], [], []>} : vector<128x32xf32>, vector<32x32xf32>, vector<128x32xf32> -> vector<128x32xf32>
    %c2_38 = arith.constant 2 : index
    %c0_39 = arith.constant 0 : index
    %c0_40 = arith.constant 0 : index
    %52 = vector.load %arg3[%c2_38, %c0_39, %c0_40] : memref<3x1x32xf32, #tpu.memory_space<vmem>>, vector<1x1x32xf32>
    %53 = vector.shape_cast %52 : vector<1x1x32xf32> to vector<1x32xf32>
    %54 = vector.broadcast %53 : vector<1x32xf32> to vector<128x32xf32>
    %55 = arith.addf %51, %54 : vector<128x32xf32>
    %56 = arith.mulf %55, %55 : vector<128x32xf32>
    %cst_41 = arith.constant dense<0.000000e+00> : vector<128xf32>
    %57 = vector.multi_reduction <add>, %56, %cst_41 [1] : vector<128x32xf32> to vector<128xf32>
    %58 = vector.shape_cast %57 : vector<128xf32> to vector<128x1xf32>
    %cst_42 = arith.constant 1.000000e-24 : f32
    %59 = vector.broadcast %cst_42 : f32 to vector<128x1xf32>
    %60 = arith.maximumf %58, %59 : vector<128x1xf32>
    %61 = math.rsqrt %60 : vector<128x1xf32>
    %62 = vector.broadcast %61 : vector<128x1xf32> to vector<128x32xf32>
    %63 = arith.mulf %55, %62 : vector<128x32xf32>
    %cst_43 = arith.constant 0.000000e+00 : f32
    %64 = vector.broadcast %cst_43 : f32 to vector<128x32xf32>
    %65 = arith.maximumf %63, %64 : vector<128x32xf32>
    %c2_44 = arith.constant 2 : index
    %c0_45 = arith.constant 0 : index
    %c0_46 = arith.constant 0 : index
    %66 = vector.load %arg4[%c2_44, %c0_45, %c0_46] : memref<3x32x128xf32, #tpu.memory_space<vmem>>, vector<1x32x128xf32>
    %67 = vector.shape_cast %66 : vector<1x32x128xf32> to vector<32x128xf32>
    %cst_47 = arith.constant dense<0.000000e+00> : vector<128x128xf32>
    %68 = tpu.matmul %65, %67, %cst_47 {dimension_numbers = #tpu.dot_dimension_numbers<[1], [0], [0], [1], [0, 0, 1, 1], [], []>} : vector<128x32xf32>, vector<32x128xf32>, vector<128x128xf32> -> vector<128x128xf32>
    %69 = arith.addf %46, %68 : vector<128x128xf32>
    %c0_48 = arith.constant 0 : index
    %c0_49 = arith.constant 0 : index
    %70 = vector.load %arg5[%c0_48, %c0_49] : memref<1x128xf32, #tpu.memory_space<vmem>>, vector<1x128xf32>
    %71 = vector.broadcast %70 : vector<1x128xf32> to vector<128x128xf32>
    %72 = arith.addf %69, %71 : vector<128x128xf32>
    %cst_50 = arith.constant dense<0xFF800000> : vector<128xf32>
    %73 = vector.multi_reduction <maximumf>, %72, %cst_50 [1] : vector<128x128xf32> to vector<128xf32>
    %74 = vector.shape_cast %73 : vector<128xf32> to vector<128x1xf32>
    %75 = vector.broadcast %74 : vector<128x1xf32> to vector<128x128xf32>
    %76 = arith.subf %72, %75 : vector<128x128xf32>
    %77 = math.exp %76 : vector<128x128xf32>
    %cst_51 = arith.constant dense<0.000000e+00> : vector<128xf32>
    %78 = vector.multi_reduction <add>, %77, %cst_51 [1] : vector<128x128xf32> to vector<128xf32>
    %79 = vector.shape_cast %78 : vector<128xf32> to vector<128x1xf32>
    %80 = math.log %79 : vector<128x1xf32>
    %81 = vector.broadcast %80 : vector<128x1xf32> to vector<128x128xf32>
    %82 = arith.subf %76, %81 : vector<128x128xf32>
    %c0_52 = arith.constant 0 : index
    %c0_53 = arith.constant 0 : index
    %83 = vector.load %arg6[%c0_52, %c0_53] : memref<128x128xf32, #tpu.memory_space<vmem>>, vector<128x128xf32>
    tpu.vector_store %arg6[%c0_52, %c0_53], %82 {strides = array<i32>} : memref<128x128xf32, #tpu.memory_space<vmem>>, vector<128x128xf32>,
    return
  }
  func.func @transform_0(%arg0: i32) -> (i32, i32, i32) {
    %c0_i32 = arith.constant 0 : i32
    %c0_i32_0 = arith.constant 0 : i32
    %c0_i32_1 = arith.constant 0 : i32
    return %c0_i32, %arg0, %c0_i32_0 : i32, i32, i32
  }
  func.func @transform_1(%arg0: i32) -> (i32, i32, i32) {
    %c0_i32 = arith.constant 0 : i32
    %c0_i32_0 = arith.constant 0 : i32
    %c0_i32_1 = arith.constant 0 : i32
    %c0_i32_2 = arith.constant 0 : i32
    return %c0_i32, %c0_i32_0, %c0_i32_1 : i32, i32, i32
  }
  func.func @transform_2(%arg0: i32) -> (i32, i32, i32) {
    %c0_i32 = arith.constant 0 : i32
    %c0_i32_0 = arith.constant 0 : i32
    %c0_i32_1 = arith.constant 0 : i32
    %c0_i32_2 = arith.constant 0 : i32
    return %c0_i32, %c0_i32_0, %c0_i32_1 : i32, i32, i32
  }
  func.func @transform_3(%arg0: i32) -> (i32, i32, i32) {
    %c0_i32 = arith.constant 0 : i32
    %c0_i32_0 = arith.constant 0 : i32
    %c0_i32_1 = arith.constant 0 : i32
    %c0_i32_2 = arith.constant 0 : i32
    return %c0_i32, %c0_i32_0, %c0_i32_1 : i32, i32, i32
  }
  func.func @transform_4(%arg0: i32) -> (i32, i32) {
    %c0_i32 = arith.constant 0 : i32
    %c0_i32_0 = arith.constant 0 : i32
    %c0_i32_1 = arith.constant 0 : i32
    return %c0_i32, %c0_i32_0 : i32, i32
  }
  func.func @transform_5(%arg0: i32) -> (i32, i32) {
    %c0_i32 = arith.constant 0 : i32
    %c0_i32_0 = arith.constant 0 : i32
    return %arg0, %c0_i32 : i32, i32
  }
}

</mosaic_0001>

<llo_original>
// kernel: _fsgnn_pallas.1
$region0: #{_fsgnn_pallas.1}
  #allocation0 [shape = 'u32[]', space=smem, size = 0x4, offset = 0x4, fixed_abs, tag = 'smem constant byte address 0x4 - core index']
  #allocation1 [shape = 'u32[144,128]{1,0:T(1,128)}', space=vmem, size = 0x12000, scoped, tag = 'internal scratch']
  %s0 = inlined_call_operand.vmem [shape: f32[3,128,32], index: 0, kind: input, shape index: {}]
  %s1 = inlined_call_operand.vmem [shape: f32[3,32,32], index: 1, kind: input, shape index: {}]
  %s2 = inlined_call_operand.vmem [shape: f32[3,1,32], index: 2, kind: input, shape index: {}]
  %s3 = inlined_call_operand.vmem [shape: f32[3,32,128], index: 3, kind: input, shape index: {}]
  %s4 = inlined_call_operand.vmem [shape: f32[1,128], index: 4, kind: input, shape index: {}]
  %s5 = inlined_call_operand.hbm [shape: f32[128,128], index: 5, kind: output, shape index: {}]
  %s6 = sld [smem:[#allocation0]]
  $region30: #{_fsgnn_pallas.1} parent=0
    _
  %s8 = ssub.s32 1, %s6
  %s9 = scalar_select 0, %s8, %s6
  $region1: #{_fsgnn_pallas.1} parent=0
    #allocation2 [shape = 'u8[65536]{0}', space=vmem, size = 0x10000, scoped, tag = 'output window, operand 0, single buffered']
    #allocation3 [shape = 's32[1]{0}', space=sflag, size = 0x4, scoped, tag = 'scoped memory for _fsgnn_pallas.1']
    %10 = vsyncpa [#allocation3], 0
    // Predicated region
    $region2: #{_fsgnn_pallas.1} parent=1 // pred_check
      _
    $region3: #{_fsgnn_pallas.1} parent=1 // pred_check_branch
      %12 = sbr.rel (0) target = $region5
    $region4: #{_fsgnn_pallas.1} parent=1 // pred_region
      _
    $region5: #{_fsgnn_pallas.1} parent=1 // pred_fallthru
      _
    // Predicated region
    $region6: #{_fsgnn_pallas.1} parent=1 // pred_check
      _
    $region7: #{_fsgnn_pallas.1} parent=1 // pred_check_branch
      %14 = sbr.rel (0) target = $region9
    $region8: #{_fsgnn_pallas.1} parent=1 // pred_region
      _
    $region9: #{_fsgnn_pallas.1} parent=1 // pred_fallthru
      _
    // Predicated region
    $region10: #{_fsgnn_pallas.1} parent=1 // pred_check
      _
    $region11: #{_fsgnn_pallas.1} parent=1 // pred_check_branch
      %16 = sbr.rel (0) target = $region13
    $region12: #{_fsgnn_pallas.1} parent=1 // pred_region
      _
    $region13: #{_fsgnn_pallas.1} parent=1 // pred_fallthru
      _
    // Predicated region
    $region14: #{_fsgnn_pallas.1} parent=1 // pred_check
      _
    $region15: #{_fsgnn_pallas.1} parent=1 // pred_check_branch
      %18 = sbr.rel (0) target = $region17
    $region16: #{_fsgnn_pallas.1} parent=1 // pred_region
      _
    $region17: #{_fsgnn_pallas.1} parent=1 // pred_fallthru
      _
    // Predicated region
    $region18: #{_fsgnn_pallas.1} parent=1 // pred_check
      _
    $region19: #{_fsgnn_pallas.1} parent=1 // pred_check_branch
      %20 = sbr.rel (0) target = $region21
    $region20: #{_fsgnn_pallas.1} parent=1 // pred_region
      _
    $region21: #{_fsgnn_pallas.1} parent=1 // pred_fallthru
      _
    %v21 = vld [vmem:[%s0] sm:$0xff]
    %v22 = vld [vmem:[%s0 + $0x8] sm:$0xff]
    %v23 = vld [vmem:[%s0 + $0x10] sm:$0xff]
    %v24 = vld [vmem:[%s0 + $0x18] sm:$0xff]
    %v25 = vld [vmem:[%s0 + $0x20] sm:$0xff]
    %v26 = vld [vmem:[%s0 + $0x28] sm:$0xff]
    %v27 = vld [vmem:[%s0 + $0x30] sm:$0xff]
    %v28 = vld [vmem:[%s0 + $0x38] sm:$0xff]
    %v29 = vld [vmem:[%s0 + $0x40] sm:$0xff]
    %v30 = vld [vmem:[%s0 + $0x48] sm:$0xff]
    %v31 = vld [vmem:[%s0 + $0x50] sm:$0xff]
    %v32 = vld [vmem:[%s0 + $0x58] sm:$0xff]
    %v33 = vld [vmem:[%s0 + $0x60] sm:$0xff]
    %v34 = vld [vmem:[%s0 + $0x68] sm:$0xff]
    %v35 = vld [vmem:[%s0 + $0x70] sm:$0xff]
    %v36 = vld [vmem:[%s0 + $0x78] sm:$0xff]
    %v37 = vld [vmem:[%s1] sm:$0xff]
    %v38 = vld [vmem:[%s1 + $0x8] sm:$0xff]
    %v39 = vld [vmem:[%s1 + $0x10] sm:$0xff]
    %v40 = vld [vmem:[%s1 + $0x18] sm:$0xff]
    %v41 = vld [vmem:[%s2] sm:$0x1]
    %v43 = vlaneseq
    %v44 = vshrl.u32 %v43, 7
    %v45 = vsub.s32 0, %v44
    %v46 = vrot.slane %v41, %v45
    %vm48 = vcmask 261120
    %v50 = vsel %vm48, %v21, 0
    %v53 = vsel %vm48, %v22, 0
    %v56 = vsel %vm48, %v23, 0
    %v59 = vsel %vm48, %v24, 0
    %v62 = vsel %vm48, %v25, 0
    %v65 = vsel %vm48, %v26, 0
    %v68 = vsel %vm48, %v27, 0
    %v71 = vsel %vm48, %v28, 0
    %v74 = vsel %vm48, %v29, 0
    %v77 = vsel %vm48, %v30, 0
    %v80 = vsel %vm48, %v31, 0
    %v83 = vsel %vm48, %v32, 0
    %v86 = vsel %vm48, %v33, 0
    %v89 = vsel %vm48, %v34, 0
    %v92 = vsel %vm48, %v35, 0
    %v95 = vsel %vm48, %v36, 0
    %97 = vmatprep.subr.mxu0 0.0
    %98 = vmatpush1.msra.mxu0 0.0
    %99 = vmatprep.subr.mxu0 0.0
    %100 = vmatpush1.msra.mxu0 0.0
    %101 = vmatprep.subr.mxu0 0.0
    %102 = vmatpush1.msra.mxu0 0.0
    %103 = vmatprep.subr.mxu0 0.0
    %104 = vmatpush1.msra.mxu0 0.0
    %105 = vmatprep.subr.mxu0 0.0
    %106 = vmatpush1.msra.mxu0 0.0
    %107 = vmatprep.subr.mxu0 0.0
    %108 = vmatpush1.msra.mxu0 0.0
    %109 = vmatprep.subr.mxu0 0.0
    %110 = vmatpush1.msra.mxu0 0.0
    %111 = vmatprep.subr.mxu0 0.0
    %112 = vmatpush1.msra.mxu0 0.0
    %113 = vmatprep.subr.mxu0 0.0
    %114 = vmatpush1.msra.mxu0 0.0
    %115 = vmatprep.subr.mxu0 0.0
    %116 = vmatpush1.msra.mxu0 0.0
    %117 = vmatprep.subr.mxu0 0.0
    %118 = vmatpush1.msra.mxu0 0.0
    %119 = vmatprep.subr.mxu0 0.0
    %120 = vmatpush1.msra.mxu0 0.0
    %121 = vmatprep.subr.mxu0 0.0
    %122 = vmatpush1.msra.mxu0 %v40
    %123 = vmatprep.subr.mxu0 0.0
    %124 = vmatpush1.msra.mxu0 %v39
    %125 = vmatprep.subr.mxu0 0.0
    %126 = vmatpush1.msra.mxu0 %v38
    %127 = vmatprep.subr.mxu0 0.0
    %128 = vmatpush1.msra.mxu0 %v37
    %129 = vmatprep.subr.mxu0 0.0
    %130 = vmatpush2.msra.mxu0 0.0
    %131 = vmatprep.subr.mxu0 0.0
    %132 = vmatpush2.msra.mxu0 0.0
    %133 = vmatprep.subr.mxu0 0.0
    %134 = vmatpush2.msra.mxu0 0.0
    %135 = vmatprep.subr.mxu0 0.0
    %136 = vmatpush2.msra.mxu0 0.0
    %137 = vmatprep.subr.mxu0 0.0
    %138 = vmatpush2.msra.mxu0 0.0
    %139 = vmatprep.subr.mxu0 0.0
    %140 = vmatpush2.msra.mxu0 0.0
    %141 = vmatprep.subr.mxu0 0.0
    %142 = vmatpush2.msra.mxu0 0.0
    %143 = vmatprep.subr.mxu0 0.0
    %144 = vmatpush2.msra.mxu0 0.0
    %145 = vmatprep.subr.mxu0 0.0
    %146 = vmatpush2.msra.mxu0 0.0
    %147 = vmatprep.subr.mxu0 0.0
    %148 = vmatpush2.msra.mxu0 0.0
    %149 = vmatprep.subr.mxu0 0.0
    %150 = vmatpush2.msra.mxu0 0.0
    %151 = vmatprep.subr.mxu0 0.0
    %152 = vmatpush2.msra.mxu0 0.0
    %153 = vmatprep.subr.mxu0 0.0
    %154 = vmatpush2.msra.mxu0 0.0
    %155 = vmatprep.subr.mxu0 0.0
    %156 = vmatpush2.msra.mxu0 0.0
    %157 = vmatprep.subr.mxu0 0.0
    %158 = vmatpush2.msra.mxu0 0.0
    %159 = vmatprep.subr.mxu0 0.0
    %160 = vmatpush2.msra.mxu0 0.0
    %161 = vmatprep.mubr.f32.mxu0 0.0
    %162 = vmatmul.mubr.f32.gmra.mxu0 %v50
    %v163 = vpop.f32.mrf.mxu0
    %v164 = vadd.f32 %v46, %v163
    %v165 = vpop.f32.mrf.mxu0
    %166 = vmatprep.mubr.f32.mxu0 0.0
    %167 = vmatmul.mubr.f32.gmra.mxu0 %v53
    %v168 = vpop.f32.mrf.mxu0
    %v169 = vadd.f32 %v46, %v168
    %v170 = vpop.f32.mrf.mxu0
    %171 = vmatprep.mubr.f32.mxu0 0.0
    %172 = vmatmul.mubr.f32.gmra.mxu0 %v56
    %v173 = vpop.f32.mrf.mxu0
    %v174 = vadd.f32 %v46, %v173
    %v175 = vpop.f32.mrf.mxu0
    %176 = vmatprep.mubr.f32.mxu0 0.0
    %177 = vmatmul.mubr.f32.gmra.mxu0 %v59
    %v178 = vpop.f32.mrf.mxu0
    %v179 = vadd.f32 %v46, %v178
    %v180 = vpop.f32.mrf.mxu0
    %181 = vmatprep.mubr.f32.mxu0 0.0
    %182 = vmatmul.mubr.f32.gmra.mxu0 %v62
    %v183 = vpop.f32.mrf.mxu0
    %v184 = vadd.f32 %v46, %v183
    %v185 = vpop.f32.mrf.mxu0
    %186 = vmatprep.mubr.f32.mxu0 0.0
    %187 = vmatmul.mubr.f32.gmra.mxu0 %v65
    %v188 = vpop.f32.mrf.mxu0
    %v189 = vadd.f32 %v46, %v188
    %v190 = vpop.f32.mrf.mxu0
    %191 = vmatprep.mubr.f32.mxu0 0.0
    %192 = vmatmul.mubr.f32.gmra.mxu0 %v68
    %v193 = vpop.f32.mrf.mxu0
    %v194 = vadd.f32 %v46, %v193
    %v195 = vpop.f32.mrf.mxu0
    %196 = vmatprep.mubr.f32.mxu0 0.0
    %197 = vmatmul.mubr.f32.gmra.mxu0 %v71
    %v198 = vpop.f32.mrf.mxu0
    %v199 = vadd.f32 %v46, %v198
    %v200 = vpop.f32.mrf.mxu0
    %201 = vmatprep.mubr.f32.mxu0 0.0
    %202 = vmatmul.mubr.f32.gmra.mxu0 %v74
    %v203 = vpop.f32.mrf.mxu0
    %v204 = vadd.f32 %v46, %v203
    %v205 = vpop.f32.mrf.mxu0
    %206 = vmatprep.mubr.f32.mxu0 0.0
    %207 = vmatmul.mubr.f32.gmra.mxu0 %v77
    %v208 = vpop.f32.mrf.mxu0
    %v209 = vadd.f32 %v46, %v208
    %v210 = vpop.f32.mrf.mxu0
    %211 = vmatprep.mubr.f32.mxu0 0.0
    %212 = vmatmul.mubr.f32.gmra.mxu0 %v80
    %v213 = vpop.f32.mrf.mxu0
    %v214 = vadd.f32 %v46, %v213
    %v215 = vpop.f32.mrf.mxu0
    %216 = vmatprep.mubr.f32.mxu0 0.0
    %217 = vmatmul.mubr.f32.gmra.mxu0 %v83
    %v218 = vpop.f32.mrf.mxu0
    %v219 = vadd.f32 %v46, %v218
    %v220 = vpop.f32.mrf.mxu0
    %221 = vmatprep.mubr.f32.mxu0 0.0
    %222 = vmatmul.mubr.f32.gmra.mxu0 %v86
    %v223 = vpop.f32.mrf.mxu0
    %v224 = vadd.f32 %v46, %v223
    %v225 = vpop.f32.mrf.mxu0
    %226 = vmatprep.mubr.f32.mxu0 0.0
    %227 = vmatmul.mubr.f32.gmra.mxu0 %v89
    %v228 = vpop.f32.mrf.mxu0
    %v229 = vadd.f32 %v46, %v228
    %v230 = vpop.f32.mrf.mxu0
    %231 = vmatprep.mubr.f32.mxu0 0.0
    %232 = vmatmul.mubr.f32.gmra.mxu0 %v92
    %v233 = vpop.f32.mrf.mxu0
    %v234 = vadd.f32 %v46, %v233
    %v235 = vpop.f32.mrf.mxu0
    %236 = vmatprep.mubr.f32.mxu0 0.0
    %237 = vmatmul.mubr.f32.gmra.mxu0 %v95
    %v238 = vpop.f32.mrf.mxu0
    %v239 = vadd.f32 %v46, %v238
    %v240 = vpop.f32.mrf.mxu0
    %241 = vdwg.mxu0
    %v242 = vmul.f32 %v164, %v164
    %v243 = vmul.f32 %v169, %v169
    %v244 = vmul.f32 %v174, %v174
    %v245 = vmul.f32 %v179, %v179
    %v246 = vmul.f32 %v184, %v184
    %v247 = vmul.f32 %v189, %v189
    %v248 = vmul.f32 %v194, %v194
    %v249 = vmul.f32 %v199, %v199
    %v250 = vmul.f32 %v204, %v204
    %v251 = vmul.f32 %v209, %v209
    %v252 = vmul.f32 %v214, %v214
    %v253 = vmul.f32 %v219, %v219
    %v254 = vmul.f32 %v224, %v224
    %v255 = vmul.f32 %v229, %v229
    %v256 = vmul.f32 %v234, %v234
    %v257 = vmul.f32 %v239, %v239
    %v258 = vsel %vm48, %v242, 0.0
    %259 = vadd.xlane.f32.xlu0 %v258
    %v260 = vpop.xlane.xlu0 %259
    %v261 = vsel %vm48, %v243, 0.0
    %262 = vadd.xlane.f32.xlu0 %v261
    %v263 = vpop.xlane.xlu0 %262
    %v264 = vsel %vm48, %v244, 0.0
    %265 = vadd.xlane.f32.xlu0 %v264
    %v266 = vpop.xlane.xlu0 %265
    %v267 = vsel %vm48, %v245, 0.0
    %268 = vadd.xlane.f32.xlu0 %v267
    %v269 = vpop.xlane.xlu0 %268
    %v270 = vsel %vm48, %v246, 0.0
    %271 = vadd.xlane.f32.xlu0 %v270
    %v272 = vpop.xlane.xlu0 %271
    %v273 = vsel %vm48, %v247, 0.0
    %274 = vadd.xlane.f32.xlu0 %v273
    %v275 = vpop.xlane.xlu0 %274
    %v276 = vsel %vm48, %v248, 0.0
    %277 = vadd.xlane.f32.xlu0 %v276
    %v278 = vpop.xlane.xlu0 %277
    %v279 = vsel %vm48, %v249, 0.0
    %280 = vadd.xlane.f32.xlu0 %v279
    %v281 = vpop.xlane.xlu0 %280
    %v282 = vsel %vm48, %v250, 0.0
    %283 = vadd.xlane.f32.xlu0 %v282
    %v284 = vpop.xlane.xlu0 %283
    %v285 = vsel %vm48, %v251, 0.0
    %286 = vadd.xlane.f32.xlu0 %v285
    %v287 = vpop.xlane.xlu0 %286
    %v288 = vsel %vm48, %v252, 0.0
    %289 = vadd.xlane.f32.xlu0 %v288
    %v290 = vpop.xlane.xlu0 %289
    %v291 = vsel %vm48, %v253, 0.0
    %292 = vadd.xlane.f32.xlu0 %v291
    %v293 = vpop.xlane.xlu0 %292
    %v294 = vsel %vm48, %v254, 0.0
    %295 = vadd.xlane.f32.xlu0 %v294
    %v296 = vpop.xlane.xlu0 %295
    %v297 = vsel %vm48, %v255, 0.0
    %298 = vadd.xlane.f32.xlu0 %v297
    %v299 = vpop.xlane.xlu0 %298
    %v300 = vsel %vm48, %v256, 0.0
    %301 = vadd.xlane.f32.xlu0 %v300
    %v302 = vpop.xlane.xlu0 %301
    %v303 = vsel %vm48, %v257, 0.0
    %304 = vadd.xlane.f32.xlu0 %v303
    %v305 = vpop.xlane.xlu0 %304
    %v306 = vmax.f32 %v260, 1e-24
    %v307 = vmax.f32 %v263, 1e-24
    %v308 = vmax.f32 %v266, 1e-24
    %v309 = vmax.f32 %v269, 1e-24
    %v310 = vmax.f32 %v272, 1e-24
    %v311 = vmax.f32 %v275, 1e-24
    %v312 = vmax.f32 %v278, 1e-24
    %v313 = vmax.f32 %v281, 1e-24
    %v314 = vmax.f32 %v284, 1e-24
    %v315 = vmax.f32 %v287, 1e-24
    %v316 = vmax.f32 %v290, 1e-24
    %v317 = vmax.f32 %v293, 1e-24
    %v318 = vmax.f32 %v296, 1e-24
    %v319 = vmax.f32 %v299, 1e-24
    %v320 = vmax.f32 %v302, 1e-24
    %v321 = vmax.f32 %v305, 1e-24
    %v322 = vrsqrt.pop %v306
    %v323 = vrsqrt.pop %v307
    %v324 = vrsqrt.pop %v308
    %v325 = vrsqrt.pop %v309
    %v326 = vrsqrt.pop %v310
    %v327 = vrsqrt.pop %v311
    %v328 = vrsqrt.pop %v312
    %v329 = vrsqrt.pop %v313
    %v330 = vrsqrt.pop %v314
    %v331 = vrsqrt.pop %v315
    %v332 = vrsqrt.pop %v316
    %v333 = vrsqrt.pop %v317
    %v334 = vrsqrt.pop %v318
    %v335 = vrsqrt.pop %v319
    %v336 = vrsqrt.pop %v320
    %v337 = vrsqrt.pop %v321
    %v338 = vmul.f32 %v164, %v322
    %v339 = vmul.f32 %v169, %v323
    %v340 = vmul.f32 %v174, %v324
    %v341 = vmul.f32 %v179, %v325
    %v342 = vmul.f32 %v184, %v326
    %v343 = vmul.f32 %v189, %v327
    %v344 = vmul.f32 %v194, %v328
    %v345 = vmul.f32 %v199, %v329
    %v346 = vmul.f32 %v204, %v330
    %v347 = vmul.f32 %v209, %v331
    %v348 = vmul.f32 %v214, %v332
    %v349 = vmul.f32 %v219, %v333
    %v350 = vmul.f32 %v224, %v334
    %v351 = vmul.f32 %v229, %v335
    %v352 = vmul.f32 %v234, %v336
    %v353 = vmul.f32 %v239, %v337
    %v354 = vmax.f32 %v338, 0.0
    %v355 = vmax.f32 %v339, 0.0
    %v356 = vmax.f32 %v340, 0.0
    %v357 = vmax.f32 %v341, 0.0
    %v358 = vmax.f32 %v342, 0.0
    %v359 = vmax.f32 %v343, 0.0
    %v360 = vmax.f32 %v344, 0.0
    %v361 = vmax.f32 %v345, 0.0
    %v362 = vmax.f32 %v346, 0.0
    %v363 = vmax.f32 %v347, 0.0
    %v364 = vmax.f32 %v348, 0.0
    %v365 = vmax.f32 %v349, 0.0
    %v366 = vmax.f32 %v350, 0.0
    %v367 = vmax.f32 %v351, 0.0
    %v368 = vmax.f32 %v352, 0.0
    %v369 = vmax.f32 %v353, 0.0
    %v370 = vld [vmem:[%s3] sm:$0xff]
    %v371 = vld [vmem:[%s3 + $0x8] sm:$0xff]
    %v372 = vld [vmem:[%s3 + $0x10] sm:$0xff]
    %v373 = vld [vmem:[%s3 + $0x18] sm:$0xff]
    %s374 = scalar_lea.vmem %s0, 128
    %v375 = vld [vmem:[%s374] sm:$0xff]
    %v376 = vld [vmem:[%s374 + $0x8] sm:$0xff]
    %v377 = vld [vmem:[%s374 + $0x10] sm:$0xff]
    %v378 = vld [vmem:[%s374 + $0x18] sm:$0xff]
    %v379 = vld [vmem:[%s374 + $0x20] sm:$0xff]
    %v380 = vld [vmem:[%s374 + $0x28] sm:$0xff]
    %v381 = vld [vmem:[%s374 + $0x30] sm:$0xff]
    %v382 = vld [vmem:[%s374 + $0x38] sm:$0xff]
    %v383 = vld [vmem:[%s374 + $0x40] sm:$0xff]
    %v384 = vld [vmem:[%s374 + $0x48] sm:$0xff]
    %v385 = vld [vmem:[%s374 + $0x50] sm:$0xff]
    %v386 = vld [vmem:[%s374 + $0x58] sm:$0xff]
    %v387 = vld [vmem:[%s374 + $0x60] sm:$0xff]
    %v388 = vld [vmem:[%s374 + $0x68] sm:$0xff]
    %v389 = vld [vmem:[%s374 + $0x70] sm:$0xff]
    %v390 = vld [vmem:[%s374 + $0x78] sm:$0xff]
    %s391 = scalar_lea.vmem %s1, 32
    %v392 = vld [vmem:[%s391] sm:$0xff]
    %v393 = vld [vmem:[%s391 + $0x8] sm:$0xff]
    %v394 = vld [vmem:[%s391 + $0x10] sm:$0xff]
    %v395 = vld [vmem:[%s391 + $0x18] sm:$0xff]
    %s396 = scalar_lea.vmem %s2, 1
    %v397 = vld [vmem:[%s396] sm:$0x1]
    %v399 = vlaneseq
    %v400 = vshrl.u32 %v399, 7
    %v401 = vsub.s32 0, %v400
    %v402 = vrot.slane %v397, %v401
    %v405 = vsel %vm48, %v375, 0
    %v408 = vsel %vm48, %v376, 0
    %v411 = vsel %vm48, %v377, 0
    %v414 = vsel %vm48, %v378, 0
    %v417 = vsel %vm48, %v379, 0
    %v420 = vsel %vm48, %v380, 0
    %v423 = vsel %vm48, %v381, 0
    %v426 = vsel %vm48, %v382, 0
    %v429 = vsel %vm48, %v383, 0
    %v432 = vsel %vm48, %v384, 0
    %v435 = vsel %vm48, %v385, 0
    %v438 = vsel %vm48, %v386, 0
    %v441 = vsel %vm48, %v387, 0
    %v444 = vsel %vm48, %v388, 0
    %v447 = vsel %vm48, %v389, 0
    %v450 = vsel %vm48, %v390, 0
    %452 = vmatprep.subr.mxu0 0.0
    %453 = vmatpush1.msra.mxu0 0.0
    %454 = vmatprep.subr.mxu0 0.0
    %455 = vmatpush1.msra.mxu0 0.0
    %456 = vmatprep.subr.mxu0 0.0
    %457 = vmatpush1.msra.mxu0 0.0
    %458 = vmatprep.subr.mxu0 0.0
    %459 = vmatpush1.msra.mxu0 0.0
    %460 = vmatprep.subr.mxu0 0.0
    %461 = vmatpush1.msra.mxu0 0.0
    %462 = vmatprep.subr.mxu0 0.0
    %463 = vmatpush1.msra.mxu0 0.0
    %464 = vmatprep.subr.mxu0 0.0
    %465 = vmatpush1.msra.mxu0 0.0
    %466 = vmatprep.subr.mxu0 0.0
    %467 = vmatpush1.msra.mxu0 0.0
    %468 = vmatprep.subr.mxu0 0.0
    %469 = vmatpush1.msra.mxu0 0.0
    %470 = vmatprep.subr.mxu0 0.0
    %471 = vmatpush1.msra.mxu0 0.0
    %472 = vmatprep.subr.mxu0 0.0
    %473 = vmatpush1.msra.mxu0 0.0
    %474 = vmatprep.subr.mxu0 0.0
    %475 = vmatpush1.msra.mxu0 0.0
    %476 = vmatprep.subr.mxu0 0.0
    %477 = vmatpush1.msra.mxu0 %v395
    %478 = vmatprep.subr.mxu0 0.0
    %479 = vmatpush1.msra.mxu0 %v394
    %480 = vmatprep.subr.mxu0 0.0
    %481 = vmatpush1.msra.mxu0 %v393
    %482 = vmatprep.subr.mxu0 0.0
    %483 = vmatpush1.msra.mxu0 %v392
    %484 = vmatprep.subr.mxu0 0.0
    %485 = vmatpush2.msra.mxu0 0.0
    %486 = vmatprep.subr.mxu0 0.0
    %487 = vmatpush2.msra.mxu0 0.0
    %488 = vmatprep.subr.mxu0 0.0
    %489 = vmatpush2.msra.mxu0 0.0
    %490 = vmatprep.subr.mxu0 0.0
    %491 = vmatpush2.msra.mxu0 0.0
    %492 = vmatprep.subr.mxu0 0.0
    %493 = vmatpush2.msra.mxu0 0.0
    %494 = vmatprep.subr.mxu0 0.0
    %495 = vmatpush2.msra.mxu0 0.0
    %496 = vmatprep.subr.mxu0 0.0
    %497 = vmatpush2.msra.mxu0 0.0
    %498 = vmatprep.subr.mxu0 0.0
    %499 = vmatpush2.msra.mxu0 0.0
    %500 = vmatprep.subr.mxu0 0.0
    %501 = vmatpush2.msra.mxu0 0.0
    %502 = vmatprep.subr.mxu0 0.0
    %503 = vmatpush2.msra.mxu0 0.0
    %504 = vmatprep.subr.mxu0 0.0
    %505 = vmatpush2.msra.mxu0 0.0
    %506 = vmatprep.subr.mxu0 0.0
    %507 = vmatpush2.msra.mxu0 0.0
    %508 = vmatprep.subr.mxu0 0.0
    %509 = vmatpush2.msra.mxu0 0.0
    %510 = vmatprep.subr.mxu0 0.0
    %511 = vmatpush2.msra.mxu0 0.0
    %512 = vmatprep.subr.mxu0 0.0
    %513 = vmatpush2.msra.mxu0 0.0
    %514 = vmatprep.subr.mxu0 0.0
    %515 = vmatpush2.msra.mxu0 0.0
    %516 = vmatprep.mubr.f32.mxu0 0.0
    %517 = vmatmul.mubr.f32.gmra.mxu0 %v405
    %v518 = vpop.f32.mrf.mxu0
    %v519 = vadd.f32 %v402, %v518
    %v520 = vpop.f32.mrf.mxu0
    %521 = vmatprep.mubr.f32.mxu0 0.0
    %522 = vmatmul.mubr.f32.gmra.mxu0 %v408
    %v523 = vpop.f32.mrf.mxu0
    %v524 = vadd.f32 %v402, %v523
    %v525 = vpop.f32.mrf.mxu0
    %526 = vmatprep.mubr.f32.mxu0 0.0
    %527 = vmatmul.mubr.f32.gmra.mxu0 %v411
    %v528 = vpop.f32.mrf.mxu0
    %v529 = vadd.f32 %v402, %v528
    %v530 = vpop.f32.mrf.mxu0
    %531 = vmatprep.mubr.f32.mxu0 0.0
    %532 = vmatmul.mubr.f32.gmra.mxu0 %v414
    %v533 = vpop.f32.mrf.mxu0
    %v534 = vadd.f32 %v402, %v533
    %v535 = vpop.f32.mrf.mxu0
    %536 = vmatprep.mubr.f32.mxu0 0.0
    %537 = vmatmul.mubr.f32.gmra.mxu0 %v417
    %v538 = vpop.f32.mrf.mxu0
    %v539 = vadd.f32 %v402, %v538
    %v540 = vpop.f32.mrf.mxu0
    %541 = vmatprep.mubr.f32.mxu0 0.0
    %542 = vmatmul.mubr.f32.gmra.mxu0 %v420
    %v543 = vpop.f32.mrf.mxu0
    %v544 = vadd.f32 %v402, %v543
    %v545 = vpop.f32.mrf.mxu0
    %546 = vmatprep.mubr.f32.mxu0 0.0
    %547 = vmatmul.mubr.f32.gmra.mxu0 %v423
    %v548 = vpop.f32.mrf.mxu0
    %v549 = vadd.f32 %v402, %v548
    %v550 = vpop.f32.mrf.mxu0
    %551 = vmatprep.mubr.f32.mxu0 0.0
    %552 = vmatmul.mubr.f32.gmra.mxu0 %v426
    %v553 = vpop.f32.mrf.mxu0
    %v554 = vadd.f32 %v402, %v553
    %v555 = vpop.f32.mrf.mxu0
    %556 = vmatprep.mubr.f32.mxu0 0.0
    %557 = vmatmul.mubr.f32.gmra.mxu0 %v429
    %v558 = vpop.f32.mrf.mxu0
    %v559 = vadd.f32 %v402, %v558
    %v560 = vpop.f32.mrf.mxu0
    %561 = vmatprep.mubr.f32.mxu0 0.0
    %562 = vmatmul.mubr.f32.gmra.mxu0 %v432
    %v563 = vpop.f32.mrf.mxu0
    %v564 = vadd.f32 %v402, %v563
    %v565 = vpop.f32.mrf.mxu0
    %566 = vmatprep.mubr.f32.mxu0 0.0
    %567 = vmatmul.mubr.f32.gmra.mxu0 %v435
    %v568 = vpop.f32.mrf.mxu0
    %v569 = vadd.f32 %v402, %v568
    %v570 = vpop.f32.mrf.mxu0
    %571 = vmatprep.mubr.f32.mxu0 0.0
    %572 = vmatmul.mubr.f32.gmra.mxu0 %v438
    %v573 = vpop.f32.mrf.mxu0
    %v574 = vadd.f32 %v402, %v573
    %v575 = vpop.f32.mrf.mxu0
    %576 = vmatprep.mubr.f32.mxu0 0.0
    %577 = vmatmul.mubr.f32.gmra.mxu0 %v441
    %v578 = vpop.f32.mrf.mxu0
    %v579 = vadd.f32 %v402, %v578
    %v580 = vpop.f32.mrf.mxu0
    %581 = vmatprep.mubr.f32.mxu0 0.0
    %582 = vmatmul.mubr.f32.gmra.mxu0 %v444
    %v583 = vpop.f32.mrf.mxu0
    %v584 = vadd.f32 %v402, %v583
    %v585 = vpop.f32.mrf.mxu0
    %586 = vmatprep.mubr.f32.mxu0 0.0
    %587 = vmatmul.mubr.f32.gmra.mxu0 %v447
    %v588 = vpop.f32.mrf.mxu0
    %v589 = vadd.f32 %v402, %v588
    %v590 = vpop.f32.mrf.mxu0
    %591 = vmatprep.mubr.f32.mxu0 0.0
    %592 = vmatmul.mubr.f32.gmra.mxu0 %v450
    %v593 = vpop.f32.mrf.mxu0
    %v594 = vadd.f32 %v402, %v593
    %v595 = vpop.f32.mrf.mxu0
    %596 = vdwg.mxu0
    %v597 = vmul.f32 %v519, %v519
    %v598 = vmul.f32 %v524, %v524
    %v599 = vmul.f32 %v529, %v529
    %v600 = vmul.f32 %v534, %v534
    %v601 = vmul.f32 %v539, %v539
    %v602 = vmul.f32 %v544, %v544
    %v603 = vmul.f32 %v549, %v549
    %v604 = vmul.f32 %v554, %v554
    %v605 = vmul.f32 %v559, %v559
    %v606 = vmul.f32 %v564, %v564
    %v607 = vmul.f32 %v569, %v569
    %v608 = vmul.f32 %v574, %v574
    %v609 = vmul.f32 %v579, %v579
    %v610 = vmul.f32 %v584, %v584
    %v611 = vmul.f32 %v589, %v589
    %v612 = vmul.f32 %v594, %v594
    %v613 = vsel %vm48, %v597, 0.0
    %614 = vadd.xlane.f32.xlu0 %v613
    %v615 = vpop.xlane.xlu0 %614
    %v616 = vsel %vm48, %v598, 0.0
    %617 = vadd.xlane.f32.xlu0 %v616
    %v618 = vpop.xlane.xlu0 %617
    %v619 = vsel %vm48, %v599, 0.0
    %620 = vadd.xlane.f32.xlu0 %v619
    %v621 = vpop.xlane.xlu0 %620
    %v622 = vsel %vm48, %v600, 0.0
    %623 = vadd.xlane.f32.xlu0 %v622
    %v624 = vpop.xlane.xlu0 %623
    %v625 = vsel %vm48, %v601, 0.0
    %626 = vadd.xlane.f32.xlu0 %v625
    %v627 = vpop.xlane.xlu0 %626
    %v628 = vsel %vm48, %v602, 0.0
    %629 = vadd.xlane.f32.xlu0 %v628
    %v630 = vpop.xlane.xlu0 %629
    %v631 = vsel %vm48, %v603, 0.0
    %632 = vadd.xlane.f32.xlu0 %v631
    %v633 = vpop.xlane.xlu0 %632
    %v634 = vsel %vm48, %v604, 0.0
    %635 = vadd.xlane.f32.xlu0 %v634
    %v636 = vpop.xlane.xlu0 %635
    %v637 = vsel %vm48, %v605, 0.0
    %638 = vadd.xlane.f32.xlu0 %v637
    %v639 = vpop.xlane.xlu0 %638
    %v640 = vsel %vm48, %v606, 0.0
    %641 = vadd.xlane.f32.xlu0 %v640
    %v642 = vpop.xlane.xlu0 %641
    %v643 = vsel %vm48, %v607, 0.0
    %644 = vadd.xlane.f32.xlu0 %v643
    %v645 = vpop.xlane.xlu0 %644
    %v646 = vsel %vm48, %v608, 0.0
    %647 = vadd.xlane.f32.xlu0 %v646
    %v648 = vpop.xlane.xlu0 %647
    %v649 = vsel %vm48, %v609, 0.0
    %650 = vadd.xlane.f32.xlu0 %v649
    %v651 = vpop.xlane.xlu0 %650
    %v652 = vsel %vm48, %v610, 0.0
    %653 = vadd.xlane.f32.xlu0 %v652
    %v654 = vpop.xlane.xlu0 %653
    %v655 = vsel %vm48, %v611, 0.0
    %656 = vadd.xlane.f32.xlu0 %v655
    %v657 = vpop.xlane.xlu0 %656
    %v658 = vsel %vm48, %v612, 0.0
    %659 = vadd.xlane.f32.xlu0 %v658
    %v660 = vpop.xlane.xlu0 %659
    %v661 = vmax.f32 %v615, 1e-24
    %v662 = vmax.f32 %v618, 1e-24
    %v663 = vmax.f32 %v621, 1e-24
    %v664 = vmax.f32 %v624, 1e-24
    %v665 = vmax.f32 %v627, 1e-24
    %v666 = vmax.f32 %v630, 1e-24
    %v667 = vmax.f32 %v633, 1e-24
    %v668 = vmax.f32 %v636, 1e-24
    %v669 = vmax.f32 %v639, 1e-24
    %v670 = vmax.f32 %v642, 1e-24
    %v671 = vmax.f32 %v645, 1e-24
    %v672 = vmax.f32 %v648, 1e-24
    %v673 = vmax.f32 %v651, 1e-24
    %v674 = vmax.f32 %v654, 1e-24
    %v675 = vmax.f32 %v657, 1e-24
    %v676 = vmax.f32 %v660, 1e-24
    %v677 = vrsqrt.pop %v661
    %v678 = vrsqrt.pop %v662
    %v679 = vrsqrt.pop %v663
    %v680 = vrsqrt.pop %v664
    %v681 = vrsqrt.pop %v665
    %v682 = vrsqrt.pop %v666
    %v683 = vrsqrt.pop %v667
    %v684 = vrsqrt.pop %v668
    %v685 = vrsqrt.pop %v669
    %v686 = vrsqrt.pop %v670
    %v687 = vrsqrt.pop %v671
    %v688 = vrsqrt.pop %v672
    %v689 = vrsqrt.pop %v673
    %v690 = vrsqrt.pop %v674
    %v691 = vrsqrt.pop %v675
    %v692 = vrsqrt.pop %v676
    %v693 = vmul.f32 %v519, %v677
    %v694 = vmul.f32 %v524, %v678
    %v695 = vmul.f32 %v529, %v679
    %v696 = vmul.f32 %v534, %v680
    %v697 = vmul.f32 %v539, %v681
    %v698 = vmul.f32 %v544, %v682
    %v699 = vmul.f32 %v549, %v683
    %v700 = vmul.f32 %v554, %v684
    %v701 = vmul.f32 %v559, %v685
    %v702 = vmul.f32 %v564, %v686
    %v703 = vmul.f32 %v569, %v687
    %v704 = vmul.f32 %v574, %v688
    %v705 = vmul.f32 %v579, %v689
    %v706 = vmul.f32 %v584, %v690
    %v707 = vmul.f32 %v589, %v691
    %v708 = vmul.f32 %v594, %v692
    %v709 = vmax.f32 %v693, 0.0
    %v710 = vmax.f32 %v694, 0.0
    %v711 = vmax.f32 %v695, 0.0
    %v712 = vmax.f32 %v696, 0.0
    %v713 = vmax.f32 %v697, 0.0
    %v714 = vmax.f32 %v698, 0.0
    %v715 = vmax.f32 %v699, 0.0
    %v716 = vmax.f32 %v700, 0.0
    %v717 = vmax.f32 %v701, 0.0
    %v718 = vmax.f32 %v702, 0.0
    %v719 = vmax.f32 %v703, 0.0
    %v720 = vmax.f32 %v704, 0.0
    %v721 = vmax.f32 %v705, 0.0
    %v722 = vmax.f32 %v706, 0.0
    %v723 = vmax.f32 %v707, 0.0
    %v724 = vmax.f32 %v708, 0.0
    %s725 = scalar_lea.vmem %s3, 32
    %v726 = vld [vmem:[%s725] sm:$0xff]
    %v727 = vld [vmem:[%s725 + $0x8] sm:$0xff]
    %v728 = vld [vmem:[%s725 + $0x10] sm:$0xff]
    %v729 = vld [vmem:[%s725 + $0x18] sm:$0xff]
    %v731 = vsel %vm48, %v709, 0
    %v734 = vsel %vm48, %v710, 0
    %v737 = vsel %vm48, %v711, 0
    %v740 = vsel %vm48, %v712, 0
    %v743 = vsel %vm48, %v713, 0
    %v746 = vsel %vm48, %v714, 0
    %v749 = vsel %vm48, %v715, 0
    %v752 = vsel %vm48, %v716, 0
    %v755 = vsel %vm48, %v717, 0
    %v758 = vsel %vm48, %v718, 0
    %v761 = vsel %vm48, %v719, 0
    %v764 = vsel %vm48, %v720, 0
    %v767 = vsel %vm48, %v721, 0
    %v770 = vsel %vm48, %v722, 0
    %v773 = vsel %vm48, %v723, 0
    %v776 = vsel %vm48, %v724, 0
    %778 = vmatprep.subr.mxu0 0.0
    %779 = vmatpush1.msra.mxu0 0.0
    %780 = vmatprep.subr.mxu0 0.0
    %781 = vmatpush1.msra.mxu0 0.0
    %782 = vmatprep.subr.mxu0 0.0
    %783 = vmatpush1.msra.mxu0 0.0
    %784 = vmatprep.subr.mxu0 0.0
    %785 = vmatpush1.msra.mxu0 0.0
    %786 = vmatprep.subr.mxu0 0.0
    %787 = vmatpush1.msra.mxu0 0.0
    %788 = vmatprep.subr.mxu0 0.0
    %789 = vmatpush1.msra.mxu0 0.0
    %790 = vmatprep.subr.mxu0 0.0
    %791 = vmatpush1.msra.mxu0 0.0
    %792 = vmatprep.subr.mxu0 0.0
    %793 = vmatpush1.msra.mxu0 0.0
    %794 = vmatprep.subr.mxu0 0.0
    %795 = vmatpush1.msra.mxu0 0.0
    %796 = vmatprep.subr.mxu0 0.0
    %797 = vmatpush1.msra.mxu0 0.0
    %798 = vmatprep.subr.mxu0 0.0
    %799 = vmatpush1.msra.mxu0 0.0
    %800 = vmatprep.subr.mxu0 0.0
    %801 = vmatpush1.msra.mxu0 0.0
    %802 = vmatprep.subr.mxu0 0.0
    %803 = vmatpush1.msra.mxu0 %v729
    %804 = vmatprep.subr.mxu0 0.0
    %805 = vmatpush1.msra.mxu0 %v728
    %806 = vmatprep.subr.mxu0 0.0
    %807 = vmatpush1.msra.mxu0 %v727
    %808 = vmatprep.subr.mxu0 0.0
    %809 = vmatpush1.msra.mxu0 %v726
    %810 = vmatprep.subr.mxu0 0.0
    %811 = vmatpush2.msra.mxu0 0.0
    %812 = vmatprep.subr.mxu0 0.0
    %813 = vmatpush2.msra.mxu0 0.0
    %814 = vmatprep.subr.mxu0 0.0
    %815 = vmatpush2.msra.mxu0 0.0
    %816 = vmatprep.subr.mxu0 0.0
    %817 = vmatpush2.msra.mxu0 0.0
    %818 = vmatprep.subr.mxu0 0.0
    %819 = vmatpush2.msra.mxu0 0.0
    %820 = vmatprep.subr.mxu0 0.0
    %821 = vmatpush2.msra.mxu0 0.0
    %822 = vmatprep.subr.mxu0 0.0
    %823 = vmatpush2.msra.mxu0 0.0
    %824 = vmatprep.subr.mxu0 0.0
    %825 = vmatpush2.msra.mxu0 0.0
    %826 = vmatprep.subr.mxu0 0.0
    %827 = vmatpush2.msra.mxu0 0.0
    %828 = vmatprep.subr.mxu0 0.0
    %829 = vmatpush2.msra.mxu0 0.0
    %830 = vmatprep.subr.mxu0 0.0
    %831 = vmatpush2.msra.mxu0 0.0
    %832 = vmatprep.subr.mxu0 0.0
    %833 = vmatpush2.msra.mxu0 0.0
    %834 = vmatprep.subr.mxu0 0.0
    %835 = vmatpush2.msra.mxu0 0.0
    %836 = vmatprep.subr.mxu0 0.0
    %837 = vmatpush2.msra.mxu0 0.0
    %838 = vmatprep.subr.mxu0 0.0
    %839 = vmatpush2.msra.mxu0 0.0
    %840 = vmatprep.subr.mxu0 0.0
    %841 = vmatpush2.msra.mxu0 0.0
    %842 = vmatprep.mubr.f32.mxu0 0.0
    %843 = vmatmul.mubr.f32.gmra.mxu0 %v731
    %v844 = vpop.f32.mrf.mxu0
    %v845 = vadd.f32 0.0, %v844
    %v846 = vpop.f32.mrf.mxu0
    %847 = vmatprep.mubr.f32.mxu0 0.0
    %848 = vmatmul.mubr.f32.gmra.mxu0 %v734
    %v849 = vpop.f32.mrf.mxu0
    %v850 = vadd.f32 0.0, %v849
    %v851 = vpop.f32.mrf.mxu0
    %852 = vmatprep.mubr.f32.mxu0 0.0
    %853 = vmatmul.mubr.f32.gmra.mxu0 %v737
    %v854 = vpop.f32.mrf.mxu0
    %v855 = vadd.f32 0.0, %v854
    %v856 = vpop.f32.mrf.mxu0
    %857 = vmatprep.mubr.f32.mxu0 0.0
    %858 = vmatmul.mubr.f32.gmra.mxu0 %v740
    %v859 = vpop.f32.mrf.mxu0
    %v860 = vadd.f32 0.0, %v859
    %v861 = vpop.f32.mrf.mxu0
    %862 = vmatprep.mubr.f32.mxu0 0.0
    %863 = vmatmul.mubr.f32.gmra.mxu0 %v743
    %v864 = vpop.f32.mrf.mxu0
    %v865 = vadd.f32 0.0, %v864
    %v866 = vpop.f32.mrf.mxu0
    %867 = vmatprep.mubr.f32.mxu0 0.0
    %868 = vmatmul.mubr.f32.gmra.mxu0 %v746
    %v869 = vpop.f32.mrf.mxu0
    %v870 = vadd.f32 0.0, %v869
    %v871 = vpop.f32.mrf.mxu0
    %872 = vmatprep.mubr.f32.mxu0 0.0
    %873 = vmatmul.mubr.f32.gmra.mxu0 %v749
    %v874 = vpop.f32.mrf.mxu0
    %v875 = vadd.f32 0.0, %v874
    %v876 = vpop.f32.mrf.mxu0
    %877 = vmatprep.mubr.f32.mxu0 0.0
    %878 = vmatmul.mubr.f32.gmra.mxu0 %v752
    %v879 = vpop.f32.mrf.mxu0
    %v880 = vadd.f32 0.0, %v879
    %v881 = vpop.f32.mrf.mxu0
    %882 = vmatprep.mubr.f32.mxu0 0.0
    %883 = vmatmul.mubr.f32.gmra.mxu0 %v755
    %v884 = vpop.f32.mrf.mxu0
    %v885 = vadd.f32 0.0, %v884
    %v886 = vpop.f32.mrf.mxu0
    %887 = vmatprep.mubr.f32.mxu0 0.0
    %888 = vmatmul.mubr.f32.gmra.mxu0 %v758
    %v889 = vpop.f32.mrf.mxu0
    %v890 = vadd.f32 0.0, %v889
    %v891 = vpop.f32.mrf.mxu0
    %892 = vmatprep.mubr.f32.mxu0 0.0
    %893 = vmatmul.mubr.f32.gmra.mxu0 %v761
    %v894 = vpop.f32.mrf.mxu0
    %v895 = vadd.f32 0.0, %v894
    %v896 = vpop.f32.mrf.mxu0
    %897 = vmatprep.mubr.f32.mxu0 0.0
    %898 = vmatmul.mubr.f32.gmra.mxu0 %v764
    %v899 = vpop.f32.mrf.mxu0
    %v900 = vadd.f32 0.0, %v899
    %v901 = vpop.f32.mrf.mxu0
    %902 = vmatprep.mubr.f32.mxu0 0.0
    %903 = vmatmul.mubr.f32.gmra.mxu0 %v767
    %v904 = vpop.f32.mrf.mxu0
    %v905 = vadd.f32 0.0, %v904
    %v906 = vpop.f32.mrf.mxu0
    %907 = vmatprep.mubr.f32.mxu0 0.0
    %908 = vmatmul.mubr.f32.gmra.mxu0 %v770
    %v909 = vpop.f32.mrf.mxu0
    %v910 = vadd.f32 0.0, %v909
    %v911 = vpop.f32.mrf.mxu0
    %912 = vmatprep.mubr.f32.mxu0 0.0
    %913 = vmatmul.mubr.f32.gmra.mxu0 %v773
    %v914 = vpop.f32.mrf.mxu0
    %v915 = vadd.f32 0.0, %v914
    %v916 = vpop.f32.mrf.mxu0
    %917 = vmatprep.mubr.f32.mxu0 0.0
    %918 = vmatmul.mubr.f32.gmra.mxu0 %v776
    %v919 = vpop.f32.mrf.mxu0
    %v920 = vadd.f32 0.0, %v919
    %v921 = vpop.f32.mrf.mxu0
    %922 = vdwg.mxu0
    %v924 = vsel %vm48, %v354, 0
    %v927 = vsel %vm48, %v355, 0
    %v930 = vsel %vm48, %v356, 0
    %v933 = vsel %vm48, %v357, 0
    %v936 = vsel %vm48, %v358, 0
    %v939 = vsel %vm48, %v359, 0
    %v942 = vsel %vm48, %v360, 0
    %v945 = vsel %vm48, %v361, 0
    %v948 = vsel %vm48, %v362, 0
    %v951 = vsel %vm48, %v363, 0
    %v954 = vsel %vm48, %v364, 0
    %v957 = vsel %vm48, %v365, 0
    %v960 = vsel %vm48, %v366, 0
    %v963 = vsel %vm48, %v367, 0
    %v966 = vsel %vm48, %v368, 0
    %v969 = vsel %vm48, %v369, 0
    %971 = vmatprep.subr.mxu0 0.0
    %972 = vmatpush1.msra.mxu0 0.0
    %973 = vmatprep.subr.mxu0 0.0
    %974 = vmatpush1.msra.mxu0 0.0
    %975 = vmatprep.subr.mxu0 0.0
    %976 = vmatpush1.msra.mxu0 0.0
    %977 = vmatprep.subr.mxu0 0.0
    %978 = vmatpush1.msra.mxu0 0.0
    %979 = vmatprep.subr.mxu0 0.0
    %980 = vmatpush1.msra.mxu0 0.0
    %981 = vmatprep.subr.mxu0 0.0
    %982 = vmatpush1.msra.mxu0 0.0
    %983 = vmatprep.subr.mxu0 0.0
    %984 = vmatpush1.msra.mxu0 0.0
    %985 = vmatprep.subr.mxu0 0.0
    %986 = vmatpush1.msra.mxu0 0.0
    %987 = vmatprep.subr.mxu0 0.0
    %988 = vmatpush1.msra.mxu0 0.0
    %989 = vmatprep.subr.mxu0 0.0
    %990 = vmatpush1.msra.mxu0 0.0
    %991 = vmatprep.subr.mxu0 0.0
    %992 = vmatpush1.msra.mxu0 0.0
    %993 = vmatprep.subr.mxu0 0.0
    %994 = vmatpush1.msra.mxu0 0.0
    %995 = vmatprep.subr.mxu0 0.0
    %996 = vmatpush1.msra.mxu0 %v373
    %997 = vmatprep.subr.mxu0 0.0
    %998 = vmatpush1.msra.mxu0 %v372
    %999 = vmatprep.subr.mxu0 0.0
    %1000 = vmatpush1.msra.mxu0 %v371
    %1001 = vmatprep.subr.mxu0 0.0
    %1002 = vmatpush1.msra.mxu0 %v370
    %1003 = vmatprep.subr.mxu0 0.0
    %1004 = vmatpush2.msra.mxu0 0.0
    %1005 = vmatprep.subr.mxu0 0.0
    %1006 = vmatpush2.msra.mxu0 0.0
    %1007 = vmatprep.subr.mxu0 0.0
    %1008 = vmatpush2.msra.mxu0 0.0
    %1009 = vmatprep.subr.mxu0 0.0
    %1010 = vmatpush2.msra.mxu0 0.0
    %1011 = vmatprep.subr.mxu0 0.0
    %1012 = vmatpush2.msra.mxu0 0.0
    %1013 = vmatprep.subr.mxu0 0.0
    %1014 = vmatpush2.msra.mxu0 0.0
    %1015 = vmatprep.subr.mxu0 0.0
    %1016 = vmatpush2.msra.mxu0 0.0
    %1017 = vmatprep.subr.mxu0 0.0
    %1018 = vmatpush2.msra.mxu0 0.0
    %1019 = vmatprep.subr.mxu0 0.0
    %1020 = vmatpush2.msra.mxu0 0.0
    %1021 = vmatprep.subr.mxu0 0.0
    %1022 = vmatpush2.msra.mxu0 0.0
    %1023 = vmatprep.subr.mxu0 0.0
    %1024 = vmatpush2.msra.mxu0 0.0
    %1025 = vmatprep.subr.mxu0 0.0
    %1026 = vmatpush2.msra.mxu0 0.0
    %1027 = vmatprep.subr.mxu0 0.0
    %1028 = vmatpush2.msra.mxu0 0.0
    %1029 = vmatprep.subr.mxu0 0.0
    %1030 = vmatpush2.msra.mxu0 0.0
    %1031 = vmatprep.subr.mxu0 0.0
    %1032 = vmatpush2.msra.mxu0 0.0
    %1033 = vmatprep.subr.mxu0 0.0
    %1034 = vmatpush2.msra.mxu0 0.0
    %1035 = vmatprep.mubr.f32.mxu0 0.0
    %1036 = vmatmul.mubr.f32.gmra.mxu0 %v924
    %v1037 = vpop.f32.mrf.mxu0
    %v1038 = vadd.f32 %v845, %v1037
    %v1039 = vpop.f32.mrf.mxu0
    %1040 = vmatprep.mubr.f32.mxu0 0.0
    %1041 = vmatmul.mubr.f32.gmra.mxu0 %v927
    %v1042 = vpop.f32.mrf.mxu0
    %v1043 = vadd.f32 %v850, %v1042
    %v1044 = vpop.f32.mrf.mxu0
    %1045 = vmatprep.mubr.f32.mxu0 0.0
    %1046 = vmatmul.mubr.f32.gmra.mxu0 %v930
    %v1047 = vpop.f32.mrf.mxu0
    %v1048 = vadd.f32 %v855, %v1047
    %v1049 = vpop.f32.mrf.mxu0
    %1050 = vmatprep.mubr.f32.mxu0 0.0
    %1051 = vmatmul.mubr.f32.gmra.mxu0 %v933
    %v1052 = vpop.f32.mrf.mxu0
    %v1053 = vadd.f32 %v860, %v1052
    %v1054 = vpop.f32.mrf.mxu0
    %1055 = vmatprep.mubr.f32.mxu0 0.0
    %1056 = vmatmul.mubr.f32.gmra.mxu0 %v936
    %v1057 = vpop.f32.mrf.mxu0
    %v1058 = vadd.f32 %v865, %v1057
    %v1059 = vpop.f32.mrf.mxu0
    %1060 = vmatprep.mubr.f32.mxu0 0.0
    %1061 = vmatmul.mubr.f32.gmra.mxu0 %v939
    %v1062 = vpop.f32.mrf.mxu0
    %v1063 = vadd.f32 %v870, %v1062
    %v1064 = vpop.f32.mrf.mxu0
    %1065 = vmatprep.mubr.f32.mxu0 0.0
    %1066 = vmatmul.mubr.f32.gmra.mxu0 %v942
    %v1067 = vpop.f32.mrf.mxu0
    %v1068 = vadd.f32 %v875, %v1067
    %v1069 = vpop.f32.mrf.mxu0
    %1070 = vmatprep.mubr.f32.mxu0 0.0
    %1071 = vmatmul.mubr.f32.gmra.mxu0 %v945
    %v1072 = vpop.f32.mrf.mxu0
    %v1073 = vadd.f32 %v880, %v1072
    %v1074 = vpop.f32.mrf.mxu0
    %1075 = vmatprep.mubr.f32.mxu0 0.0
    %1076 = vmatmul.mubr.f32.gmra.mxu0 %v948
    %v1077 = vpop.f32.mrf.mxu0
    %v1078 = vadd.f32 %v885, %v1077
    %v1079 = vpop.f32.mrf.mxu0
    %1080 = vmatprep.mubr.f32.mxu0 0.0
    %1081 = vmatmul.mubr.f32.gmra.mxu0 %v951
    %v1082 = vpop.f32.mrf.mxu0
    %v1083 = vadd.f32 %v890, %v1082
    %v1084 = vpop.f32.mrf.mxu0
    %1085 = vmatprep.mubr.f32.mxu0 0.0
    %1086 = vmatmul.mubr.f32.gmra.mxu0 %v954
    %v1087 = vpop.f32.mrf.mxu0
    %v1088 = vadd.f32 %v895, %v1087
    %v1089 = vpop.f32.mrf.mxu0
    %1090 = vmatprep.mubr.f32.mxu0 0.0
    %1091 = vmatmul.mubr.f32.gmra.mxu0 %v957
    %v1092 = vpop.f32.mrf.mxu0
    %v1093 = vadd.f32 %v900, %v1092
    %v1094 = vpop.f32.mrf.mxu0
    %1095 = vmatprep.mubr.f32.mxu0 0.0
    %1096 = vmatmul.mubr.f32.gmra.mxu0 %v960
    %v1097 = vpop.f32.mrf.mxu0
    %v1098 = vadd.f32 %v905, %v1097
    %v1099 = vpop.f32.mrf.mxu0
    %1100 = vmatprep.mubr.f32.mxu0 0.0
    %1101 = vmatmul.mubr.f32.gmra.mxu0 %v963
    %v1102 = vpop.f32.mrf.mxu0
    %v1103 = vadd.f32 %v910, %v1102
    %v1104 = vpop.f32.mrf.mxu0
    %1105 = vmatprep.mubr.f32.mxu0 0.0
    %1106 = vmatmul.mubr.f32.gmra.mxu0 %v966
    %v1107 = vpop.f32.mrf.mxu0
    %v1108 = vadd.f32 %v915, %v1107
    %v1109 = vpop.f32.mrf.mxu0
    %1110 = vmatprep.mubr.f32.mxu0 0.0
    %1111 = vmatmul.mubr.f32.gmra.mxu0 %v969
    %v1112 = vpop.f32.mrf.mxu0
    %v1113 = vadd.f32 %v920, %v1112
    %v1114 = vpop.f32.mrf.mxu0
    %1115 = vdwg.mxu0
    %s1116 = scalar_lea.vmem %s0, 256
    %v1117 = vld [vmem:[%s1116] sm:$0xff]
    %v1118 = vld [vmem:[%s1116 + $0x8] sm:$0xff]
    %v1119 = vld [vmem:[%s1116 + $0x10] sm:$0xff]
    %v1120 = vld [vmem:[%s1116 + $0x18] sm:$0xff]
    %v1121 = vld [vmem:[%s1116 + $0x20] sm:$0xff]
    %v1122 = vld [vmem:[%s1116 + $0x28] sm:$0xff]
    %v1123 = vld [vmem:[%s1116 + $0x30] sm:$0xff]
    %v1124 = vld [vmem:[%s1116 + $0x38] sm:$0xff]
    %v1125 = vld [vmem:[%s1116 + $0x40] sm:$0xff]
    %v1126 = vld [vmem:[%s1116 + $0x48] sm:$0xff]
    %v1127 = vld [vmem:[%s1116 + $0x50] sm:$0xff]
    %v1128 = vld [vmem:[%s1116 + $0x58] sm:$0xff]
    %v1129 = vld [vmem:[%s1116 + $0x60] sm:$0xff]
    %v1130 = vld [vmem:[%s1116 + $0x68] sm:$0xff]
    %v1131 = vld [vmem:[%s1116 + $0x70] sm:$0xff]
    %v1132 = vld [vmem:[%s1116 + $0x78] sm:$0xff]
    %s1133 = scalar_lea.vmem %s1, 64
    %v1134 = vld [vmem:[%s1133] sm:$0xff]
    %v1135 = vld [vmem:[%s1133 + $0x8] sm:$0xff]
    %v1136 = vld [vmem:[%s1133 + $0x10] sm:$0xff]
    %v1137 = vld [vmem:[%s1133 + $0x18] sm:$0xff]
    %s1138 = scalar_lea.vmem %s2, 2
    %v1139 = vld [vmem:[%s1138] sm:$0x1]
    %v1141 = vlaneseq
    %v1142 = vshrl.u32 %v1141, 7
    %v1143 = vsub.s32 0, %v1142
    %v1144 = vrot.slane %v1139, %v1143
    %v1147 = vsel %vm48, %v1117, 0
    %v1150 = vsel %vm48, %v1118, 0
    %v1153 = vsel %vm48, %v1119, 0
    %v1156 = vsel %vm48, %v1120, 0
    %v1159 = vsel %vm48, %v1121, 0
    %v1162 = vsel %vm48, %v1122, 0
    %v1165 = vsel %vm48, %v1123, 0
    %v1168 = vsel %vm48, %v1124, 0
    %v1171 = vsel %vm48, %v1125, 0
    %v1174 = vsel %vm48, %v1126, 0
    %v1177 = vsel %vm48, %v1127, 0
    %v1180 = vsel %vm48, %v1128, 0
    %v1183 = vsel %vm48, %v1129, 0
    %v1186 = vsel %vm48, %v1130, 0
    %v1189 = vsel %vm48, %v1131, 0
    %v1192 = vsel %vm48, %v1132, 0
    %1194 = vmatprep.subr.mxu0 0.0
    %1195 = vmatpush1.msra.mxu0 0.0
    %1196 = vmatprep.subr.mxu0 0.0
    %1197 = vmatpush1.msra.mxu0 0.0
    %1198 = vmatprep.subr.mxu0 0.0
    %1199 = vmatpush1.msra.mxu0 0.0
    %1200 = vmatprep.subr.mxu0 0.0
    %1201 = vmatpush1.msra.mxu0 0.0
    %1202 = vmatprep.subr.mxu0 0.0
    %1203 = vmatpush1.msra.mxu0 0.0
    %1204 = vmatprep.subr.mxu0 0.0
    %1205 = vmatpush1.msra.mxu0 0.0
    %1206 = vmatprep.subr.mxu0 0.0
    %1207 = vmatpush1.msra.mxu0 0.0
    %1208 = vmatprep.subr.mxu0 0.0
    %1209 = vmatpush1.msra.mxu0 0.0
    %1210 = vmatprep.subr.mxu0 0.0
    %1211 = vmatpush1.msra.mxu0 0.0
    %1212 = vmatprep.subr.mxu0 0.0
    %1213 = vmatpush1.msra.mxu0 0.0
    %1214 = vmatprep.subr.mxu0 0.0
    %1215 = vmatpush1.msra.mxu0 0.0
    %1216 = vmatprep.subr.mxu0 0.0
    %1217 = vmatpush1.msra.mxu0 0.0
    %1218 = vmatprep.subr.mxu0 0.0
    %1219 = vmatpush1.msra.mxu0 %v1137
    %1220 = vmatprep.subr.mxu0 0.0
    %1221 = vmatpush1.msra.mxu0 %v1136
    %1222 = vmatprep.subr.mxu0 0.0
    %1223 = vmatpush1.msra.mxu0 %v1135
    %1224 = vmatprep.subr.mxu0 0.0
    %1225 = vmatpush1.msra.mxu0 %v1134
    %1226 = vmatprep.subr.mxu0 0.0
    %1227 = vmatpush2.msra.mxu0 0.0
    %1228 = vmatprep.subr.mxu0 0.0
    %1229 = vmatpush2.msra.mxu0 0.0
    %1230 = vmatprep.subr.mxu0 0.0
    %1231 = vmatpush2.msra.mxu0 0.0
    %1232 = vmatprep.subr.mxu0 0.0
    %1233 = vmatpush2.msra.mxu0 0.0
    %1234 = vmatprep.subr.mxu0 0.0
    %1235 = vmatpush2.msra.mxu0 0.0
    %1236 = vmatprep.subr.mxu0 0.0
    %1237 = vmatpush2.msra.mxu0 0.0
    %1238 = vmatprep.subr.mxu0 0.0
    %1239 = vmatpush2.msra.mxu0 0.0
    %1240 = vmatprep.subr.mxu0 0.0
    %1241 = vmatpush2.msra.mxu0 0.0
    %1242 = vmatprep.subr.mxu0 0.0
    %1243 = vmatpush2.msra.mxu0 0.0
    %1244 = vmatprep.subr.mxu0 0.0
    %1245 = vmatpush2.msra.mxu0 0.0
    %1246 = vmatprep.subr.mxu0 0.0
    %1247 = vmatpush2.msra.mxu0 0.0
    %1248 = vmatprep.subr.mxu0 0.0
    %1249 = vmatpush2.msra.mxu0 0.0
    %1250 = vmatprep.subr.mxu0 0.0
    %1251 = vmatpush2.msra.mxu0 0.0
    %1252 = vmatprep.subr.mxu0 0.0
    %1253 = vmatpush2.msra.mxu0 0.0
    %1254 = vmatprep.subr.mxu0 0.0
    %1255 = vmatpush2.msra.mxu0 0.0
    %1256 = vmatprep.subr.mxu0 0.0
    %1257 = vmatpush2.msra.mxu0 0.0
    %1258 = vmatprep.mubr.f32.mxu0 0.0
    %1259 = vmatmul.mubr.f32.gmra.mxu0 %v1147
    %v1260 = vpop.f32.mrf.mxu0
    %v1261 = vadd.f32 %v1144, %v1260
    %v1262 = vpop.f32.mrf.mxu0
    %1263 = vmatprep.mubr.f32.mxu0 0.0
    %1264 = vmatmul.mubr.f32.gmra.mxu0 %v1150
    %v1265 = vpop.f32.mrf.mxu0
    %v1266 = vadd.f32 %v1144, %v1265
    %v1267 = vpop.f32.mrf.mxu0
    %1268 = vmatprep.mubr.f32.mxu0 0.0
    %1269 = vmatmul.mubr.f32.gmra.mxu0 %v1153
    %v1270 = vpop.f32.mrf.mxu0
    %v1271 = vadd.f32 %v1144, %v1270
    %v1272 = vpop.f32.mrf.mxu0
    %1273 = vmatprep.mubr.f32.mxu0 0.0
    %1274 = vmatmul.mubr.f32.gmra.mxu0 %v1156
    %v1275 = vpop.f32.mrf.mxu0
    %v1276 = vadd.f32 %v1144, %v1275
    %v1277 = vpop.f32.mrf.mxu0
    %1278 = vmatprep.mubr.f32.mxu0 0.0
    %1279 = vmatmul.mubr.f32.gmra.mxu0 %v1159
    %v1280 = vpop.f32.mrf.mxu0
    %v1281 = vadd.f32 %v1144, %v1280
    %v1282 = vpop.f32.mrf.mxu0
    %1283 = vmatprep.mubr.f32.mxu0 0.0
    %1284 = vmatmul.mubr.f32.gmra.mxu0 %v1162
    %v1285 = vpop.f32.mrf.mxu0
    %v1286 = vadd.f32 %v1144, %v1285
    %v1287 = vpop.f32.mrf.mxu0
    %1288 = vmatprep.mubr.f32.mxu0 0.0
    %1289 = vmatmul.mubr.f32.gmra.mxu0 %v1165
    %v1290 = vpop.f32.mrf.mxu0
    %v1291 = vadd.f32 %v1144, %v1290
    %v1292 = vpop.f32.mrf.mxu0
    %1293 = vmatprep.mubr.f32.mxu0 0.0
    %1294 = vmatmul.mubr.f32.gmra.mxu0 %v1168
    %v1295 = vpop.f32.mrf.mxu0
    %v1296 = vadd.f32 %v1144, %v1295
    %v1297 = vpop.f32.mrf.mxu0
    %1298 = vmatprep.mubr.f32.mxu0 0.0
    %1299 = vmatmul.mubr.f32.gmra.mxu0 %v1171
    %v1300 = vpop.f32.mrf.mxu0
    %v1301 = vadd.f32 %v1144, %v1300
    %v1302 = vpop.f32.mrf.mxu0
    %1303 = vmatprep.mubr.f32.mxu0 0.0
    %1304 = vmatmul.mubr.f32.gmra.mxu0 %v1174
    %v1305 = vpop.f32.mrf.mxu0
    %v1306 = vadd.f32 %v1144, %v1305
    %v1307 = vpop.f32.mrf.mxu0
    %1308 = vmatprep.mubr.f32.mxu0 0.0
    %1309 = vmatmul.mubr.f32.gmra.mxu0 %v1177
    %v1310 = vpop.f32.mrf.mxu0
    %v1311 = vadd.f32 %v1144, %v1310
    %v1312 = vpop.f32.mrf.mxu0
    %1313 = vmatprep.mubr.f32.mxu0 0.0
    %1314 = vmatmul.mubr.f32.gmra.mxu0 %v1180
    %v1315 = vpop.f32.mrf.mxu0
    %v1316 = vadd.f32 %v1144, %v1315
    %v1317 = vpop.f32.mrf.mxu0
    %1318 = vmatprep.mubr.f32.mxu0 0.0
    %1319 = vmatmul.mubr.f32.gmra.mxu0 %v1183
    %v1320 = vpop.f32.mrf.mxu0
    %v1321 = vadd.f32 %v1144, %v1320
    %v1322 = vpop.f32.mrf.mxu0
    %1323 = vmatprep.mubr.f32.mxu0 0.0
    %1324 = vmatmul.mubr.f32.gmra.mxu0 %v1186
    %v1325 = vpop.f32.mrf.mxu0
    %v1326 = vadd.f32 %v1144, %v1325
    %v1327 = vpop.f32.mrf.mxu0
    %1328 = vmatprep.mubr.f32.mxu0 0.0
    %1329 = vmatmul.mubr.f32.gmra.mxu0 %v1189
    %v1330 = vpop.f32.mrf.mxu0
    %v1331 = vadd.f32 %v1144, %v1330
    %v1332 = vpop.f32.mrf.mxu0
    %1333 = vmatprep.mubr.f32.mxu0 0.0
    %1334 = vmatmul.mubr.f32.gmra.mxu0 %v1192
    %v1335 = vpop.f32.mrf.mxu0
    %v1336 = vadd.f32 %v1144, %v1335
    %v1337 = vpop.f32.mrf.mxu0
    %1338 = vdwg.mxu0
    %v1339 = vmul.f32 %v1261, %v1261
    %v1340 = vmul.f32 %v1266, %v1266
    %v1341 = vmul.f32 %v1271, %v1271
    %v1342 = vmul.f32 %v1276, %v1276
    %v1343 = vmul.f32 %v1281, %v1281
    %v1344 = vmul.f32 %v1286, %v1286
    %v1345 = vmul.f32 %v1291, %v1291
    %v1346 = vmul.f32 %v1296, %v1296
    %v1347 = vmul.f32 %v1301, %v1301
    %v1348 = vmul.f32 %v1306, %v1306
    %v1349 = vmul.f32 %v1311, %v1311
    %v1350 = vmul.f32 %v1316, %v1316
    %v1351 = vmul.f32 %v1321, %v1321
    %v1352 = vmul.f32 %v1326, %v1326
    %v1353 = vmul.f32 %v1331, %v1331
    %v1354 = vmul.f32 %v1336, %v1336
    %v1355 = vsel %vm48, %v1339, 0.0
    %1356 = vadd.xlane.f32.xlu0 %v1355
    %v1357 = vpop.xlane.xlu0 %1356
    %v1358 = vsel %vm48, %v1340, 0.0
    %1359 = vadd.xlane.f32.xlu0 %v1358
    %v1360 = vpop.xlane.xlu0 %1359
    %v1361 = vsel %vm48, %v1341, 0.0
    %1362 = vadd.xlane.f32.xlu0 %v1361
    %v1363 = vpop.xlane.xlu0 %1362
    %v1364 = vsel %vm48, %v1342, 0.0
    %1365 = vadd.xlane.f32.xlu0 %v1364
    %v1366 = vpop.xlane.xlu0 %1365
    %v1367 = vsel %vm48, %v1343, 0.0
    %1368 = vadd.xlane.f32.xlu0 %v1367
    %v1369 = vpop.xlane.xlu0 %1368
    %v1370 = vsel %vm48, %v1344, 0.0
    %1371 = vadd.xlane.f32.xlu0 %v1370
    %v1372 = vpop.xlane.xlu0 %1371
    %v1373 = vsel %vm48, %v1345, 0.0
    %1374 = vadd.xlane.f32.xlu0 %v1373
    %v1375 = vpop.xlane.xlu0 %1374
    %v1376 = vsel %vm48, %v1346, 0.0
    %1377 = vadd.xlane.f32.xlu0 %v1376
    %v1378 = vpop.xlane.xlu0 %1377
    %v1379 = vsel %vm48, %v1347, 0.0
    %1380 = vadd.xlane.f32.xlu0 %v1379
    %v1381 = vpop.xlane.xlu0 %1380
    %v1382 = vsel %vm48, %v1348, 0.0
    %1383 = vadd.xlane.f32.xlu0 %v1382
    %v1384 = vpop.xlane.xlu0 %1383
    %v1385 = vsel %vm48, %v1349, 0.0
    %1386 = vadd.xlane.f32.xlu0 %v1385
    %v1387 = vpop.xlane.xlu0 %1386
    %v1388 = vsel %vm48, %v1350, 0.0
    %1389 = vadd.xlane.f32.xlu0 %v1388
    %v1390 = vpop.xlane.xlu0 %1389
    %v1391 = vsel %vm48, %v1351, 0.0
    %1392 = vadd.xlane.f32.xlu0 %v1391
    %v1393 = vpop.xlane.xlu0 %1392
    %v1394 = vsel %vm48, %v1352, 0.0
    %1395 = vadd.xlane.f32.xlu0 %v1394
    %v1396 = vpop.xlane.xlu0 %1395
    %v1397 = vsel %vm48, %v1353, 0.0
    %1398 = vadd.xlane.f32.xlu0 %v1397
    %v1399 = vpop.xlane.xlu0 %1398
    %v1400 = vsel %vm48, %v1354, 0.0
    %1401 = vadd.xlane.f32.xlu0 %v1400
    %v1402 = vpop.xlane.xlu0 %1401
    %v1403 = vmax.f32 %v1357, 1e-24
    %v1404 = vmax.f32 %v1360, 1e-24
    %v1405 = vmax.f32 %v1363, 1e-24
    %v1406 = vmax.f32 %v1366, 1e-24
    %v1407 = vmax.f32 %v1369, 1e-24
    %v1408 = vmax.f32 %v1372, 1e-24
    %v1409 = vmax.f32 %v1375, 1e-24
    %v1410 = vmax.f32 %v1378, 1e-24
    %v1411 = vmax.f32 %v1381, 1e-24
    %v1412 = vmax.f32 %v1384, 1e-24
    %v1413 = vmax.f32 %v1387, 1e-24
    %v1414 = vmax.f32 %v1390, 1e-24
    %v1415 = vmax.f32 %v1393, 1e-24
    %v1416 = vmax.f32 %v1396, 1e-24
    %v1417 = vmax.f32 %v1399, 1e-24
    %v1418 = vmax.f32 %v1402, 1e-24
    %v1419 = vrsqrt.pop %v1403
    %v1420 = vrsqrt.pop %v1404
    %v1421 = vrsqrt.pop %v1405
    %v1422 = vrsqrt.pop %v1406
    %v1423 = vrsqrt.pop %v1407
    %v1424 = vrsqrt.pop %v1408
    %v1425 = vrsqrt.pop %v1409
    %v1426 = vrsqrt.pop %v1410
    %v1427 = vrsqrt.pop %v1411
    %v1428 = vrsqrt.pop %v1412
    %v1429 = vrsqrt.pop %v1413
    %v1430 = vrsqrt.pop %v1414
    %v1431 = vrsqrt.pop %v1415
    %v1432 = vrsqrt.pop %v1416
    %v1433 = vrsqrt.pop %v1417
    %v1434 = vrsqrt.pop %v1418
    %v1435 = vmul.f32 %v1261, %v1419
    %v1436 = vmul.f32 %v1266, %v1420
    %v1437 = vmul.f32 %v1271, %v1421
    %v1438 = vmul.f32 %v1276, %v1422
    %v1439 = vmul.f32 %v1281, %v1423
    %v1440 = vmul.f32 %v1286, %v1424
    %v1441 = vmul.f32 %v1291, %v1425
    %v1442 = vmul.f32 %v1296, %v1426
    %v1443 = vmul.f32 %v1301, %v1427
    %v1444 = vmul.f32 %v1306, %v1428
    %v1445 = vmul.f32 %v1311, %v1429
    %v1446 = vmul.f32 %v1316, %v1430
    %v1447 = vmul.f32 %v1321, %v1431
    %v1448 = vmul.f32 %v1326, %v1432
    %v1449 = vmul.f32 %v1331, %v1433
    %v1450 = vmul.f32 %v1336, %v1434
    %v1451 = vmax.f32 %v1435, 0.0
    %v1452 = vmax.f32 %v1436, 0.0
    %v1453 = vmax.f32 %v1437, 0.0
    %v1454 = vmax.f32 %v1438, 0.0
    %v1455 = vmax.f32 %v1439, 0.0
    %v1456 = vmax.f32 %v1440, 0.0
    %v1457 = vmax.f32 %v1441, 0.0
    %v1458 = vmax.f32 %v1442, 0.0
    %v1459 = vmax.f32 %v1443, 0.0
    %v1460 = vmax.f32 %v1444, 0.0
    %v1461 = vmax.f32 %v1445, 0.0
    %v1462 = vmax.f32 %v1446, 0.0
    %v1463 = vmax.f32 %v1447, 0.0
    %v1464 = vmax.f32 %v1448, 0.0
    %v1465 = vmax.f32 %v1449, 0.0
    %v1466 = vmax.f32 %v1450, 0.0
    %s1467 = scalar_lea.vmem %s3, 64
    %v1468 = vld [vmem:[%s1467] sm:$0xff]
    %v1469 = vld [vmem:[%s1467 + $0x8] sm:$0xff]
    %v1470 = vld [vmem:[%s1467 + $0x10] sm:$0xff]
    %v1471 = vld [vmem:[%s1467 + $0x18] sm:$0xff]
    %v1473 = vsel %vm48, %v1451, 0
    %v1476 = vsel %vm48, %v1452, 0
    %v1479 = vsel %vm48, %v1453, 0
    %v1482 = vsel %vm48, %v1454, 0
    %v1485 = vsel %vm48, %v1455, 0
    %v1488 = vsel %vm48, %v1456, 0
    %v1491 = vsel %vm48, %v1457, 0
    %v1494 = vsel %vm48, %v1458, 0
    %v1497 = vsel %vm48, %v1459, 0
    %v1500 = vsel %vm48, %v1460, 0
    %v1503 = vsel %vm48, %v1461, 0
    %v1506 = vsel %vm48, %v1462, 0
    %v1509 = vsel %vm48, %v1463, 0
    %v1512 = vsel %vm48, %v1464, 0
    %v1515 = vsel %vm48, %v1465, 0
    %v1518 = vsel %vm48, %v1466, 0
    %1520 = vmatprep.subr.mxu0 0.0
    %1521 = vmatpush1.msra.mxu0 0.0
    %1522 = vmatprep.subr.mxu0 0.0
    %1523 = vmatpush1.msra.mxu0 0.0
    %1524 = vmatprep.subr.mxu0 0.0
    %1525 = vmatpush1.msra.mxu0 0.0
    %1526 = vmatprep.subr.mxu0 0.0
    %1527 = vmatpush1.msra.mxu0 0.0
    %1528 = vmatprep.subr.mxu0 0.0
    %1529 = vmatpush1.msra.mxu0 0.0
    %1530 = vmatprep.subr.mxu0 0.0
    %1531 = vmatpush1.msra.mxu0 0.0
    %1532 = vmatprep.subr.mxu0 0.0
    %1533 = vmatpush1.msra.mxu0 0.0
    %1534 = vmatprep.subr.mxu0 0.0
    %1535 = vmatpush1.msra.mxu0 0.0
    %1536 = vmatprep.subr.mxu0 0.0
    %1537 = vmatpush1.msra.mxu0 0.0
    %1538 = vmatprep.subr.mxu0 0.0
    %1539 = vmatpush1.msra.mxu0 0.0
    %1540 = vmatprep.subr.mxu0 0.0
    %1541 = vmatpush1.msra.mxu0 0.0
    %1542 = vmatprep.subr.mxu0 0.0
    %1543 = vmatpush1.msra.mxu0 0.0
    %1544 = vmatprep.subr.mxu0 0.0
    %1545 = vmatpush1.msra.mxu0 %v1471
    %1546 = vmatprep.subr.mxu0 0.0
    %1547 = vmatpush1.msra.mxu0 %v1470
    %1548 = vmatprep.subr.mxu0 0.0
    %1549 = vmatpush1.msra.mxu0 %v1469
    %1550 = vmatprep.subr.mxu0 0.0
    %1551 = vmatpush1.msra.mxu0 %v1468
    %1552 = vmatprep.subr.mxu0 0.0
    %1553 = vmatpush2.msra.mxu0 0.0
    %1554 = vmatprep.subr.mxu0 0.0
    %1555 = vmatpush2.msra.mxu0 0.0
    %1556 = vmatprep.subr.mxu0 0.0
    %1557 = vmatpush2.msra.mxu0 0.0
    %1558 = vmatprep.subr.mxu0 0.0
    %1559 = vmatpush2.msra.mxu0 0.0
    %1560 = vmatprep.subr.mxu0 0.0
    %1561 = vmatpush2.msra.mxu0 0.0
    %1562 = vmatprep.subr.mxu0 0.0
    %1563 = vmatpush2.msra.mxu0 0.0
    %1564 = vmatprep.subr.mxu0 0.0
    %1565 = vmatpush2.msra.mxu0 0.0
    %1566 = vmatprep.subr.mxu0 0.0
    %1567 = vmatpush2.msra.mxu0 0.0
    %1568 = vmatprep.subr.mxu0 0.0
    %1569 = vmatpush2.msra.mxu0 0.0
    %1570 = vmatprep.subr.mxu0 0.0
    %1571 = vmatpush2.msra.mxu0 0.0
    %1572 = vmatprep.subr.mxu0 0.0
    %1573 = vmatpush2.msra.mxu0 0.0
    %1574 = vmatprep.subr.mxu0 0.0
    %1575 = vmatpush2.msra.mxu0 0.0
    %1576 = vmatprep.subr.mxu0 0.0
    %1577 = vmatpush2.msra.mxu0 0.0
    %1578 = vmatprep.subr.mxu0 0.0
    %1579 = vmatpush2.msra.mxu0 0.0
    %1580 = vmatprep.subr.mxu0 0.0
    %1581 = vmatpush2.msra.mxu0 0.0
    %1582 = vmatprep.subr.mxu0 0.0
    %1583 = vmatpush2.msra.mxu0 0.0
    %1584 = vmatprep.mubr.f32.mxu0 0.0
    %1585 = vmatmul.mubr.f32.gmra.mxu0 %v1473
    %v1586 = vpop.f32.mrf.mxu0
    %v1587 = vadd.f32 0.0, %v1586
    %v1588 = vpop.f32.mrf.mxu0
    %1589 = vmatprep.mubr.f32.mxu0 0.0
    %1590 = vmatmul.mubr.f32.gmra.mxu0 %v1476
    %v1591 = vpop.f32.mrf.mxu0
    %v1592 = vadd.f32 0.0, %v1591
    %v1593 = vpop.f32.mrf.mxu0
    %1594 = vmatprep.mubr.f32.mxu0 0.0
    %1595 = vmatmul.mubr.f32.gmra.mxu0 %v1479
    %v1596 = vpop.f32.mrf.mxu0
    %v1597 = vadd.f32 0.0, %v1596
    %v1598 = vpop.f32.mrf.mxu0
    %1599 = vmatprep.mubr.f32.mxu0 0.0
    %1600 = vmatmul.mubr.f32.gmra.mxu0 %v1482
    %v1601 = vpop.f32.mrf.mxu0
    %v1602 = vadd.f32 0.0, %v1601
    %v1603 = vpop.f32.mrf.mxu0
    %1604 = vmatprep.mubr.f32.mxu0 0.0
    %1605 = vmatmul.mubr.f32.gmra.mxu0 %v1485
    %v1606 = vpop.f32.mrf.mxu0
    %v1607 = vadd.f32 0.0, %v1606
    %v1608 = vpop.f32.mrf.mxu0
    %1609 = vmatprep.mubr.f32.mxu0 0.0
    %1610 = vmatmul.mubr.f32.gmra.mxu0 %v1488
    %v1611 = vpop.f32.mrf.mxu0
    %v1612 = vadd.f32 0.0, %v1611
    %v1613 = vpop.f32.mrf.mxu0
    %1614 = vmatprep.mubr.f32.mxu0 0.0
    %1615 = vmatmul.mubr.f32.gmra.mxu0 %v1491
    %v1616 = vpop.f32.mrf.mxu0
    %v1617 = vadd.f32 0.0, %v1616
    %v1618 = vpop.f32.mrf.mxu0
    %1619 = vmatprep.mubr.f32.mxu0 0.0
    %1620 = vmatmul.mubr.f32.gmra.mxu0 %v1494
    %v1621 = vpop.f32.mrf.mxu0
    %v1622 = vadd.f32 0.0, %v1621
    %v1623 = vpop.f32.mrf.mxu0
    %1624 = vmatprep.mubr.f32.mxu0 0.0
    %1625 = vmatmul.mubr.f32.gmra.mxu0 %v1497
    %v1626 = vpop.f32.mrf.mxu0
    %v1627 = vadd.f32 0.0, %v1626
    %v1628 = vpop.f32.mrf.mxu0
    %1629 = vmatprep.mubr.f32.mxu0 0.0
    %1630 = vmatmul.mubr.f32.gmra.mxu0 %v1500
    %v1631 = vpop.f32.mrf.mxu0
    %v1632 = vadd.f32 0.0, %v1631
    %v1633 = vpop.f32.mrf.mxu0
    %1634 = vmatprep.mubr.f32.mxu0 0.0
    %1635 = vmatmul.mubr.f32.gmra.mxu0 %v1503
    %v1636 = vpop.f32.mrf.mxu0
    %v1637 = vadd.f32 0.0, %v1636
    %v1638 = vpop.f32.mrf.mxu0
    %1639 = vmatprep.mubr.f32.mxu0 0.0
    %1640 = vmatmul.mubr.f32.gmra.mxu0 %v1506
    %v1641 = vpop.f32.mrf.mxu0
    %v1642 = vadd.f32 0.0, %v1641
    %v1643 = vpop.f32.mrf.mxu0
    %1644 = vmatprep.mubr.f32.mxu0 0.0
    %1645 = vmatmul.mubr.f32.gmra.mxu0 %v1509
    %v1646 = vpop.f32.mrf.mxu0
    %v1647 = vadd.f32 0.0, %v1646
    %v1648 = vpop.f32.mrf.mxu0
    %1649 = vmatprep.mubr.f32.mxu0 0.0
    %1650 = vmatmul.mubr.f32.gmra.mxu0 %v1512
    %v1651 = vpop.f32.mrf.mxu0
    %v1652 = vadd.f32 0.0, %v1651
    %v1653 = vpop.f32.mrf.mxu0
    %1654 = vmatprep.mubr.f32.mxu0 0.0
    %1655 = vmatmul.mubr.f32.gmra.mxu0 %v1515
    %v1656 = vpop.f32.mrf.mxu0
    %v1657 = vadd.f32 0.0, %v1656
    %v1658 = vpop.f32.mrf.mxu0
    %1659 = vmatprep.mubr.f32.mxu0 0.0
    %1660 = vmatmul.mubr.f32.gmra.mxu0 %v1518
    %v1661 = vpop.f32.mrf.mxu0
    %v1662 = vadd.f32 0.0, %v1661
    %v1663 = vpop.f32.mrf.mxu0
    %1664 = vdwg.mxu0
    %v1665 = vadd.f32 %v1038, %v1587
    %v1666 = vadd.f32 %v1043, %v1592
    %v1667 = vadd.f32 %v1048, %v1597
    %v1668 = vadd.f32 %v1053, %v1602
    %v1669 = vadd.f32 %v1058, %v1607
    %v1670 = vadd.f32 %v1063, %v1612
    %v1671 = vadd.f32 %v1068, %v1617
    %v1672 = vadd.f32 %v1073, %v1622
    %v1673 = vadd.f32 %v1078, %v1627
    %v1674 = vadd.f32 %v1083, %v1632
    %v1675 = vadd.f32 %v1088, %v1637
    %v1676 = vadd.f32 %v1093, %v1642
    %v1677 = vadd.f32 %v1098, %v1647
    %v1678 = vadd.f32 %v1103, %v1652
    %v1679 = vadd.f32 %v1108, %v1657
    %v1680 = vadd.f32 %v1113, %v1662
    %v1681 = vld [vmem:[%s4] sm:$0x1]
    %v1683 = vlaneseq
    %v1684 = vshrl.u32 %v1683, 7
    %v1685 = vsub.s32 0, %v1684
    %v1686 = vrot.slane %v1681, %v1685
    %v1688 = vadd.f32 %v1665, %v1686
    %v1689 = vadd.f32 %v1666, %v1686
    %v1690 = vadd.f32 %v1667, %v1686
    %v1691 = vadd.f32 %v1668, %v1686
    %v1692 = vadd.f32 %v1669, %v1686
    %v1693 = vadd.f32 %v1670, %v1686
    %v1694 = vadd.f32 %v1671, %v1686
    %v1695 = vadd.f32 %v1672, %v1686
    %v1696 = vadd.f32 %v1673, %v1686
    %v1697 = vadd.f32 %v1674, %v1686
    %v1698 = vadd.f32 %v1675, %v1686
    %v1699 = vadd.f32 %v1676, %v1686
    %v1700 = vadd.f32 %v1677, %v1686
    %v1701 = vadd.f32 %v1678, %v1686
    %v1702 = vadd.f32 %v1679, %v1686
    %v1703 = vadd.f32 %v1680, %v1686
    %1704 = vmax.xlane.f32.xlu0 %v1688
    %v1705 = vpop.xlane.xlu0 %1704
    %1706 = vmax.xlane.f32.xlu0 %v1689
    %v1707 = vpop.xlane.xlu0 %1706
    %1708 = vmax.xlane.f32.xlu0 %v1690
    %v1709 = vpop.xlane.xlu0 %1708
    %1710 = vmax.xlane.f32.xlu0 %v1691
    %v1711 = vpop.xlane.xlu0 %1710
    %1712 = vmax.xlane.f32.xlu0 %v1692
    %v1713 = vpop.xlane.xlu0 %1712
    %1714 = vmax.xlane.f32.xlu0 %v1693
    %v1715 = vpop.xlane.xlu0 %1714
    %1716 = vmax.xlane.f32.xlu0 %v1694
    %v1717 = vpop.xlane.xlu0 %1716
    %1718 = vmax.xlane.f32.xlu0 %v1695
    %v1719 = vpop.xlane.xlu0 %1718
    %1720 = vmax.xlane.f32.xlu0 %v1696
    %v1721 = vpop.xlane.xlu0 %1720
    %1722 = vmax.xlane.f32.xlu0 %v1697
    %v1723 = vpop.xlane.xlu0 %1722
    %1724 = vmax.xlane.f32.xlu0 %v1698
    %v1725 = vpop.xlane.xlu0 %1724
    %1726 = vmax.xlane.f32.xlu0 %v1699
    %v1727 = vpop.xlane.xlu0 %1726
    %1728 = vmax.xlane.f32.xlu0 %v1700
    %v1729 = vpop.xlane.xlu0 %1728
    %1730 = vmax.xlane.f32.xlu0 %v1701
    %v1731 = vpop.xlane.xlu0 %1730
    %1732 = vmax.xlane.f32.xlu0 %v1702
    %v1733 = vpop.xlane.xlu0 %1732
    %1734 = vmax.xlane.f32.xlu0 %v1703
    %v1735 = vpop.xlane.xlu0 %1734
    %v1736 = vsub.f32 %v1688, %v1705
    %v1737 = vsub.f32 %v1689, %v1707
    %v1738 = vsub.f32 %v1690, %v1709
    %v1739 = vsub.f32 %v1691, %v1711
    %v1740 = vsub.f32 %v1692, %v1713
    %v1741 = vsub.f32 %v1693, %v1715
    %v1742 = vsub.f32 %v1694, %v1717
    %v1743 = vsub.f32 %v1695, %v1719
    %v1744 = vsub.f32 %v1696, %v1721
    %v1745 = vsub.f32 %v1697, %v1723
    %v1746 = vsub.f32 %v1698, %v1725
    %v1747 = vsub.f32 %v1699, %v1727
    %v1748 = vsub.f32 %v1700, %v1729
    %v1749 = vsub.f32 %v1701, %v1731
    %v1750 = vsub.f32 %v1702, %v1733
    %v1751 = vsub.f32 %v1703, %v1735
    %v1752 = vmul.f32 %v1736, 1.442695
    %v1753 = vpow.pop %v1752
    %v1754 = vmul.f32 %v1737, 1.442695
    %v1755 = vpow.pop %v1754
    %v1756 = vmul.f32 %v1738, 1.442695
    %v1757 = vpow.pop %v1756
    %v1758 = vmul.f32 %v1739, 1.442695
    %v1759 = vpow.pop %v1758
    %v1760 = vmul.f32 %v1740, 1.442695
    %v1761 = vpow.pop %v1760
    %v1762 = vmul.f32 %v1741, 1.442695
    %v1763 = vpow.pop %v1762
    %v1764 = vmul.f32 %v1742, 1.442695
    %v1765 = vpow.pop %v1764
    %v1766 = vmul.f32 %v1743, 1.442695
    %v1767 = vpow.pop %v1766
    %v1768 = vmul.f32 %v1744, 1.442695
    %v1769 = vpow.pop %v1768
    %v1770 = vmul.f32 %v1745, 1.442695
    %v1771 = vpow.pop %v1770
    %v1772 = vmul.f32 %v1746, 1.442695
    %v1773 = vpow.pop %v1772
    %v1774 = vmul.f32 %v1747, 1.442695
    %v1775 = vpow.pop %v1774
    %v1776 = vmul.f32 %v1748, 1.442695
    %v1777 = vpow.pop %v1776
    %v1778 = vmul.f32 %v1749, 1.442695
    %v1779 = vpow.pop %v1778
    %v1780 = vmul.f32 %v1750, 1.442695
    %v1781 = vpow.pop %v1780
    %v1782 = vmul.f32 %v1751, 1.442695
    %v1783 = vpow.pop %v1782
    %1784 = vadd.xlane.f32.xlu0 %v1753
    %v1785 = vpop.xlane.xlu0 %1784
    %1786 = vadd.xlane.f32.xlu0 %v1755
    %v1787 = vpop.xlane.xlu0 %1786
    %1788 = vadd.xlane.f32.xlu0 %v1757
    %v1789 = vpop.xlane.xlu0 %1788
    %1790 = vadd.xlane.f32.xlu0 %v1759
    %v1791 = vpop.xlane.xlu0 %1790
    %1792 = vadd.xlane.f32.xlu0 %v1761
    %v1793 = vpop.xlane.xlu0 %1792
    %1794 = vadd.xlane.f32.xlu0 %v1763
    %v1795 = vpop.xlane.xlu0 %1794
    %1796 = vadd.xlane.f32.xlu0 %v1765
    %v1797 = vpop.xlane.xlu0 %1796
    %1798 = vadd.xlane.f32.xlu0 %v1767
    %v1799 = vpop.xlane.xlu0 %1798
    %1800 = vadd.xlane.f32.xlu0 %v1769
    %v1801 = vpop.xlane.xlu0 %1800
    %1802 = vadd.xlane.f32.xlu0 %v1771
    %v1803 = vpop.xlane.xlu0 %1802
    %1804 = vadd.xlane.f32.xlu0 %v1773
    %v1805 = vpop.xlane.xlu0 %1804
    %1806 = vadd.xlane.f32.xlu0 %v1775
    %v1807 = vpop.xlane.xlu0 %1806
    %1808 = vadd.xlane.f32.xlu0 %v1777
    %v1809 = vpop.xlane.xlu0 %1808
    %1810 = vadd.xlane.f32.xlu0 %v1779
    %v1811 = vpop.xlane.xlu0 %1810
    %1812 = vadd.xlane.f32.xlu0 %v1781
    %v1813 = vpop.xlane.xlu0 %1812
    %1814 = vadd.xlane.f32.xlu0 %v1783
    %v1815 = vpop.xlane.xlu0 %1814
    %v1816 = vlog2.pop %v1785
    %v1817 = vmul.f32 %v1816, 0.6931472
    %v1818 = vlog2.pop %v1787
    %v1819 = vmul.f32 %v1818, 0.6931472
    %v1820 = vlog2.pop %v1789
    %v1821 = vmul.f32 %v1820, 0.6931472
    %v1822 = vlog2.pop %v1791
    %v1823 = vmul.f32 %v1822, 0.6931472
    %v1824 = vlog2.pop %v1793
    %v1825 = vmul.f32 %v1824, 0.6931472
    %v1826 = vlog2.pop %v1795
    %v1827 = vmul.f32 %v1826, 0.6931472
    %v1828 = vlog2.pop %v1797
    %v1829 = vmul.f32 %v1828, 0.6931472
    %v1830 = vlog2.pop %v1799
    %v1831 = vmul.f32 %v1830, 0.6931472
    %v1832 = vlog2.pop %v1801
    %v1833 = vmul.f32 %v1832, 0.6931472
    %v1834 = vlog2.pop %v1803
    %v1835 = vmul.f32 %v1834, 0.6931472
    %v1836 = vlog2.pop %v1805
    %v1837 = vmul.f32 %v1836, 0.6931472
    %v1838 = vlog2.pop %v1807
    %v1839 = vmul.f32 %v1838, 0.6931472
    %v1840 = vlog2.pop %v1809
    %v1841 = vmul.f32 %v1840, 0.6931472
    %v1842 = vlog2.pop %v1811
    %v1843 = vmul.f32 %v1842, 0.6931472
    %v1844 = vlog2.pop %v1813
    %v1845 = vmul.f32 %v1844, 0.6931472
    %v1846 = vlog2.pop %v1815
    %v1847 = vmul.f32 %v1846, 0.6931472
    %v1848 = vsub.f32 %v1736, %v1817
    %v1849 = vsub.f32 %v1737, %v1819
    %v1850 = vsub.f32 %v1738, %v1821
    %v1851 = vsub.f32 %v1739, %v1823
    %v1852 = vsub.f32 %v1740, %v1825
    %v1853 = vsub.f32 %v1741, %v1827
    %v1854 = vsub.f32 %v1742, %v1829
    %v1855 = vsub.f32 %v1743, %v1831
    %v1856 = vsub.f32 %v1744, %v1833
    %v1857 = vsub.f32 %v1745, %v1835
    %v1858 = vsub.f32 %v1746, %v1837
    %v1859 = vsub.f32 %v1747, %v1839
    %v1860 = vsub.f32 %v1748, %v1841
    %v1861 = vsub.f32 %v1749, %v1843
    %v1862 = vsub.f32 %v1750, %v1845
    %v1863 = vsub.f32 %v1751, %v1847
    %1864 = vst [vmem:[#allocation2] sm:$0xff] %v1848
    %1865 = vst [vmem:[#allocation2 + $0x8] sm:$0xff] %v1849
    %1866 = vst [vmem:[#allocation2 + $0x10] sm:$0xff] %v1850
    %1867 = vst [vmem:[#allocation2 + $0x18] sm:$0xff] %v1851
    %1868 = vst [vmem:[#allocation2 + $0x20] sm:$0xff] %v1852
    %1869 = vst [vmem:[#allocation2 + $0x28] sm:$0xff] %v1853
    %1870 = vst [vmem:[#allocation2 + $0x30] sm:$0xff] %v1854
    %1871 = vst [vmem:[#allocation2 + $0x38] sm:$0xff] %v1855
    %1872 = vst [vmem:[#allocation2 + $0x40] sm:$0xff] %v1856
    %1873 = vst [vmem:[#allocation2 + $0x48] sm:$0xff] %v1857
    %1874 = vst [vmem:[#allocation2 + $0x50] sm:$0xff] %v1858
    %1875 = vst [vmem:[#allocation2 + $0x58] sm:$0xff] %v1859
    %1876 = vst [vmem:[#allocation2 + $0x60] sm:$0xff] %v1860
    %1877 = vst [vmem:[#allocation2 + $0x68] sm:$0xff] %v1861
    %1878 = vst [vmem:[#allocation2 + $0x70] sm:$0xff] %v1862
    %1879 = vst [vmem:[#allocation2 + $0x78] sm:$0xff] %v1863
    // Predicated region
    $region22: #{_fsgnn_pallas.1} parent=1 // pred_check
      _
    $region23: #{_fsgnn_pallas.1} parent=1 // pred_check_branch
      %1881 = sbr.rel (0) target = $region25
    $region24: #{_fsgnn_pallas.1} parent=1 // pred_region
      %s1883 = ssub.s32 2048, 2048
      %1884 = vsyncadd [#allocation3], %s1883
      %s1885 = sshll.u32 [#allocation2], 4
      %s1886 = int_to_ptr.vmem [resolvable:$true] %s1885
      %1891 = dma.vmem_to_hbm [thread:$0]  %s1886, 2048, %s5, [#allocation3], 128, 128, 8
    $region25: #{_fsgnn_pallas.1} parent=1 // pred_fallthru
      _
    // Predicated region
    $region26: #{_fsgnn_pallas.1} parent=1 // pred_check
      _
    $region27: #{_fsgnn_pallas.1} parent=1 // pred_check_branch
      %1893 = sbr.rel (0) target = $region29
    $region28: #{_fsgnn_pallas.1} parent=1 // pred_region
      %1894 = dma.done [#allocation3], 2048
    $region29: #{_fsgnn_pallas.1} parent=1 // pred_fallthru
      _
    %1895 = vsyncpa [#allocation3], 1

// kernel: _fsgnn_pallas.1
$region0: #{_fsgnn_pallas.1}
  #allocation0 [shape = 'u32[]', space=smem, size = 0x4, offset = 0x4, fixed_abs, tag = 'smem constant byte address 0x4 - core index']
  #allocation1 [shape = 'u32[144,128]{1,0:T(1,128)}', space=vmem, size = 0x12000, scoped, tag = 'internal scratch']
  %s0 = inlined_call_operand.vmem [shape: f32[3,128,32], index: 0, kind: input, shape index: {}]
  %s1 = inlined_call_operand.vmem [shape: f32[3,32,32], index: 1, kind: input, shape index: {}]
  %s2 = inlined_call_operand.vmem [shape: f32[3,1,32], index: 2, kind: input, shape index: {}]
  %s3 = inlined_call_operand.vmem [shape: f32[3,32,128], index: 3, kind: input, shape index: {}]
  %s4 = inlined_call_operand.vmem [shape: f32[1,128], index: 4, kind: input, shape index: {}]
  %s5 = inlined_call_operand.hbm [shape: f32[128,128], index: 5, kind: output, shape index: {}]
  %s6 = sld [smem:[#allocation0]]
  $region30: #{_fsgnn_pallas.1} parent=0
    _
  %s8 = ssub.s32 1, %s6
  %s9 = scalar_select 0, %s8, %s6
  $region1: #{_fsgnn_pallas.1} parent=0
    #allocation2 [shape = 'u8[65536]{0}', space=vmem, size = 0x10000, scoped, tag = 'output window, operand 0, single buffered']
    #allocation3 [shape = 's32[1]{0}', space=sflag, size = 0x4, scoped, tag = 'scoped memory for _fsgnn_pallas.1']
    %10 = vsyncpa [#allocation3], 0
    // Predicated region
    $region2: #{_fsgnn_pallas.1} parent=1 // pred_check
      _
    $region3: #{_fsgnn_pallas.1} parent=1 // pred_check_branch
      %12 = sbr.rel (0) target = $region5
    $region4: #{_fsgnn_pallas.1} parent=1 // pred_region
      _
    $region5: #{_fsgnn_pallas.1} parent=1 // pred_fallthru
      _
    // Predicated region
    $region6: #{_fsgnn_pallas.1} parent=1 // pred_check
      _
    $region7: #{_fsgnn_pallas.1} parent=1 // pred_check_branch
      %14 = sbr.rel (0) target = $region9
    $region8: #{_fsgnn_pallas.1} parent=1 // pred_region
      _
    $region9: #{_fsgnn_pallas.1} parent=1 // pred_fallthru
      _
    // Predicated region
    $region10: #{_fsgnn_pallas.1} parent=1 // pred_check
      _
    $region11: #{_fsgnn_pallas.1} parent=1 // pred_check_branch
      %16 = sbr.rel (0) target = $region13
    $region12: #{_fsgnn_pallas.1} parent=1 // pred_region
      _
    $region13: #{_fsgnn_pallas.1} parent=1 // pred_fallthru
      _
    // Predicated region
    $region14: #{_fsgnn_pallas.1} parent=1 // pred_check
      _
    $region15: #{_fsgnn_pallas.1} parent=1 // pred_check_branch
      %18 = sbr.rel (0) target = $region17
    $region16: #{_fsgnn_pallas.1} parent=1 // pred_region
      _
    $region17: #{_fsgnn_pallas.1} parent=1 // pred_fallthru
      _
    // Predicated region
    $region18: #{_fsgnn_pallas.1} parent=1 // pred_check
      _
    $region19: #{_fsgnn_pallas.1} parent=1 // pred_check_branch
      %20 = sbr.rel (0) target = $region21
    $region20: #{_fsgnn_pallas.1} parent=1 // pred_region
      _
    $region21: #{_fsgnn_pallas.1} parent=1 // pred_fallthru
      _
    %v21 = vld [vmem:[%s0] sm:$0xff]
    %v22 = vld [vmem:[%s0 + $0x8] sm:$0xff]
    %v23 = vld [vmem:[%s0 + $0x10] sm:$0xff]
    %v24 = vld [vmem:[%s0 + $0x18] sm:$0xff]
    %v25 = vld [vmem:[%s0 + $0x20] sm:$0xff]
    %v26 = vld [vmem:[%s0 + $0x28] sm:$0xff]
    %v27 = vld [vmem:[%s0 + $0x30] sm:$0xff]
    %v28 = vld [vmem:[%s0 + $0x38] sm:$0xff]
    %v29 = vld [vmem:[%s0 + $0x40] sm:$0xff]
    %v30 = vld [vmem:[%s0 + $0x48] sm:$0xff]
    %v31 = vld [vmem:[%s0 + $0x50] sm:$0xff]
    %v32 = vld [vmem:[%s0 + $0x58] sm:$0xff]
    %v33 = vld [vmem:[%s0 + $0x60] sm:$0xff]
    %v34 = vld [vmem:[%s0 + $0x68] sm:$0xff]
    %v35 = vld [vmem:[%s0 + $0x70] sm:$0xff]
    %v36 = vld [vmem:[%s0 + $0x78] sm:$0xff]
    %v37 = vld [vmem:[%s1] sm:$0xff]
    %v38 = vld [vmem:[%s1 + $0x8] sm:$0xff]
    %v39 = vld [vmem:[%s1 + $0x10] sm:$0xff]
    %v40 = vld [vmem:[%s1 + $0x18] sm:$0xff]
    %v41 = vld [vmem:[%s2] sm:$0x1]
    %v43 = vlaneseq
    %v44 = vshrl.u32 %v43, 7
    %v45 = vsub.s32 0, %v44
    %v46 = vrot.slane %v41, %v45
    %vm48 = vcmask 261120
    %v50 = vsel %vm48, %v21, 0
    %v53 = vsel %vm48, %v22, 0
    %v56 = vsel %vm48, %v23, 0
    %v59 = vsel %vm48, %v24, 0
    %v62 = vsel %vm48, %v25, 0
    %v65 = vsel %vm48, %v26, 0
    %v68 = vsel %vm48, %v27, 0
    %v71 = vsel %vm48, %v28, 0
    %v74 = vsel %vm48, %v29, 0
    %v77 = vsel %vm48, %v30, 0
    %v80 = vsel %vm48, %v31, 0
    %v83 = vsel %vm48, %v32, 0
    %v86 = vsel %vm48, %v33, 0
    %v89 = vsel %vm48, %v34, 0
    %v92 = vsel %vm48, %v35, 0
    %v95 = vsel %vm48, %v36, 0
    %97 = vmatprep.subr.mxu0 0.0
    %98 = vmatpush1.msra.mxu0 0.0
    %99 = vmatprep.subr.mxu0 0.0
    %100 = vmatpush1.msra.mxu0 0.0
    %101 = vmatprep.subr.mxu0 0.0
    %102 = vmatpush1.msra.mxu0 0.0
    %103 = vmatprep.subr.mxu0 0.0
    %104 = vmatpush1.msra.mxu0 0.0
    %105 = vmatprep.subr.mxu0 0.0
    %106 = vmatpush1.msra.mxu0 0.0
    %107 = vmatprep.subr.mxu0 0.0
    %108 = vmatpush1.msra.mxu0 0.0
    %109 = vmatprep.subr.mxu0 0.0
    %110 = vmatpush1.msra.mxu0 0.0
    %111 = vmatprep.subr.mxu0 0.0
    %112 = vmatpush1.msra.mxu0 0.0
    %113 = vmatprep.subr.mxu0 0.0
    %114 = vmatpush1.msra.mxu0 0.0
    %115 = vmatprep.subr.mxu0 0.0
    %116 = vmatpush1.msra.mxu0 0.0
    %117 = vmatprep.subr.mxu0 0.0
    %118 = vmatpush1.msra.mxu0 0.0
    %119 = vmatprep.subr.mxu0 0.0
    %120 = vmatpush1.msra.mxu0 0.0
    %121 = vmatprep.subr.mxu0 0.0
    %122 = vmatpush1.msra.mxu0 %v40
    %123 = vmatprep.subr.mxu0 0.0
    %124 = vmatpush1.msra.mxu0 %v39
    %125 = vmatprep.subr.mxu0 0.0
    %126 = vmatpush1.msra.mxu0 %v38
    %127 = vmatprep.subr.mxu0 0.0
    %128 = vmatpush1.msra.mxu0 %v37
    %129 = vmatprep.subr.mxu0 0.0
    %130 = vmatpush2.msra.mxu0 0.0
    %131 = vmatprep.subr.mxu0 0.0
    %132 = vmatpush2.msra.mxu0 0.0
    %133 = vmatprep.subr.mxu0 0.0
    %134 = vmatpush2.msra.mxu0 0.0
    %135 = vmatprep.subr.mxu0 0.0
    %136 = vmatpush2.msra.mxu0 0.0
    %137 = vmatprep.subr.mxu0 0.0
    %138 = vmatpush2.msra.mxu0 0.0
    %139 = vmatprep.subr.mxu0 0.0
    %140 = vmatpush2.msra.mxu0 0.0
    %141 = vmatprep.subr.mxu0 0.0
    %142 = vmatpush2.msra.mxu0 0.0
    %143 = vmatprep.subr.mxu0 0.0
    %144 = vmatpush2.msra.mxu0 0.0
    %145 = vmatprep.subr.mxu0 0.0
    %146 = vmatpush2.msra.mxu0 0.0
    %147 = vmatprep.subr.mxu0 0.0
    %148 = vmatpush2.msra.mxu0 0.0
    %149 = vmatprep.subr.mxu0 0.0
    %150 = vmatpush2.msra.mxu0 0.0
    %151 = vmatprep.subr.mxu0 0.0
    %152 = vmatpush2.msra.mxu0 0.0
    %153 = vmatprep.subr.mxu0 0.0
    %154 = vmatpush2.msra.mxu0 0.0
    %155 = vmatprep.subr.mxu0 0.0
    %156 = vmatpush2.msra.mxu0 0.0
    %157 = vmatprep.subr.mxu0 0.0
    %158 = vmatpush2.msra.mxu0 0.0
    %159 = vmatprep.subr.mxu0 0.0
    %160 = vmatpush2.msra.mxu0 0.0
    %161 = vmatprep.mubr.f32.mxu0 0.0
    %162 = vmatmul.mubr.f32.gmra.mxu0 %v50
    %v163 = vpop.f32.mrf.mxu0
    %v164 = vadd.f32 %v46, %v163
    %v165 = vpop.f32.mrf.mxu0
    %166 = vmatprep.mubr.f32.mxu0 0.0
    %167 = vmatmul.mubr.f32.gmra.mxu0 %v53
    %v168 = vpop.f32.mrf.mxu0
    %v169 = vadd.f32 %v46, %v168
    %v170 = vpop.f32.mrf.mxu0
    %171 = vmatprep.mubr.f32.mxu0 0.0
    %172 = vmatmul.mubr.f32.gmra.mxu0 %v56
    %v173 = vpop.f32.mrf.mxu0
    %v174 = vadd.f32 %v46, %v173
    %v175 = vpop.f32.mrf.mxu0
    %176 = vmatprep.mubr.f32.mxu0 0.0
    %177 = vmatmul.mubr.f32.gmra.mxu0 %v59
    %v178 = vpop.f32.mrf.mxu0
    %v179 = vadd.f32 %v46, %v178
    %v180 = vpop.f32.mrf.mxu0
    %181 = vmatprep.mubr.f32.mxu0 0.0
    %182 = vmatmul.mubr.f32.gmra.mxu0 %v62
    %v183 = vpop.f32.mrf.mxu0
    %v184 = vadd.f32 %v46, %v183
    %v185 = vpop.f32.mrf.mxu0
    %186 = vmatprep.mubr.f32.mxu0 0.0
    %187 = vmatmul.mubr.f32.gmra.mxu0 %v65
    %v188 = vpop.f32.mrf.mxu0
    %v189 = vadd.f32 %v46, %v188
    %v190 = vpop.f32.mrf.mxu0
    %191 = vmatprep.mubr.f32.mxu0 0.0
    %192 = vmatmul.mubr.f32.gmra.mxu0 %v68
    %v193 = vpop.f32.mrf.mxu0
    %v194 = vadd.f32 %v46, %v193
    %v195 = vpop.f32.mrf.mxu0
    %196 = vmatprep.mubr.f32.mxu0 0.0
    %197 = vmatmul.mubr.f32.gmra.mxu0 %v71
    %v198 = vpop.f32.mrf.mxu0
    %v199 = vadd.f32 %v46, %v198
    %v200 = vpop.f32.mrf.mxu0
    %201 = vmatprep.mubr.f32.mxu0 0.0
    %202 = vmatmul.mubr.f32.gmra.mxu0 %v74
    %v203 = vpop.f32.mrf.mxu0
    %v204 = vadd.f32 %v46, %v203
    %v205 = vpop.f32.mrf.mxu0
    %206 = vmatprep.mubr.f32.mxu0 0.0
    %207 = vmatmul.mubr.f32.gmra.mxu0 %v77
    %v208 = vpop.f32.mrf.mxu0
    %v209 = vadd.f32 %v46, %v208
    %v210 = vpop.f32.mrf.mxu0
    %211 = vmatprep.mubr.f32.mxu0 0.0
    %212 = vmatmul.mubr.f32.gmra.mxu0 %v80
    %v213 = vpop.f32.mrf.mxu0
    %v214 = vadd.f32 %v46, %v213
    %v215 = vpop.f32.mrf.mxu0
    %216 = vmatprep.mubr.f32.mxu0 0.0
    %217 = vmatmul.mubr.f32.gmra.mxu0 %v83
    %v218 = vpop.f32.mrf.mxu0
    %v219 = vadd.f32 %v46, %v218
    %v220 = vpop.f32.mrf.mxu0
    %221 = vmatprep.mubr.f32.mxu0 0.0
    %222 = vmatmul.mubr.f32.gmra.mxu0 %v86
    %v223 = vpop.f32.mrf.mxu0
    %v224 = vadd.f32 %v46, %v223
    %v225 = vpop.f32.mrf.mxu0
    %226 = vmatprep.mubr.f32.mxu0 0.0
    %227 = vmatmul.mubr.f32.gmra.mxu0 %v89
    %v228 = vpop.f32.mrf.mxu0
    %v229 = vadd.f32 %v46, %v228
    %v230 = vpop.f32.mrf.mxu0
    %231 = vmatprep.mubr.f32.mxu0 0.0
    %232 = vmatmul.mubr.f32.gmra.mxu0 %v92
    %v233 = vpop.f32.mrf.mxu0
    %v234 = vadd.f32 %v46, %v233
    %v235 = vpop.f32.mrf.mxu0
    %236 = vmatprep.mubr.f32.mxu0 0.0
    %237 = vmatmul.mubr.f32.gmra.mxu0 %v95
    %v238 = vpop.f32.mrf.mxu0
    %v239 = vadd.f32 %v46, %v238
    %v240 = vpop.f32.mrf.mxu0
    %241 = vdwg.mxu0
    %v242 = vmul.f32 %v164, %v164
    %v243 = vmul.f32 %v169, %v169
    %v244 = vmul.f32 %v174, %v174
    %v245 = vmul.f32 %v179, %v179
    %v246 = vmul.f32 %v184, %v184
    %v247 = vmul.f32 %v189, %v189
    %v248 = vmul.f32 %v194, %v194
    %v249 = vmul.f32 %v199, %v199
    %v250 = vmul.f32 %v204, %v204
    %v251 = vmul.f32 %v209, %v209
    %v252 = vmul.f32 %v214, %v214
    %v253 = vmul.f32 %v219, %v219
    %v254 = vmul.f32 %v224, %v224
    %v255 = vmul.f32 %v229, %v229
    %v256 = vmul.f32 %v234, %v234
    %v257 = vmul.f32 %v239, %v239
    %v258 = vsel %vm48, %v242, 0.0
    %259 = vadd.xlane.f32.xlu0 %v258
    %v260 = vpop.xlane.xlu0 %259
    %v261 = vsel %vm48, %v243, 0.0
    %262 = vadd.xlane.f32.xlu0 %v261
    %v263 = vpop.xlane.xlu0 %262
    %v264 = vsel %vm48, %v244, 0.0
    %265 = vadd.xlane.f32.xlu0 %v264
    %v266 = vpop.xlane.xlu0 %265
    %v267 = vsel %vm48, %v245, 0.0
    %268 = vadd.xlane.f32.xlu0 %v267
    %v269 = vpop.xlane.xlu0 %268
    %v270 = vsel %vm48, %v246, 0.0
    %271 = vadd.xlane.f32.xlu0 %v270
    %v272 = vpop.xlane.xlu0 %271
    %v273 = vsel %vm48, %v247, 0.0
    %274 = vadd.xlane.f32.xlu0 %v273
    %v275 = vpop.xlane.xlu0 %274
    %v276 = vsel %vm48, %v248, 0.0
    %277 = vadd.xlane.f32.xlu0 %v276
    %v278 = vpop.xlane.xlu0 %277
    %v279 = vsel %vm48, %v249, 0.0
    %280 = vadd.xlane.f32.xlu0 %v279
    %v281 = vpop.xlane.xlu0 %280
    %v282 = vsel %vm48, %v250, 0.0
    %283 = vadd.xlane.f32.xlu0 %v282
    %v284 = vpop.xlane.xlu0 %283
    %v285 = vsel %vm48, %v251, 0.0
    %286 = vadd.xlane.f32.xlu0 %v285
    %v287 = vpop.xlane.xlu0 %286
    %v288 = vsel %vm48, %v252, 0.0
    %289 = vadd.xlane.f32.xlu0 %v288
    %v290 = vpop.xlane.xlu0 %289
    %v291 = vsel %vm48, %v253, 0.0
    %292 = vadd.xlane.f32.xlu0 %v291
    %v293 = vpop.xlane.xlu0 %292
    %v294 = vsel %vm48, %v254, 0.0
    %295 = vadd.xlane.f32.xlu0 %v294
    %v296 = vpop.xlane.xlu0 %295
    %v297 = vsel %vm48, %v255, 0.0
    %298 = vadd.xlane.f32.xlu0 %v297
    %v299 = vpop.xlane.xlu0 %298
    %v300 = vsel %vm48, %v256, 0.0
    %301 = vadd.xlane.f32.xlu0 %v300
    %v302 = vpop.xlane.xlu0 %301
    %v303 = vsel %vm48, %v257, 0.0
    %304 = vadd.xlane.f32.xlu0 %v303
    %v305 = vpop.xlane.xlu0 %304
    %v306 = vmax.f32 %v260, 1e-24
    %v307 = vmax.f32 %v263, 1e-24
    %v308 = vmax.f32 %v266, 1e-24
    %v309 = vmax.f32 %v269, 1e-24
    %v310 = vmax.f32 %v272, 1e-24
    %v311 = vmax.f32 %v275, 1e-24
    %v312 = vmax.f32 %v278, 1e-24
    %v313 = vmax.f32 %v281, 1e-24
    %v314 = vmax.f32 %v284, 1e-24
    %v315 = vmax.f32 %v287, 1e-24
    %v316 = vmax.f32 %v290, 1e-24
    %v317 = vmax.f32 %v293, 1e-24
    %v318 = vmax.f32 %v296, 1e-24
    %v319 = vmax.f32 %v299, 1e-24
    %v320 = vmax.f32 %v302, 1e-24
    %v321 = vmax.f32 %v305, 1e-24
    %v322 = vrsqrt.pop %v306
    %v323 = vrsqrt.pop %v307
    %v324 = vrsqrt.pop %v308
    %v325 = vrsqrt.pop %v309
    %v326 = vrsqrt.pop %v310
    %v327 = vrsqrt.pop %v311
    %v328 = vrsqrt.pop %v312
    %v329 = vrsqrt.pop %v313
    %v330 = vrsqrt.pop %v314
    %v331 = vrsqrt.pop %v315
    %v332 = vrsqrt.pop %v316
    %v333 = vrsqrt.pop %v317
    %v334 = vrsqrt.pop %v318
    %v335 = vrsqrt.pop %v319
    %v336 = vrsqrt.pop %v320
    %v337 = vrsqrt.pop %v321
    %v338 = vmul.f32 %v164, %v322
    %v339 = vmul.f32 %v169, %v323
    %v340 = vmul.f32 %v174, %v324
    %v341 = vmul.f32 %v179, %v325
    %v342 = vmul.f32 %v184, %v326
    %v343 = vmul.f32 %v189, %v327
    %v344 = vmul.f32 %v194, %v328
    %v345 = vmul.f32 %v199, %v329
    %v346 = vmul.f32 %v204, %v330
    %v347 = vmul.f32 %v209, %v331
    %v348 = vmul.f32 %v214, %v332
    %v349 = vmul.f32 %v219, %v333
    %v350 = vmul.f32 %v224, %v334
    %v351 = vmul.f32 %v229, %v335
    %v352 = vmul.f32 %v234, %v336
    %v353 = vmul.f32 %v239, %v337
    %v354 = vmax.f32 %v338, 0.0
    %v355 = vmax.f32 %v339, 0.0
    %v356 = vmax.f32 %v340, 0.0
    %v357 = vmax.f32 %v341, 0.0
    %v358 = vmax.f32 %v342, 0.0
    %v359 = vmax.f32 %v343, 0.0
    %v360 = vmax.f32 %v344, 0.0
    %v361 = vmax.f32 %v345, 0.0
    %v362 = vmax.f32 %v346, 0.0
    %v363 = vmax.f32 %v347, 0.0
    %v364 = vmax.f32 %v348, 0.0
    %v365 = vmax.f32 %v349, 0.0
    %v366 = vmax.f32 %v350, 0.0
    %v367 = vmax.f32 %v351, 0.0
    %v368 = vmax.f32 %v352, 0.0
    %v369 = vmax.f32 %v353, 0.0
    %v370 = vld [vmem:[%s3] sm:$0xff]
    %v371 = vld [vmem:[%s3 + $0x8] sm:$0xff]
    %v372 = vld [vmem:[%s3 + $0x10] sm:$0xff]
    %v373 = vld [vmem:[%s3 + $0x18] sm:$0xff]
    %s374 = scalar_lea.vmem %s0, 128
    %v375 = vld [vmem:[%s374] sm:$0xff]
    %v376 = vld [vmem:[%s374 + $0x8] sm:$0xff]
    %v377 = vld [vmem:[%s374 + $0x10] sm:$0xff]
    %v378 = vld [vmem:[%s374 + $0x18] sm:$0xff]
    %v379 = vld [vmem:[%s374 + $0x20] sm:$0xff]
    %v380 = vld [vmem:[%s374 + $0x28] sm:$0xff]
    %v381 = vld [vmem:[%s374 + $0x30] sm:$0xff]
    %v382 = vld [vmem:[%s374 + $0x38] sm:$0xff]
    %v383 = vld [vmem:[%s374 + $0x40] sm:$0xff]
    %v384 = vld [vmem:[%s374 + $0x48] sm:$0xff]
    %v385 = vld [vmem:[%s374 + $0x50] sm:$0xff]
    %v386 = vld [vmem:[%s374 + $0x58] sm:$0xff]
    %v387 = vld [vmem:[%s374 + $0x60] sm:$0xff]
    %v388 = vld [vmem:[%s374 + $0x68] sm:$0xff]
    %v389 = vld [vmem:[%s374 + $0x70] sm:$0xff]
    %v390 = vld [vmem:[%s374 + $0x78] sm:$0xff]
    %s391 = scalar_lea.vmem %s1, 32
    %v392 = vld [vmem:[%s391] sm:$0xff]
    %v393 = vld [vmem:[%s391 + $0x8] sm:$0xff]
    %v394 = vld [vmem:[%s391 + $0x10] sm:$0xff]
    %v395 = vld [vmem:[%s391 + $0x18] sm:$0xff]
    %s396 = scalar_lea.vmem %s2, 1
    %v397 = vld [vmem:[%s396] sm:$0x1]
    %v399 = vlaneseq
    %v400 = vshrl.u32 %v399, 7
    %v401 = vsub.s32 0, %v400
    %v402 = vrot.slane %v397, %v401
    %v405 = vsel %vm48, %v375, 0
    %v408 = vsel %vm48, %v376, 0
    %v411 = vsel %vm48, %v377, 0
    %v414 = vsel %vm48, %v378, 0
    %v417 = vsel %vm48, %v379, 0
    %v420 = vsel %vm48, %v380, 0
    %v423 = vsel %vm48, %v381, 0
    %v426 = vsel %vm48, %v382, 0
    %v429 = vsel %vm48, %v383, 0
    %v432 = vsel %vm48, %v384, 0
    %v435 = vsel %vm48, %v385, 0
    %v438 = vsel %vm48, %v386, 0
    %v441 = vsel %vm48, %v387, 0
    %v444 = vsel %vm48, %v388, 0
    %v447 = vsel %vm48, %v389, 0
    %v450 = vsel %vm48, %v390, 0
    %452 = vmatprep.subr.mxu0 0.0
    %453 = vmatpush1.msra.mxu0 0.0
    %454 = vmatprep.subr.mxu0 0.0
    %455 = vmatpush1.msra.mxu0 0.0
    %456 = vmatprep.subr.mxu0 0.0
    %457 = vmatpush1.msra.mxu0 0.0
    %458 = vmatprep.subr.mxu0 0.0
    %459 = vmatpush1.msra.mxu0 0.0
    %460 = vmatprep.subr.mxu0 0.0
    %461 = vmatpush1.msra.mxu0 0.0
    %462 = vmatprep.subr.mxu0 0.0
    %463 = vmatpush1.msra.mxu0 0.0
    %464 = vmatprep.subr.mxu0 0.0
    %465 = vmatpush1.msra.mxu0 0.0
    %466 = vmatprep.subr.mxu0 0.0
    %467 = vmatpush1.msra.mxu0 0.0
    %468 = vmatprep.subr.mxu0 0.0
    %469 = vmatpush1.msra.mxu0 0.0
    %470 = vmatprep.subr.mxu0 0.0
    %471 = vmatpush1.msra.mxu0 0.0
    %472 = vmatprep.subr.mxu0 0.0
    %473 = vmatpush1.msra.mxu0 0.0
    %474 = vmatprep.subr.mxu0 0.0
    %475 = vmatpush1.msra.mxu0 0.0
    %476 = vmatprep.subr.mxu0 0.0
    %477 = vmatpush1.msra.mxu0 %v395
    %478 = vmatprep.subr.mxu0 0.0
    %479 = vmatpush1.msra.mxu0 %v394
    %480 = vmatprep.subr.mxu0 0.0
    %481 = vmatpush1.msra.mxu0 %v393
    %482 = vmatprep.subr.mxu0 0.0
    %483 = vmatpush1.msra.mxu0 %v392
    %484 = vmatprep.subr.mxu0 0.0
    %485 = vmatpush2.msra.mxu0 0.0
    %486 = vmatprep.subr.mxu0 0.0
    %487 = vmatpush2.msra.mxu0 0.0
    %488 = vmatprep.subr.mxu0 0.0
    %489 = vmatpush2.msra.mxu0 0.0
    %490 = vmatprep.subr.mxu0 0.0
    %491 = vmatpush2.msra.mxu0 0.0
    %492 = vmatprep.subr.mxu0 0.0
    %493 = vmatpush2.msra.mxu0 0.0
    %494 = vmatprep.subr.mxu0 0.0
    %495 = vmatpush2.msra.mxu0 0.0
    %496 = vmatprep.subr.mxu0 0.0
    %497 = vmatpush2.msra.mxu0 0.0
    %498 = vmatprep.subr.mxu0 0.0
    %499 = vmatpush2.msra.mxu0 0.0
    %500 = vmatprep.subr.mxu0 0.0
    %501 = vmatpush2.msra.mxu0 0.0
    %502 = vmatprep.subr.mxu0 0.0
    %503 = vmatpush2.msra.mxu0 0.0
    %504 = vmatprep.subr.mxu0 0.0
    %505 = vmatpush2.msra.mxu0 0.0
    %506 = vmatprep.subr.mxu0 0.0
    %507 = vmatpush2.msra.mxu0 0.0
    %508 = vmatprep.subr.mxu0 0.0
    %509 = vmatpush2.msra.mxu0 0.0
    %510 = vmatprep.subr.mxu0 0.0
    %511 = vmatpush2.msra.mxu0 0.0
    %512 = vmatprep.subr.mxu0 0.0
    %513 = vmatpush2.msra.mxu0 0.0
    %514 = vmatprep.subr.mxu0 0.0
    %515 = vmatpush2.msra.mxu0 0.0
    %516 = vmatprep.mubr.f32.mxu0 0.0
    %517 = vmatmul.mubr.f32.gmra.mxu0 %v405
    %v518 = vpop.f32.mrf.mxu0
    %v519 = vadd.f32 %v402, %v518
    %v520 = vpop.f32.mrf.mxu0
    %521 = vmatprep.mubr.f32.mxu0 0.0
    %522 = vmatmul.mubr.f32.gmra.mxu0 %v408
    %v523 = vpop.f32.mrf.mxu0
    %v524 = vadd.f32 %v402, %v523
    %v525 = vpop.f32.mrf.mxu0
    %526 = vmatprep.mubr.f32.mxu0 0.0
    %527 = vmatmul.mubr.f32.gmra.mxu0 %v411
    %v528 = vpop.f32.mrf.mxu0
    %v529 = vadd.f32 %v402, %v528
    %v530 = vpop.f32.mrf.mxu0
    %531 = vmatprep.mubr.f32.mxu0 0.0
    %532 = vmatmul.mubr.f32.gmra.mxu0 %v414
    %v533 = vpop.f32.mrf.mxu0
    %v534 = vadd.f32 %v402, %v533
    %v535 = vpop.f32.mrf.mxu0
    %536 = vmatprep.mubr.f32.mxu0 0.0
    %537 = vmatmul.mubr.f32.gmra.mxu0 %v417
    %v538 = vpop.f32.mrf.mxu0
    %v539 = vadd.f32 %v402, %v538
    %v540 = vpop.f32.mrf.mxu0
    %541 = vmatprep.mubr.f32.mxu0 0.0
    %542 = vmatmul.mubr.f32.gmra.mxu0 %v420
    %v543 = vpop.f32.mrf.mxu0
    %v544 = vadd.f32 %v402, %v543
    %v545 = vpop.f32.mrf.mxu0
    %546 = vmatprep.mubr.f32.mxu0 0.0
    %547 = vmatmul.mubr.f32.gmra.mxu0 %v423
    %v548 = vpop.f32.mrf.mxu0
    %v549 = vadd.f32 %v402, %v548
    %v550 = vpop.f32.mrf.mxu0
    %551 = vmatprep.mubr.f32.mxu0 0.0
    %552 = vmatmul.mubr.f32.gmra.mxu0 %v426
    %v553 = vpop.f32.mrf.mxu0
    %v554 = vadd.f32 %v402, %v553
    %v555 = vpop.f32.mrf.mxu0
    %556 = vmatprep.mubr.f32.mxu0 0.0
    %557 = vmatmul.mubr.f32.gmra.mxu0 %v429
    %v558 = vpop.f32.mrf.mxu0
    %v559 = vadd.f32 %v402, %v558
    %v560 = vpop.f32.mrf.mxu0
    %561 = vmatprep.mubr.f32.mxu0 0.0
    %562 = vmatmul.mubr.f32.gmra.mxu0 %v432
    %v563 = vpop.f32.mrf.mxu0
    %v564 = vadd.f32 %v402, %v563
    %v565 = vpop.f32.mrf.mxu0
    %566 = vmatprep.mubr.f32.mxu0 0.0
    %567 = vmatmul.mubr.f32.gmra.mxu0 %v435
    %v568 = vpop.f32.mrf.mxu0
    %v569 = vadd.f32 %v402, %v568
    %v570 = vpop.f32.mrf.mxu0
    %571 = vmatprep.mubr.f32.mxu0 0.0
    %572 = vmatmul.mubr.f32.gmra.mxu0 %v438
    %v573 = vpop.f32.mrf.mxu0
    %v574 = vadd.f32 %v402, %v573
    %v575 = vpop.f32.mrf.mxu0
    %576 = vmatprep.mubr.f32.mxu0 0.0
    %577 = vmatmul.mubr.f32.gmra.mxu0 %v441
    %v578 = vpop.f32.mrf.mxu0
    %v579 = vadd.f32 %v402, %v578
    %v580 = vpop.f32.mrf.mxu0
    %581 = vmatprep.mubr.f32.mxu0 0.0
    %582 = vmatmul.mubr.f32.gmra.mxu0 %v444
    %v583 = vpop.f32.mrf.mxu0
    %v584 = vadd.f32 %v402, %v583
    %v585 = vpop.f32.mrf.mxu0
    %586 = vmatprep.mubr.f32.mxu0 0.0
    %587 = vmatmul.mubr.f32.gmra.mxu0 %v447
    %v588 = vpop.f32.mrf.mxu0
    %v589 = vadd.f32 %v402, %v588
    %v590 = vpop.f32.mrf.mxu0
    %591 = vmatprep.mubr.f32.mxu0 0.0
    %592 = vmatmul.mubr.f32.gmra.mxu0 %v450
    %v593 = vpop.f32.mrf.mxu0
    %v594 = vadd.f32 %v402, %v593
    %v595 = vpop.f32.mrf.mxu0
    %596 = vdwg.mxu0
    %v597 = vmul.f32 %v519, %v519
    %v598 = vmul.f32 %v524, %v524
    %v599 = vmul.f32 %v529, %v529
    %v600 = vmul.f32 %v534, %v534
    %v601 = vmul.f32 %v539, %v539
    %v602 = vmul.f32 %v544, %v544
    %v603 = vmul.f32 %v549, %v549
    %v604 = vmul.f32 %v554, %v554
    %v605 = vmul.f32 %v559, %v559
    %v606 = vmul.f32 %v564, %v564
    %v607 = vmul.f32 %v569, %v569
    %v608 = vmul.f32 %v574, %v574
    %v609 = vmul.f32 %v579, %v579
    %v610 = vmul.f32 %v584, %v584
    %v611 = vmul.f32 %v589, %v589
    %v612 = vmul.f32 %v594, %v594
    %v613 = vsel %vm48, %v597, 0.0
    %614 = vadd.xlane.f32.xlu0 %v613
    %v615 = vpop.xlane.xlu0 %614
    %v616 = vsel %vm48, %v598, 0.0
    %617 = vadd.xlane.f32.xlu0 %v616
    %v618 = vpop.xlane.xlu0 %617
    %v619 = vsel %vm48, %v599, 0.0
    %620 = vadd.xlane.f32.xlu0 %v619
    %v621 = vpop.xlane.xlu0 %620
    %v622 = vsel %vm48, %v600, 0.0
    %623 = vadd.xlane.f32.xlu0 %v622
    %v624 = vpop.xlane.xlu0 %623
    %v625 = vsel %vm48, %v601, 0.0
    %626 = vadd.xlane.f32.xlu0 %v625
    %v627 = vpop.xlane.xlu0 %626
    %v628 = vsel %vm48, %v602, 0.0
    %629 = vadd.xlane.f32.xlu0 %v628
    %v630 = vpop.xlane.xlu0 %629
    %v631 = vsel %vm48, %v603, 0.0
    %632 = vadd.xlane.f32.xlu0 %v631
    %v633 = vpop.xlane.xlu0 %632
    %v634 = vsel %vm48, %v604, 0.0
    %635 = vadd.xlane.f32.xlu0 %v634
    %v636 = vpop.xlane.xlu0 %635
    %v637 = vsel %vm48, %v605, 0.0
    %638 = vadd.xlane.f32.xlu0 %v637
    %v639 = vpop.xlane.xlu0 %638
    %v640 = vsel %vm48, %v606, 0.0
    %641 = vadd.xlane.f32.xlu0 %v640
    %v642 = vpop.xlane.xlu0 %641
    %v643 = vsel %vm48, %v607, 0.0
    %644 = vadd.xlane.f32.xlu0 %v643
    %v645 = vpop.xlane.xlu0 %644
    %v646 = vsel %vm48, %v608, 0.0
    %647 = vadd.xlane.f32.xlu0 %v646
    %v648 = vpop.xlane.xlu0 %647
    %v649 = vsel %vm48, %v609, 0.0
    %650 = vadd.xlane.f32.xlu0 %v649
    %v651 = vpop.xlane.xlu0 %650
    %v652 = vsel %vm48, %v610, 0.0
    %653 = vadd.xlane.f32.xlu0 %v652
    %v654 = vpop.xlane.xlu0 %653
    %v655 = vsel %vm48, %v611, 0.0
    %656 = vadd.xlane.f32.xlu0 %v655
    %v657 = vpop.xlane.xlu0 %656
    %v658 = vsel %vm48, %v612, 0.0
    %659 = vadd.xlane.f32.xlu0 %v658
    %v660 = vpop.xlane.xlu0 %659
    %v661 = vmax.f32 %v615, 1e-24
    %v662 = vmax.f32 %v618, 1e-24
    %v663 = vmax.f32 %v621, 1e-24
    %v664 = vmax.f32 %v624, 1e-24
    %v665 = vmax.f32 %v627, 1e-24
    %v666 = vmax.f32 %v630, 1e-24
    %v667 = vmax.f32 %v633, 1e-24
    %v668 = vmax.f32 %v636, 1e-24
    %v669 = vmax.f32 %v639, 1e-24
    %v670 = vmax.f32 %v642, 1e-24
    %v671 = vmax.f32 %v645, 1e-24
    %v672 = vmax.f32 %v648, 1e-24
    %v673 = vmax.f32 %v651, 1e-24
    %v674 = vmax.f32 %v654, 1e-24
    %v675 = vmax.f32 %v657, 1e-24
    %v676 = vmax.f32 %v660, 1e-24
    %v677 = vrsqrt.pop %v661
    %v678 = vrsqrt.pop %v662
    %v679 = vrsqrt.pop %v663
    %v680 = vrsqrt.pop %v664
    %v681 = vrsqrt.pop %v665
    %v682 = vrsqrt.pop %v666
    %v683 = vrsqrt.pop %v667
    %v684 = vrsqrt.pop %v668
    %v685 = vrsqrt.pop %v669
    %v686 = vrsqrt.pop %v670
    %v687 = vrsqrt.pop %v671
    %v688 = vrsqrt.pop %v672
    %v689 = vrsqrt.pop %v673
    %v690 = vrsqrt.pop %v674
    %v691 = vrsqrt.pop %v675
    %v692 = vrsqrt.pop %v676
    %v693 = vmul.f32 %v519, %v677
    %v694 = vmul.f32 %v524, %v678
    %v695 = vmul.f32 %v529, %v679
    %v696 = vmul.f32 %v534, %v680
    %v697 = vmul.f32 %v539, %v681
    %v698 = vmul.f32 %v544, %v682
    %v699 = vmul.f32 %v549, %v683
    %v700 = vmul.f32 %v554, %v684
    %v701 = vmul.f32 %v559, %v685
    %v702 = vmul.f32 %v564, %v686
    %v703 = vmul.f32 %v569, %v687
    %v704 = vmul.f32 %v574, %v688
    %v705 = vmul.f32 %v579, %v689
    %v706 = vmul.f32 %v584, %v690
    %v707 = vmul.f32 %v589, %v691
    %v708 = vmul.f32 %v594, %v692
    %v709 = vmax.f32 %v693, 0.0
    %v710 = vmax.f32 %v694, 0.0
    %v711 = vmax.f32 %v695, 0.0
    %v712 = vmax.f32 %v696, 0.0
    %v713 = vmax.f32 %v697, 0.0
    %v714 = vmax.f32 %v698, 0.0
    %v715 = vmax.f32 %v699, 0.0
    %v716 = vmax.f32 %v700, 0.0
    %v717 = vmax.f32 %v701, 0.0
    %v718 = vmax.f32 %v702, 0.0
    %v719 = vmax.f32 %v703, 0.0
    %v720 = vmax.f32 %v704, 0.0
    %v721 = vmax.f32 %v705, 0.0
    %v722 = vmax.f32 %v706, 0.0
    %v723 = vmax.f32 %v707, 0.0
    %v724 = vmax.f32 %v708, 0.0
    %s725 = scalar_lea.vmem %s3, 32
    %v726 = vld [vmem:[%s725] sm:$0xff]
    %v727 = vld [vmem:[%s725 + $0x8] sm:$0xff]
    %v728 = vld [vmem:[%s725 + $0x10] sm:$0xff]
    %v729 = vld [vmem:[%s725 + $0x18] sm:$0xff]
    %v731 = vsel %vm48, %v709, 0
    %v734 = vsel %vm48, %v710, 0
    %v737 = vsel %vm48, %v711, 0
    %v740 = vsel %vm48, %v712, 0
    %v743 = vsel %vm48, %v713, 0
    %v746 = vsel %vm48, %v714, 0
    %v749 = vsel %vm48, %v715, 0
    %v752 = vsel %vm48, %v716, 0
    %v755 = vsel %vm48, %v717, 0
    %v758 = vsel %vm48, %v718, 0
    %v761 = vsel %vm48, %v719, 0
    %v764 = vsel %vm48, %v720, 0
    %v767 = vsel %vm48, %v721, 0
    %v770 = vsel %vm48, %v722, 0
    %v773 = vsel %vm48, %v723, 0
    %v776 = vsel %vm48, %v724, 0
    %778 = vmatprep.subr.mxu0 0.0
    %779 = vmatpush1.msra.mxu0 0.0
    %780 = vmatprep.subr.mxu0 0.0
    %781 = vmatpush1.msra.mxu0 0.0
    %782 = vmatprep.subr.mxu0 0.0
    %783 = vmatpush1.msra.mxu0 0.0
    %784 = vmatprep.subr.mxu0 0.0
    %785 = vmatpush1.msra.mxu0 0.0
    %786 = vmatprep.subr.mxu0 0.0
    %787 = vmatpush1.msra.mxu0 0.0
    %788 = vmatprep.subr.mxu0 0.0
    %789 = vmatpush1.msra.mxu0 0.0
    %790 = vmatprep.subr.mxu0 0.0
    %791 = vmatpush1.msra.mxu0 0.0
    %792 = vmatprep.subr.mxu0 0.0
    %793 = vmatpush1.msra.mxu0 0.0
    %794 = vmatprep.subr.mxu0 0.0
    %795 = vmatpush1.msra.mxu0 0.0
    %796 = vmatprep.subr.mxu0 0.0
    %797 = vmatpush1.msra.mxu0 0.0
    %798 = vmatprep.subr.mxu0 0.0
    %799 = vmatpush1.msra.mxu0 0.0
    %800 = vmatprep.subr.mxu0 0.0
    %801 = vmatpush1.msra.mxu0 0.0
    %802 = vmatprep.subr.mxu0 0.0
    %803 = vmatpush1.msra.mxu0 %v729
    %804 = vmatprep.subr.mxu0 0.0
    %805 = vmatpush1.msra.mxu0 %v728
    %806 = vmatprep.subr.mxu0 0.0
    %807 = vmatpush1.msra.mxu0 %v727
    %808 = vmatprep.subr.mxu0 0.0
    %809 = vmatpush1.msra.mxu0 %v726
    %810 = vmatprep.subr.mxu0 0.0
    %811 = vmatpush2.msra.mxu0 0.0
    %812 = vmatprep.subr.mxu0 0.0
    %813 = vmatpush2.msra.mxu0 0.0
    %814 = vmatprep.subr.mxu0 0.0
    %815 = vmatpush2.msra.mxu0 0.0
    %816 = vmatprep.subr.mxu0 0.0
    %817 = vmatpush2.msra.mxu0 0.0
    %818 = vmatprep.subr.mxu0 0.0
    %819 = vmatpush2.msra.mxu0 0.0
    %820 = vmatprep.subr.mxu0 0.0
    %821 = vmatpush2.msra.mxu0 0.0
    %822 = vmatprep.subr.mxu0 0.0
    %823 = vmatpush2.msra.mxu0 0.0
    %824 = vmatprep.subr.mxu0 0.0
    %825 = vmatpush2.msra.mxu0 0.0
    %826 = vmatprep.subr.mxu0 0.0
    %827 = vmatpush2.msra.mxu0 0.0
    %828 = vmatprep.subr.mxu0 0.0
    %829 = vmatpush2.msra.mxu0 0.0
    %830 = vmatprep.subr.mxu0 0.0
    %831 = vmatpush2.msra.mxu0 0.0
    %832 = vmatprep.subr.mxu0 0.0
    %833 = vmatpush2.msra.mxu0 0.0
    %834 = vmatprep.subr.mxu0 0.0
    %835 = vmatpush2.msra.mxu0 0.0
    %836 = vmatprep.subr.mxu0 0.0
    %837 = vmatpush2.msra.mxu0 0.0
    %838 = vmatprep.subr.mxu0 0.0
    %839 = vmatpush2.msra.mxu0 0.0
    %840 = vmatprep.subr.mxu0 0.0
    %841 = vmatpush2.msra.mxu0 0.0
    %842 = vmatprep.mubr.f32.mxu0 0.0
    %843 = vmatmul.mubr.f32.gmra.mxu0 %v731
    %v844 = vpop.f32.mrf.mxu0
    %v845 = vadd.f32 0.0, %v844
    %v846 = vpop.f32.mrf.mxu0
    %847 = vmatprep.mubr.f32.mxu0 0.0
    %848 = vmatmul.mubr.f32.gmra.mxu0 %v734
    %v849 = vpop.f32.mrf.mxu0
    %v850 = vadd.f32 0.0, %v849
    %v851 = vpop.f32.mrf.mxu0
    %852 = vmatprep.mubr.f32.mxu0 0.0
    %853 = vmatmul.mubr.f32.gmra.mxu0 %v737
    %v854 = vpop.f32.mrf.mxu0
    %v855 = vadd.f32 0.0, %v854
    %v856 = vpop.f32.mrf.mxu0
    %857 = vmatprep.mubr.f32.mxu0 0.0
    %858 = vmatmul.mubr.f32.gmra.mxu0 %v740
    %v859 = vpop.f32.mrf.mxu0
    %v860 = vadd.f32 0.0, %v859
    %v861 = vpop.f32.mrf.mxu0
    %862 = vmatprep.mubr.f32.mxu0 0.0
    %863 = vmatmul.mubr.f32.gmra.mxu0 %v743
    %v864 = vpop.f32.mrf.mxu0
    %v865 = vadd.f32 0.0, %v864
    %v866 = vpop.f32.mrf.mxu0
    %867 = vmatprep.mubr.f32.mxu0 0.0
    %868 = vmatmul.mubr.f32.gmra.mxu0 %v746
    %v869 = vpop.f32.mrf.mxu0
    %v870 = vadd.f32 0.0, %v869
    %v871 = vpop.f32.mrf.mxu0
    %872 = vmatprep.mubr.f32.mxu0 0.0
    %873 = vmatmul.mubr.f32.gmra.mxu0 %v749
    %v874 = vpop.f32.mrf.mxu0
    %v875 = vadd.f32 0.0, %v874
    %v876 = vpop.f32.mrf.mxu0
    %877 = vmatprep.mubr.f32.mxu0 0.0
    %878 = vmatmul.mubr.f32.gmra.mxu0 %v752
    %v879 = vpop.f32.mrf.mxu0
    %v880 = vadd.f32 0.0, %v879
    %v881 = vpop.f32.mrf.mxu0
    %882 = vmatprep.mubr.f32.mxu0 0.0
    %883 = vmatmul.mubr.f32.gmra.mxu0 %v755
    %v884 = vpop.f32.mrf.mxu0
    %v885 = vadd.f32 0.0, %v884
    %v886 = vpop.f32.mrf.mxu0
    %887 = vmatprep.mubr.f32.mxu0 0.0
    %888 = vmatmul.mubr.f32.gmra.mxu0 %v758
    %v889 = vpop.f32.mrf.mxu0
    %v890 = vadd.f32 0.0, %v889
    %v891 = vpop.f32.mrf.mxu0
    %892 = vmatprep.mubr.f32.mxu0 0.0
    %893 = vmatmul.mubr.f32.gmra.mxu0 %v761
    %v894 = vpop.f32.mrf.mxu0
    %v895 = vadd.f32 0.0, %v894
    %v896 = vpop.f32.mrf.mxu0
    %897 = vmatprep.mubr.f32.mxu0 0.0
    %898 = vmatmul.mubr.f32.gmra.mxu0 %v764
    %v899 = vpop.f32.mrf.mxu0
    %v900 = vadd.f32 0.0, %v899
    %v901 = vpop.f32.mrf.mxu0
    %902 = vmatprep.mubr.f32.mxu0 0.0
    %903 = vmatmul.mubr.f32.gmra.mxu0 %v767
    %v904 = vpop.f32.mrf.mxu0
    %v905 = vadd.f32 0.0, %v904
    %v906 = vpop.f32.mrf.mxu0
    %907 = vmatprep.mubr.f32.mxu0 0.0
    %908 = vmatmul.mubr.f32.gmra.mxu0 %v770
    %v909 = vpop.f32.mrf.mxu0
    %v910 = vadd.f32 0.0, %v909
    %v911 = vpop.f32.mrf.mxu0
    %912 = vmatprep.mubr.f32.mxu0 0.0
    %913 = vmatmul.mubr.f32.gmra.mxu0 %v773
    %v914 = vpop.f32.mrf.mxu0
    %v915 = vadd.f32 0.0, %v914
    %v916 = vpop.f32.mrf.mxu0
    %917 = vmatprep.mubr.f32.mxu0 0.0
    %918 = vmatmul.mubr.f32.gmra.mxu0 %v776
    %v919 = vpop.f32.mrf.mxu0
    %v920 = vadd.f32 0.0, %v919
    %v921 = vpop.f32.mrf.mxu0
    %922 = vdwg.mxu0
    %v924 = vsel %vm48, %v354, 0
    %v927 = vsel %vm48, %v355, 0
    %v930 = vsel %vm48, %v356, 0
    %v933 = vsel %vm48, %v357, 0
    %v936 = vsel %vm48, %v358, 0
    %v939 = vsel %vm48, %v359, 0
    %v942 = vsel %vm48, %v360, 0
    %v945 = vsel %vm48, %v361, 0
    %v948 = vsel %vm48, %v362, 0
    %v951 = vsel %vm48, %v363, 0
    %v954 = vsel %vm48, %v364, 0
    %v957 = vsel %vm48, %v365, 0
    %v960 = vsel %vm48, %v366, 0
    %v963 = vsel %vm48, %v367, 0
    %v966 = vsel %vm48, %v368, 0
    %v969 = vsel %vm48, %v369, 0
    %971 = vmatprep.subr.mxu0 0.0
    %972 = vmatpush1.msra.mxu0 0.0
    %973 = vmatprep.subr.mxu0 0.0
    %974 = vmatpush1.msra.mxu0 0.0
    %975 = vmatprep.subr.mxu0 0.0
    %976 = vmatpush1.msra.mxu0 0.0
    %977 = vmatprep.subr.mxu0 0.0
    %978 = vmatpush1.msra.mxu0 0.0
    %979 = vmatprep.subr.mxu0 0.0
    %980 = vmatpush1.msra.mxu0 0.0
    %981 = vmatprep.subr.mxu0 0.0
    %982 = vmatpush1.msra.mxu0 0.0
    %983 = vmatprep.subr.mxu0 0.0
    %984 = vmatpush1.msra.mxu0 0.0
    %985 = vmatprep.subr.mxu0 0.0
    %986 = vmatpush1.msra.mxu0 0.0
    %987 = vmatprep.subr.mxu0 0.0
    %988 = vmatpush1.msra.mxu0 0.0
    %989 = vmatprep.subr.mxu0 0.0
    %990 = vmatpush1.msra.mxu0 0.0
    %991 = vmatprep.subr.mxu0 0.0
    %992 = vmatpush1.msra.mxu0 0.0
    %993 = vmatprep.subr.mxu0 0.0
    %994 = vmatpush1.msra.mxu0 0.0
    %995 = vmatprep.subr.mxu0 0.0
    %996 = vmatpush1.msra.mxu0 %v373
    %997 = vmatprep.subr.mxu0 0.0
    %998 = vmatpush1.msra.mxu0 %v372
    %999 = vmatprep.subr.mxu0 0.0
    %1000 = vmatpush1.msra.mxu0 %v371
    %1001 = vmatprep.subr.mxu0 0.0
    %1002 = vmatpush1.msra.mxu0 %v370
    %1003 = vmatprep.subr.mxu0 0.0
    %1004 = vmatpush2.msra.mxu0 0.0
    %1005 = vmatprep.subr.mxu0 0.0
    %1006 = vmatpush2.msra.mxu0 0.0
    %1007 = vmatprep.subr.mxu0 0.0
    %1008 = vmatpush2.msra.mxu0 0.0
    %1009 = vmatprep.subr.mxu0 0.0
    %1010 = vmatpush2.msra.mxu0 0.0
    %1011 = vmatprep.subr.mxu0 0.0
    %1012 = vmatpush2.msra.mxu0 0.0
    %1013 = vmatprep.subr.mxu0 0.0
    %1014 = vmatpush2.msra.mxu0 0.0
    %1015 = vmatprep.subr.mxu0 0.0
    %1016 = vmatpush2.msra.mxu0 0.0
    %1017 = vmatprep.subr.mxu0 0.0
    %1018 = vmatpush2.msra.mxu0 0.0
    %1019 = vmatprep.subr.mxu0 0.0
    %1020 = vmatpush2.msra.mxu0 0.0
    %1021 = vmatprep.subr.mxu0 0.0
    %1022 = vmatpush2.msra.mxu0 0.0
    %1023 = vmatprep.subr.mxu0 0.0
    %1024 = vmatpush2.msra.mxu0 0.0
    %1025 = vmatprep.subr.mxu0 0.0
    %1026 = vmatpush2.msra.mxu0 0.0
    %1027 = vmatprep.subr.mxu0 0.0
    %1028 = vmatpush2.msra.mxu0 0.0
    %1029 = vmatprep.subr.mxu0 0.0
    %1030 = vmatpush2.msra.mxu0 0.0
    %1031 = vmatprep.subr.mxu0 0.0
    %1032 = vmatpush2.msra.mxu0 0.0
    %1033 = vmatprep.subr.mxu0 0.0
    %1034 = vmatpush2.msra.mxu0 0.0
    %1035 = vmatprep.mubr.f32.mxu0 0.0
    %1036 = vmatmul.mubr.f32.gmra.mxu0 %v924
    %v1037 = vpop.f32.mrf.mxu0
    %v1038 = vadd.f32 %v845, %v1037
    %v1039 = vpop.f32.mrf.mxu0
    %1040 = vmatprep.mubr.f32.mxu0 0.0
    %1041 = vmatmul.mubr.f32.gmra.mxu0 %v927
    %v1042 = vpop.f32.mrf.mxu0
    %v1043 = vadd.f32 %v850, %v1042
    %v1044 = vpop.f32.mrf.mxu0
    %1045 = vmatprep.mubr.f32.mxu0 0.0
    %1046 = vmatmul.mubr.f32.gmra.mxu0 %v930
    %v1047 = vpop.f32.mrf.mxu0
    %v1048 = vadd.f32 %v855, %v1047
    %v1049 = vpop.f32.mrf.mxu0
    %1050 = vmatprep.mubr.f32.mxu0 0.0
    %1051 = vmatmul.mubr.f32.gmra.mxu0 %v933
    %v1052 = vpop.f32.mrf.mxu0
    %v1053 = vadd.f32 %v860, %v1052
    %v1054 = vpop.f32.mrf.mxu0
    %1055 = vmatprep.mubr.f32.mxu0 0.0
    %1056 = vmatmul.mubr.f32.gmra.mxu0 %v936
    %v1057 = vpop.f32.mrf.mxu0
    %v1058 = vadd.f32 %v865, %v1057
    %v1059 = vpop.f32.mrf.mxu0
    %1060 = vmatprep.mubr.f32.mxu0 0.0
    %1061 = vmatmul.mubr.f32.gmra.mxu0 %v939
    %v1062 = vpop.f32.mrf.mxu0
    %v1063 = vadd.f32 %v870, %v1062
    %v1064 = vpop.f32.mrf.mxu0
    %1065 = vmatprep.mubr.f32.mxu0 0.0
    %1066 = vmatmul.mubr.f32.gmra.mxu0 %v942
    %v1067 = vpop.f32.mrf.mxu0
    %v1068 = vadd.f32 %v875, %v1067
    %v1069 = vpop.f32.mrf.mxu0
    %1070 = vmatprep.mubr.f32.mxu0 0.0
    %1071 = vmatmul.mubr.f32.gmra.mxu0 %v945
    %v1072 = vpop.f32.mrf.mxu0
    %v1073 = vadd.f32 %v880, %v1072
    %v1074 = vpop.f32.mrf.mxu0
    %1075 = vmatprep.mubr.f32.mxu0 0.0
    %1076 = vmatmul.mubr.f32.gmra.mxu0 %v948
    %v1077 = vpop.f32.mrf.mxu0
    %v1078 = vadd.f32 %v885, %v1077
    %v1079 = vpop.f32.mrf.mxu0
    %1080 = vmatprep.mubr.f32.mxu0 0.0
    %1081 = vmatmul.mubr.f32.gmra.mxu0 %v951
    %v1082 = vpop.f32.mrf.mxu0
    %v1083 = vadd.f32 %v890, %v1082
    %v1084 = vpop.f32.mrf.mxu0
    %1085 = vmatprep.mubr.f32.mxu0 0.0
    %1086 = vmatmul.mubr.f32.gmra.mxu0 %v954
    %v1087 = vpop.f32.mrf.mxu0
    %v1088 = vadd.f32 %v895, %v1087
    %v1089 = vpop.f32.mrf.mxu0
    %1090 = vmatprep.mubr.f32.mxu0 0.0
    %1091 = vmatmul.mubr.f32.gmra.mxu0 %v957
    %v1092 = vpop.f32.mrf.mxu0
    %v1093 = vadd.f32 %v900, %v1092
    %v1094 = vpop.f32.mrf.mxu0
    %1095 = vmatprep.mubr.f32.mxu0 0.0
    %1096 = vmatmul.mubr.f32.gmra.mxu0 %v960
    %v1097 = vpop.f32.mrf.mxu0
    %v1098 = vadd.f32 %v905, %v1097
    %v1099 = vpop.f32.mrf.mxu0
    %1100 = vmatprep.mubr.f32.mxu0 0.0
    %1101 = vmatmul.mubr.f32.gmra.mxu0 %v963
    %v1102 = vpop.f32.mrf.mxu0
    %v1103 = vadd.f32 %v910, %v1102
    %v1104 = vpop.f32.mrf.mxu0
    %1105 = vmatprep.mubr.f32.mxu0 0.0
    %1106 = vmatmul.mubr.f32.gmra.mxu0 %v966
    %v1107 = vpop.f32.mrf.mxu0
    %v1108 = vadd.f32 %v915, %v1107
    %v1109 = vpop.f32.mrf.mxu0
    %1110 = vmatprep.mubr.f32.mxu0 0.0
    %1111 = vmatmul.mubr.f32.gmra.mxu0 %v969
    %v1112 = vpop.f32.mrf.mxu0
    %v1113 = vadd.f32 %v920, %v1112
    %v1114 = vpop.f32.mrf.mxu0
    %1115 = vdwg.mxu0
    %s1116 = scalar_lea.vmem %s0, 256
    %v1117 = vld [vmem:[%s1116] sm:$0xff]
    %v1118 = vld [vmem:[%s1116 + $0x8] sm:$0xff]
    %v1119 = vld [vmem:[%s1116 + $0x10] sm:$0xff]
    %v1120 = vld [vmem:[%s1116 + $0x18] sm:$0xff]
    %v1121 = vld [vmem:[%s1116 + $0x20] sm:$0xff]
    %v1122 = vld [vmem:[%s1116 + $0x28] sm:$0xff]
    %v1123 = vld [vmem:[%s1116 + $0x30] sm:$0xff]
    %v1124 = vld [vmem:[%s1116 + $0x38] sm:$0xff]
    %v1125 = vld [vmem:[%s1116 + $0x40] sm:$0xff]
    %v1126 = vld [vmem:[%s1116 + $0x48] sm:$0xff]
    %v1127 = vld [vmem:[%s1116 + $0x50] sm:$0xff]
    %v1128 = vld [vmem:[%s1116 + $0x58] sm:$0xff]
    %v1129 = vld [vmem:[%s1116 + $0x60] sm:$0xff]
    %v1130 = vld [vmem:[%s1116 + $0x68] sm:$0xff]
    %v1131 = vld [vmem:[%s1116 + $0x70] sm:$0xff]
    %v1132 = vld [vmem:[%s1116 + $0x78] sm:$0xff]
    %s1133 = scalar_lea.vmem %s1, 64
    %v1134 = vld [vmem:[%s1133] sm:$0xff]
    %v1135 = vld [vmem:[%s1133 + $0x8] sm:$0xff]
    %v1136 = vld [vmem:[%s1133 + $0x10] sm:$0xff]
    %v1137 = vld [vmem:[%s1133 + $0x18] sm:$0xff]
    %s1138 = scalar_lea.vmem %s2, 2
    %v1139 = vld [vmem:[%s1138] sm:$0x1]
    %v1141 = vlaneseq
    %v1142 = vshrl.u32 %v1141, 7
    %v1143 = vsub.s32 0, %v1142
    %v1144 = vrot.slane %v1139, %v1143
    %v1147 = vsel %vm48, %v1117, 0
    %v1150 = vsel %vm48, %v1118, 0
    %v1153 = vsel %vm48, %v1119, 0
    %v1156 = vsel %vm48, %v1120, 0
    %v1159 = vsel %vm48, %v1121, 0
    %v1162 = vsel %vm48, %v1122, 0
    %v1165 = vsel %vm48, %v1123, 0
    %v1168 = vsel %vm48, %v1124, 0
    %v1171 = vsel %vm48, %v1125, 0
    %v1174 = vsel %vm48, %v1126, 0
    %v1177 = vsel %vm48, %v1127, 0
    %v1180 = vsel %vm48, %v1128, 0
    %v1183 = vsel %vm48, %v1129, 0
    %v1186 = vsel %vm48, %v1130, 0
    %v1189 = vsel %vm48, %v1131, 0
    %v1192 = vsel %vm48, %v1132, 0
    %1194 = vmatprep.subr.mxu0 0.0
    %1195 = vmatpush1.msra.mxu0 0.0
    %1196 = vmatprep.subr.mxu0 0.0
    %1197 = vmatpush1.msra.mxu0 0.0
    %1198 = vmatprep.subr.mxu0 0.0
    %1199 = vmatpush1.msra.mxu0 0.0
    %1200 = vmatprep.subr.mxu0 0.0
    %1201 = vmatpush1.msra.mxu0 0.0
    %1202 = vmatprep.subr.mxu0 0.0
    %1203 = vmatpush1.msra.mxu0 0.0
    %1204 = vmatprep.subr.mxu0 0.0
    %1205 = vmatpush1.msra.mxu0 0.0
    %1206 = vmatprep.subr.mxu0 0.0
    %1207 = vmatpush1.msra.mxu0 0.0
    %1208 = vmatprep.subr.mxu0 0.0
    %1209 = vmatpush1.msra.mxu0 0.0
    %1210 = vmatprep.subr.mxu0 0.0
    %1211 = vmatpush1.msra.mxu0 0.0
    %1212 = vmatprep.subr.mxu0 0.0
    %1213 = vmatpush1.msra.mxu0 0.0
    %1214 = vmatprep.subr.mxu0 0.0
    %1215 = vmatpush1.msra.mxu0 0.0
    %1216 = vmatprep.subr.mxu0 0.0
    %1217 = vmatpush1.msra.mxu0 0.0
    %1218 = vmatprep.subr.mxu0 0.0
    %1219 = vmatpush1.msra.mxu0 %v1137
    %1220 = vmatprep.subr.mxu0 0.0
    %1221 = vmatpush1.msra.mxu0 %v1136
    %1222 = vmatprep.subr.mxu0 0.0
    %1223 = vmatpush1.msra.mxu0 %v1135
    %1224 = vmatprep.subr.mxu0 0.0
    %1225 = vmatpush1.msra.mxu0 %v1134
    %1226 = vmatprep.subr.mxu0 0.0
    %1227 = vmatpush2.msra.mxu0 0.0
    %1228 = vmatprep.subr.mxu0 0.0
    %1229 = vmatpush2.msra.mxu0 0.0
    %1230 = vmatprep.subr.mxu0 0.0
    %1231 = vmatpush2.msra.mxu0 0.0
    %1232 = vmatprep.subr.mxu0 0.0
    %1233 = vmatpush2.msra.mxu0 0.0
    %1234 = vmatprep.subr.mxu0 0.0
    %1235 = vmatpush2.msra.mxu0 0.0
    %1236 = vmatprep.subr.mxu0 0.0
    %1237 = vmatpush2.msra.mxu0 0.0
    %1238 = vmatprep.subr.mxu0 0.0
    %1239 = vmatpush2.msra.mxu0 0.0
    %1240 = vmatprep.subr.mxu0 0.0
    %1241 = vmatpush2.msra.mxu0 0.0
    %1242 = vmatprep.subr.mxu0 0.0
    %1243 = vmatpush2.msra.mxu0 0.0
    %1244 = vmatprep.subr.mxu0 0.0
    %1245 = vmatpush2.msra.mxu0 0.0
    %1246 = vmatprep.subr.mxu0 0.0
    %1247 = vmatpush2.msra.mxu0 0.0
    %1248 = vmatprep.subr.mxu0 0.0
    %1249 = vmatpush2.msra.mxu0 0.0
    %1250 = vmatprep.subr.mxu0 0.0
    %1251 = vmatpush2.msra.mxu0 0.0
    %1252 = vmatprep.subr.mxu0 0.0
    %1253 = vmatpush2.msra.mxu0 0.0
    %1254 = vmatprep.subr.mxu0 0.0
    %1255 = vmatpush2.msra.mxu0 0.0
    %1256 = vmatprep.subr.mxu0 0.0
    %1257 = vmatpush2.msra.mxu0 0.0
    %1258 = vmatprep.mubr.f32.mxu0 0.0
    %1259 = vmatmul.mubr.f32.gmra.mxu0 %v1147
    %v1260 = vpop.f32.mrf.mxu0
    %v1261 = vadd.f32 %v1144, %v1260
    %v1262 = vpop.f32.mrf.mxu0
    %1263 = vmatprep.mubr.f32.mxu0 0.0
    %1264 = vmatmul.mubr.f32.gmra.mxu0 %v1150
    %v1265 = vpop.f32.mrf.mxu0
    %v1266 = vadd.f32 %v1144, %v1265
    %v1267 = vpop.f32.mrf.mxu0
    %1268 = vmatprep.mubr.f32.mxu0 0.0
    %1269 = vmatmul.mubr.f32.gmra.mxu0 %v1153
    %v1270 = vpop.f32.mrf.mxu0
    %v1271 = vadd.f32 %v1144, %v1270
    %v1272 = vpop.f32.mrf.mxu0
    %1273 = vmatprep.mubr.f32.mxu0 0.0
    %1274 = vmatmul.mubr.f32.gmra.mxu0 %v1156
    %v1275 = vpop.f32.mrf.mxu0
    %v1276 = vadd.f32 %v1144, %v1275
    %v1277 = vpop.f32.mrf.mxu0
    %1278 = vmatprep.mubr.f32.mxu0 0.0
    %1279 = vmatmul.mubr.f32.gmra.mxu0 %v1159
    %v1280 = vpop.f32.mrf.mxu0
    %v1281 = vadd.f32 %v1144, %v1280
    %v1282 = vpop.f32.mrf.mxu0
    %1283 = vmatprep.mubr.f32.mxu0 0.0
    %1284 = vmatmul.mubr.f32.gmra.mxu0 %v1162
    %v1285 = vpop.f32.mrf.mxu0
    %v1286 = vadd.f32 %v1144, %v1285
    %v1287 = vpop.f32.mrf.mxu0
    %1288 = vmatprep.mubr.f32.mxu0 0.0
    %1289 = vmatmul.mubr.f32.gmra.mxu0 %v1165
    %v1290 = vpop.f32.mrf.mxu0
    %v1291 = vadd.f32 %v1144, %v1290
    %v1292 = vpop.f32.mrf.mxu0
    %1293 = vmatprep.mubr.f32.mxu0 0.0
    %1294 = vmatmul.mubr.f32.gmra.mxu0 %v1168
    %v1295 = vpop.f32.mrf.mxu0
    %v1296 = vadd.f32 %v1144, %v1295
    %v1297 = vpop.f32.mrf.mxu0
    %1298 = vmatprep.mubr.f32.mxu0 0.0
    %1299 = vmatmul.mubr.f32.gmra.mxu0 %v1171
    %v1300 = vpop.f32.mrf.mxu0
    %v1301 = vadd.f32 %v1144, %v1300
    %v1302 = vpop.f32.mrf.mxu0
    %1303 = vmatprep.mubr.f32.mxu0 0.0
    %1304 = vmatmul.mubr.f32.gmra.mxu0 %v1174
    %v1305 = vpop.f32.mrf.mxu0
    %v1306 = vadd.f32 %v1144, %v1305
    %v1307 = vpop.f32.mrf.mxu0
    %1308 = vmatprep.mubr.f32.mxu0 0.0
    %1309 = vmatmul.mubr.f32.gmra.mxu0 %v1177
    %v1310 = vpop.f32.mrf.mxu0
    %v1311 = vadd.f32 %v1144, %v1310
    %v1312 = vpop.f32.mrf.mxu0
    %1313 = vmatprep.mubr.f32.mxu0 0.0
    %1314 = vmatmul.mubr.f32.gmra.mxu0 %v1180
    %v1315 = vpop.f32.mrf.mxu0
    %v1316 = vadd.f32 %v1144, %v1315
    %v1317 = vpop.f32.mrf.mxu0
    %1318 = vmatprep.mubr.f32.mxu0 0.0
    %1319 = vmatmul.mubr.f32.gmra.mxu0 %v1183
    %v1320 = vpop.f32.mrf.mxu0
    %v1321 = vadd.f32 %v1144, %v1320
    %v1322 = vpop.f32.mrf.mxu0
    %1323 = vmatprep.mubr.f32.mxu0 0.0
    %1324 = vmatmul.mubr.f32.gmra.mxu0 %v1186
    %v1325 = vpop.f32.mrf.mxu0
    %v1326 = vadd.f32 %v1144, %v1325
    %v1327 = vpop.f32.mrf.mxu0
    %1328 = vmatprep.mubr.f32.mxu0 0.0
    %1329 = vmatmul.mubr.f32.gmra.mxu0 %v1189
    %v1330 = vpop.f32.mrf.mxu0
    %v1331 = vadd.f32 %v1144, %v1330
    %v1332 = vpop.f32.mrf.mxu0
    %1333 = vmatprep.mubr.f32.mxu0 0.0
    %1334 = vmatmul.mubr.f32.gmra.mxu0 %v1192
    %v1335 = vpop.f32.mrf.mxu0
    %v1336 = vadd.f32 %v1144, %v1335
    %v1337 = vpop.f32.mrf.mxu0
    %1338 = vdwg.mxu0
    %v1339 = vmul.f32 %v1261, %v1261
    %v1340 = vmul.f32 %v1266, %v1266
    %v1341 = vmul.f32 %v1271, %v1271
    %v1342 = vmul.f32 %v1276, %v1276
    %v1343 = vmul.f32 %v1281, %v1281
    %v1344 = vmul.f32 %v1286, %v1286
    %v1345 = vmul.f32 %v1291, %v1291
    %v1346 = vmul.f32 %v1296, %v1296
    %v1347 = vmul.f32 %v1301, %v1301
    %v1348 = vmul.f32 %v1306, %v1306
    %v1349 = vmul.f32 %v1311, %v1311
    %v1350 = vmul.f32 %v1316, %v1316
    %v1351 = vmul.f32 %v1321, %v1321
    %v1352 = vmul.f32 %v1326, %v1326
    %v1353 = vmul.f32 %v1331, %v1331
    %v1354 = vmul.f32 %v1336, %v1336
    %v1355 = vsel %vm48, %v1339, 0.0
    %1356 = vadd.xlane.f32.xlu0 %v1355
    %v1357 = vpop.xlane.xlu0 %1356
    %v1358 = vsel %vm48, %v1340, 0.0
    %1359 = vadd.xlane.f32.xlu0 %v1358
    %v1360 = vpop.xlane.xlu0 %1359
    %v1361 = vsel %vm48, %v1341, 0.0
    %1362 = vadd.xlane.f32.xlu0 %v1361
    %v1363 = vpop.xlane.xlu0 %1362
    %v1364 = vsel %vm48, %v1342, 0.0
    %1365 = vadd.xlane.f32.xlu0 %v1364
    %v1366 = vpop.xlane.xlu0 %1365
    %v1367 = vsel %vm48, %v1343, 0.0
    %1368 = vadd.xlane.f32.xlu0 %v1367
    %v1369 = vpop.xlane.xlu0 %1368
    %v1370 = vsel %vm48, %v1344, 0.0
    %1371 = vadd.xlane.f32.xlu0 %v1370
    %v1372 = vpop.xlane.xlu0 %1371
    %v1373 = vsel %vm48, %v1345, 0.0
    %1374 = vadd.xlane.f32.xlu0 %v1373
    %v1375 = vpop.xlane.xlu0 %1374
    %v1376 = vsel %vm48, %v1346, 0.0
    %1377 = vadd.xlane.f32.xlu0 %v1376
    %v1378 = vpop.xlane.xlu0 %1377
    %v1379 = vsel %vm48, %v1347, 0.0
    %1380 = vadd.xlane.f32.xlu0 %v1379
    %v1381 = vpop.xlane.xlu0 %1380
    %v1382 = vsel %vm48, %v1348, 0.0
    %1383 = vadd.xlane.f32.xlu0 %v1382
    %v1384 = vpop.xlane.xlu0 %1383
    %v1385 = vsel %vm48, %v1349, 0.0
    %1386 = vadd.xlane.f32.xlu0 %v1385
    %v1387 = vpop.xlane.xlu0 %1386
    %v1388 = vsel %vm48, %v1350, 0.0
    %1389 = vadd.xlane.f32.xlu0 %v1388
    %v1390 = vpop.xlane.xlu0 %1389
    %v1391 = vsel %vm48, %v1351, 0.0
    %1392 = vadd.xlane.f32.xlu0 %v1391
    %v1393 = vpop.xlane.xlu0 %1392
    %v1394 = vsel %vm48, %v1352, 0.0
    %1395 = vadd.xlane.f32.xlu0 %v1394
    %v1396 = vpop.xlane.xlu0 %1395
    %v1397 = vsel %vm48, %v1353, 0.0
    %1398 = vadd.xlane.f32.xlu0 %v1397
    %v1399 = vpop.xlane.xlu0 %1398
    %v1400 = vsel %vm48, %v1354, 0.0
    %1401 = vadd.xlane.f32.xlu0 %v1400
    %v1402 = vpop.xlane.xlu0 %1401
    %v1403 = vmax.f32 %v1357, 1e-24
    %v1404 = vmax.f32 %v1360, 1e-24
    %v1405 = vmax.f32 %v1363, 1e-24
    %v1406 = vmax.f32 %v1366, 1e-24
    %v1407 = vmax.f32 %v1369, 1e-24
    %v1408 = vmax.f32 %v1372, 1e-24
    %v1409 = vmax.f32 %v1375, 1e-24
    %v1410 = vmax.f32 %v1378, 1e-24
    %v1411 = vmax.f32 %v1381, 1e-24
    %v1412 = vmax.f32 %v1384, 1e-24
    %v1413 = vmax.f32 %v1387, 1e-24
    %v1414 = vmax.f32 %v1390, 1e-24
    %v1415 = vmax.f32 %v1393, 1e-24
    %v1416 = vmax.f32 %v1396, 1e-24
    %v1417 = vmax.f32 %v1399, 1e-24
    %v1418 = vmax.f32 %v1402, 1e-24
    %v1419 = vrsqrt.pop %v1403
    %v1420 = vrsqrt.pop %v1404
    %v1421 = vrsqrt.pop %v1405
    %v1422 = vrsqrt.pop %v1406
    %v1423 = vrsqrt.pop %v1407
    %v1424 = vrsqrt.pop %v1408
    %v1425 = vrsqrt.pop %v1409
    %v1426 = vrsqrt.pop %v1410
    %v1427 = vrsqrt.pop %v1411
    %v1428 = vrsqrt.pop %v1412
    %v1429 = vrsqrt.pop %v1413
    %v1430 = vrsqrt.pop %v1414
    %v1431 = vrsqrt.pop %v1415
    %v1432 = vrsqrt.pop %v1416
    %v1433 = vrsqrt.pop %v1417
    %v1434 = vrsqrt.pop %v1418
    %v1435 = vmul.f32 %v1261, %v1419
    %v1436 = vmul.f32 %v1266, %v1420
    %v1437 = vmul.f32 %v1271, %v1421
    %v1438 = vmul.f32 %v1276, %v1422
    %v1439 = vmul.f32 %v1281, %v1423
    %v1440 = vmul.f32 %v1286, %v1424
    %v1441 = vmul.f32 %v1291, %v1425
    %v1442 = vmul.f32 %v1296, %v1426
    %v1443 = vmul.f32 %v1301, %v1427
    %v1444 = vmul.f32 %v1306, %v1428
    %v1445 = vmul.f32 %v1311, %v1429
    %v1446 = vmul.f32 %v1316, %v1430
    %v1447 = vmul.f32 %v1321, %v1431
    %v1448 = vmul.f32 %v1326, %v1432
    %v1449 = vmul.f32 %v1331, %v1433
    %v1450 = vmul.f32 %v1336, %v1434
    %v1451 = vmax.f32 %v1435, 0.0
    %v1452 = vmax.f32 %v1436, 0.0
    %v1453 = vmax.f32 %v1437, 0.0
    %v1454 = vmax.f32 %v1438, 0.0
    %v1455 = vmax.f32 %v1439, 0.0
    %v1456 = vmax.f32 %v1440, 0.0
    %v1457 = vmax.f32 %v1441, 0.0
    %v1458 = vmax.f32 %v1442, 0.0
    %v1459 = vmax.f32 %v1443, 0.0
    %v1460 = vmax.f32 %v1444, 0.0
    %v1461 = vmax.f32 %v1445, 0.0
    %v1462 = vmax.f32 %v1446, 0.0
    %v1463 = vmax.f32 %v1447, 0.0
    %v1464 = vmax.f32 %v1448, 0.0
    %v1465 = vmax.f32 %v1449, 0.0
    %v1466 = vmax.f32 %v1450, 0.0
    %s1467 = scalar_lea.vmem %s3, 64
    %v1468 = vld [vmem:[%s1467] sm:$0xff]
    %v1469 = vld [vmem:[%s1467 + $0x8] sm:$0xff]
    %v1470 = vld [vmem:[%s1467 + $0x10] sm:$0xff]
    %v1471 = vld [vmem:[%s1467 + $0x18] sm:$0xff]
    %v1473 = vsel %vm48, %v1451, 0
    %v1476 = vsel %vm48, %v1452, 0
    %v1479 = vsel %vm48, %v1453, 0
    %v1482 = vsel %vm48, %v1454, 0
    %v1485 = vsel %vm48, %v1455, 0
    %v1488 = vsel %vm48, %v1456, 0
    %v1491 = vsel %vm48, %v1457, 0
    %v1494 = vsel %vm48, %v1458, 0
    %v1497 = vsel %vm48, %v1459, 0
    %v1500 = vsel %vm48, %v1460, 0
    %v1503 = vsel %vm48, %v1461, 0
    %v1506 = vsel %vm48, %v1462, 0
    %v1509 = vsel %vm48, %v1463, 0
    %v1512 = vsel %vm48, %v1464, 0
    %v1515 = vsel %vm48, %v1465, 0
    %v1518 = vsel %vm48, %v1466, 0
    %1520 = vmatprep.subr.mxu0 0.0
    %1521 = vmatpush1.msra.mxu0 0.0
    %1522 = vmatprep.subr.mxu0 0.0
    %1523 = vmatpush1.msra.mxu0 0.0
    %1524 = vmatprep.subr.mxu0 0.0
    %1525 = vmatpush1.msra.mxu0 0.0
    %1526 = vmatprep.subr.mxu0 0.0
    %1527 = vmatpush1.msra.mxu0 0.0
    %1528 = vmatprep.subr.mxu0 0.0
    %1529 = vmatpush1.msra.mxu0 0.0
    %1530 = vmatprep.subr.mxu0 0.0
    %1531 = vmatpush1.msra.mxu0 0.0
    %1532 = vmatprep.subr.mxu0 0.0
    %1533 = vmatpush1.msra.mxu0 0.0
    %1534 = vmatprep.subr.mxu0 0.0
    %1535 = vmatpush1.msra.mxu0 0.0
    %1536 = vmatprep.subr.mxu0 0.0
    %1537 = vmatpush1.msra.mxu0 0.0
    %1538 = vmatprep.subr.mxu0 0.0
    %1539 = vmatpush1.msra.mxu0 0.0
    %1540 = vmatprep.subr.mxu0 0.0
    %1541 = vmatpush1.msra.mxu0 0.0
    %1542 = vmatprep.subr.mxu0 0.0
    %1543 = vmatpush1.msra.mxu0 0.0
    %1544 = vmatprep.subr.mxu0 0.0
    %1545 = vmatpush1.msra.mxu0 %v1471
    %1546 = vmatprep.subr.mxu0 0.0
    %1547 = vmatpush1.msra.mxu0 %v1470
    %1548 = vmatprep.subr.mxu0 0.0
    %1549 = vmatpush1.msra.mxu0 %v1469
    %1550 = vmatprep.subr.mxu0 0.0
    %1551 = vmatpush1.msra.mxu0 %v1468
    %1552 = vmatprep.subr.mxu0 0.0
    %1553 = vmatpush2.msra.mxu0 0.0
    %1554 = vmatprep.subr.mxu0 0.0
    %1555 = vmatpush2.msra.mxu0 0.0
    %1556 = vmatprep.subr.mxu0 0.0
    %1557 = vmatpush2.msra.mxu0 0.0
    %1558 = vmatprep.subr.mxu0 0.0
    %1559 = vmatpush2.msra.mxu0 0.0
    %1560 = vmatprep.subr.mxu0 0.0
    %1561 = vmatpush2.msra.mxu0 0.0
    %1562 = vmatprep.subr.mxu0 0.0
    %1563 = vmatpush2.msra.mxu0 0.0
    %1564 = vmatprep.subr.mxu0 0.0
    %1565 = vmatpush2.msra.mxu0 0.0
    %1566 = vmatprep.subr.mxu0 0.0
    %1567 = vmatpush2.msra.mxu0 0.0
    %1568 = vmatprep.subr.mxu0 0.0
    %1569 = vmatpush2.msra.mxu0 0.0
    %1570 = vmatprep.subr.mxu0 0.0
    %1571 = vmatpush2.msra.mxu0 0.0
    %1572 = vmatprep.subr.mxu0 0.0
    %1573 = vmatpush2.msra.mxu0 0.0
    %1574 = vmatprep.subr.mxu0 0.0
    %1575 = vmatpush2.msra.mxu0 0.0
    %1576 = vmatprep.subr.mxu0 0.0
    %1577 = vmatpush2.msra.mxu0 0.0
    %1578 = vmatprep.subr.mxu0 0.0
    %1579 = vmatpush2.msra.mxu0 0.0
    %1580 = vmatprep.subr.mxu0 0.0
    %1581 = vmatpush2.msra.mxu0 0.0
    %1582 = vmatprep.subr.mxu0 0.0
    %1583 = vmatpush2.msra.mxu0 0.0
    %1584 = vmatprep.mubr.f32.mxu0 0.0
    %1585 = vmatmul.mubr.f32.gmra.mxu0 %v1473
    %v1586 = vpop.f32.mrf.mxu0
    %v1587 = vadd.f32 0.0, %v1586
    %v1588 = vpop.f32.mrf.mxu0
    %1589 = vmatprep.mubr.f32.mxu0 0.0
    %1590 = vmatmul.mubr.f32.gmra.mxu0 %v1476
    %v1591 = vpop.f32.mrf.mxu0
    %v1592 = vadd.f32 0.0, %v1591
    %v1593 = vpop.f32.mrf.mxu0
    %1594 = vmatprep.mubr.f32.mxu0 0.0
    %1595 = vmatmul.mubr.f32.gmra.mxu0 %v1479
    %v1596 = vpop.f32.mrf.mxu0
    %v1597 = vadd.f32 0.0, %v1596
    %v1598 = vpop.f32.mrf.mxu0
    %1599 = vmatprep.mubr.f32.mxu0 0.0
    %1600 = vmatmul.mubr.f32.gmra.mxu0 %v1482
    %v1601 = vpop.f32.mrf.mxu0
    %v1602 = vadd.f32 0.0, %v1601
    %v1603 = vpop.f32.mrf.mxu0
    %1604 = vmatprep.mubr.f32.mxu0 0.0
    %1605 = vmatmul.mubr.f32.gmra.mxu0 %v1485
    %v1606 = vpop.f32.mrf.mxu0
    %v1607 = vadd.f32 0.0, %v1606
    %v1608 = vpop.f32.mrf.mxu0
    %1609 = vmatprep.mubr.f32.mxu0 0.0
    %1610 = vmatmul.mubr.f32.gmra.mxu0 %v1488
    %v1611 = vpop.f32.mrf.mxu0
    %v1612 = vadd.f32 0.0, %v1611
    %v1613 = vpop.f32.mrf.mxu0
    %1614 = vmatprep.mubr.f32.mxu0 0.0
    %1615 = vmatmul.mubr.f32.gmra.mxu0 %v1491
    %v1616 = vpop.f32.mrf.mxu0
    %v1617 = vadd.f32 0.0, %v1616
    %v1618 = vpop.f32.mrf.mxu0
    %1619 = vmatprep.mubr.f32.mxu0 0.0
    %1620 = vmatmul.mubr.f32.gmra.mxu0 %v1494
    %v1621 = vpop.f32.mrf.mxu0
    %v1622 = vadd.f32 0.0, %v1621
    %v1623 = vpop.f32.mrf.mxu0
    %1624 = vmatprep.mubr.f32.mxu0 0.0
    %1625 = vmatmul.mubr.f32.gmra.mxu0 %v1497
    %v1626 = vpop.f32.mrf.mxu0
    %v1627 = vadd.f32 0.0, %v1626
    %v1628 = vpop.f32.mrf.mxu0
    %1629 = vmatprep.mubr.f32.mxu0 0.0
    %1630 = vmatmul.mubr.f32.gmra.mxu0 %v1500
    %v1631 = vpop.f32.mrf.mxu0
    %v1632 = vadd.f32 0.0, %v1631
    %v1633 = vpop.f32.mrf.mxu0
    %1634 = vmatprep.mubr.f32.mxu0 0.0
    %1635 = vmatmul.mubr.f32.gmra.mxu0 %v1503
    %v1636 = vpop.f32.mrf.mxu0
    %v1637 = vadd.f32 0.0, %v1636
    %v1638 = vpop.f32.mrf.mxu0
    %1639 = vmatprep.mubr.f32.mxu0 0.0
    %1640 = vmatmul.mubr.f32.gmra.mxu0 %v1506
    %v1641 = vpop.f32.mrf.mxu0
    %v1642 = vadd.f32 0.0, %v1641
    %v1643 = vpop.f32.mrf.mxu0
    %1644 = vmatprep.mubr.f32.mxu0 0.0
    %1645 = vmatmul.mubr.f32.gmra.mxu0 %v1509
    %v1646 = vpop.f32.mrf.mxu0
    %v1647 = vadd.f32 0.0, %v1646
    %v1648 = vpop.f32.mrf.mxu0
    %1649 = vmatprep.mubr.f32.mxu0 0.0
    %1650 = vmatmul.mubr.f32.gmra.mxu0 %v1512
    %v1651 = vpop.f32.mrf.mxu0
    %v1652 = vadd.f32 0.0, %v1651
    %v1653 = vpop.f32.mrf.mxu0
    %1654 = vmatprep.mubr.f32.mxu0 0.0
    %1655 = vmatmul.mubr.f32.gmra.mxu0 %v1515
    %v1656 = vpop.f32.mrf.mxu0
    %v1657 = vadd.f32 0.0, %v1656
    %v1658 = vpop.f32.mrf.mxu0
    %1659 = vmatprep.mubr.f32.mxu0 0.0
    %1660 = vmatmul.mubr.f32.gmra.mxu0 %v1518
    %v1661 = vpop.f32.mrf.mxu0
    %v1662 = vadd.f32 0.0, %v1661
    %v1663 = vpop.f32.mrf.mxu0
    %1664 = vdwg.mxu0
    %v1665 = vadd.f32 %v1038, %v1587
    %v1666 = vadd.f32 %v1043, %v1592
    %v1667 = vadd.f32 %v1048, %v1597
    %v1668 = vadd.f32 %v1053, %v1602
    %v1669 = vadd.f32 %v1058, %v1607
    %v1670 = vadd.f32 %v1063, %v1612
    %v1671 = vadd.f32 %v1068, %v1617
    %v1672 = vadd.f32 %v1073, %v1622
    %v1673 = vadd.f32 %v1078, %v1627
    %v1674 = vadd.f32 %v1083, %v1632
    %v1675 = vadd.f32 %v1088, %v1637
    %v1676 = vadd.f32 %v1093, %v1642
    %v1677 = vadd.f32 %v1098, %v1647
    %v1678 = vadd.f32 %v1103, %v1652
    %v1679 = vadd.f32 %v1108, %v1657
    %v1680 = vadd.f32 %v1113, %v1662
    %v1681 = vld [vmem:[%s4] sm:$0x1]
    %v1683 = vlaneseq
    %v1684 = vshrl.u32 %v1683, 7
    %v1685 = vsub.s32 0, %v1684
    %v1686 = vrot.slane %v1681, %v1685
    %v1688 = vadd.f32 %v1665, %v1686
    %v1689 = vadd.f32 %v1666, %v1686
    %v1690 = vadd.f32 %v1667, %v1686
    %v1691 = vadd.f32 %v1668, %v1686
    %v1692 = vadd.f32 %v1669, %v1686
    %v1693 = vadd.f32 %v1670, %v1686
    %v1694 = vadd.f32 %v1671, %v1686
    %v1695 = vadd.f32 %v1672, %v1686
    %v1696 = vadd.f32 %v1673, %v1686
    %v1697 = vadd.f32 %v1674, %v1686
    %v1698 = vadd.f32 %v1675, %v1686
    %v1699 = vadd.f32 %v1676, %v1686
    %v1700 = vadd.f32 %v1677, %v1686
    %v1701 = vadd.f32 %v1678, %v1686
    %v1702 = vadd.f32 %v1679, %v1686
    %v1703 = vadd.f32 %v1680, %v1686
    %1704 = vmax.xlane.f32.xlu0 %v1688
    %v1705 = vpop.xlane.xlu0 %1704
    %1706 = vmax.xlane.f32.xlu0 %v1689
    %v1707 = vpop.xlane.xlu0 %1706
    %1708 = vmax.xlane.f32.xlu0 %v1690
    %v1709 = vpop.xlane.xlu0 %1708
    %1710 = vmax.xlane.f32.xlu0 %v1691
    %v1711 = vpop.xlane.xlu0 %1710
    %1712 = vmax.xlane.f32.xlu0 %v1692
    %v1713 = vpop.xlane.xlu0 %1712
    %1714 = vmax.xlane.f32.xlu0 %v1693
    %v1715 = vpop.xlane.xlu0 %1714
    %1716 = vmax.xlane.f32.xlu0 %v1694
    %v1717 = vpop.xlane.xlu0 %1716
    %1718 = vmax.xlane.f32.xlu0 %v1695
    %v1719 = vpop.xlane.xlu0 %1718
    %1720 = vmax.xlane.f32.xlu0 %v1696
    %v1721 = vpop.xlane.xlu0 %1720
    %1722 = vmax.xlane.f32.xlu0 %v1697
    %v1723 = vpop.xlane.xlu0 %1722
    %1724 = vmax.xlane.f32.xlu0 %v1698
    %v1725 = vpop.xlane.xlu0 %1724
    %1726 = vmax.xlane.f32.xlu0 %v1699
    %v1727 = vpop.xlane.xlu0 %1726
    %1728 = vmax.xlane.f32.xlu0 %v1700
    %v1729 = vpop.xlane.xlu0 %1728
    %1730 = vmax.xlane.f32.xlu0 %v1701
    %v1731 = vpop.xlane.xlu0 %1730
    %1732 = vmax.xlane.f32.xlu0 %v1702
    %v1733 = vpop.xlane.xlu0 %1732
    %1734 = vmax.xlane.f32.xlu0 %v1703
    %v1735 = vpop.xlane.xlu0 %1734
    %v1736 = vsub.f32 %v1688, %v1705
    %v1737 = vsub.f32 %v1689, %v1707
    %v1738 = vsub.f32 %v1690, %v1709
    %v1739 = vsub.f32 %v1691, %v1711
    %v1740 = vsub.f32 %v1692, %v1713
    %v1741 = vsub.f32 %v1693, %v1715
    %v1742 = vsub.f32 %v1694, %v1717
    %v1743 = vsub.f32 %v1695, %v1719
    %v1744 = vsub.f32 %v1696, %v1721
    %v1745 = vsub.f32 %v1697, %v1723
    %v1746 = vsub.f32 %v1698, %v1725
    %v1747 = vsub.f32 %v1699, %v1727
    %v1748 = vsub.f32 %v1700, %v1729
    %v1749 = vsub.f32 %v1701, %v1731
    %v1750 = vsub.f32 %v1702, %v1733
    %v1751 = vsub.f32 %v1703, %v1735
    %v1752 = vmul.f32 %v1736, 1.442695
    %v1753 = vpow.pop %v1752
    %v1754 = vmul.f32 %v1737, 1.442695
    %v1755 = vpow.pop %v1754
    %v1756 = vmul.f32 %v1738, 1.442695
    %v1757 = vpow.pop %v1756
    %v1758 = vmul.f32 %v1739, 1.442695
    %v1759 = vpow.pop %v1758
    %v1760 = vmul.f32 %v1740, 1.442695
    %v1761 = vpow.pop %v1760
    %v1762 = vmul.f32 %v1741, 1.442695
    %v1763 = vpow.pop %v1762
    %v1764 = vmul.f32 %v1742, 1.442695
    %v1765 = vpow.pop %v1764
    %v1766 = vmul.f32 %v1743, 1.442695
    %v1767 = vpow.pop %v1766
    %v1768 = vmul.f32 %v1744, 1.442695
    %v1769 = vpow.pop %v1768
    %v1770 = vmul.f32 %v1745, 1.442695
    %v1771 = vpow.pop %v1770
    %v1772 = vmul.f32 %v1746, 1.442695
    %v1773 = vpow.pop %v1772
    %v1774 = vmul.f32 %v1747, 1.442695
    %v1775 = vpow.pop %v1774
    %v1776 = vmul.f32 %v1748, 1.442695
    %v1777 = vpow.pop %v1776
    %v1778 = vmul.f32 %v1749, 1.442695
    %v1779 = vpow.pop %v1778
    %v1780 = vmul.f32 %v1750, 1.442695
    %v1781 = vpow.pop %v1780
    %v1782 = vmul.f32 %v1751, 1.442695
    %v1783 = vpow.pop %v1782
    %1784 = vadd.xlane.f32.xlu0 %v1753
    %v1785 = vpop.xlane.xlu0 %1784
    %1786 = vadd.xlane.f32.xlu0 %v1755
    %v1787 = vpop.xlane.xlu0 %1786
    %1788 = vadd.xlane.f32.xlu0 %v1757
    %v1789 = vpop.xlane.xlu0 %1788
    %1790 = vadd.xlane.f32.xlu0 %v1759
    %v1791 = vpop.xlane.xlu0 %1790
    %1792 = vadd.xlane.f32.xlu0 %v1761
    %v1793 = vpop.xlane.xlu0 %1792
    %1794 = vadd.xlane.f32.xlu0 %v1763
    %v1795 = vpop.xlane.xlu0 %1794
    %1796 = vadd.xlane.f32.xlu0 %v1765
    %v1797 = vpop.xlane.xlu0 %1796
    %1798 = vadd.xlane.f32.xlu0 %v1767
    %v1799 = vpop.xlane.xlu0 %1798
    %1800 = vadd.xlane.f32.xlu0 %v1769
    %v1801 = vpop.xlane.xlu0 %1800
    %1802 = vadd.xlane.f32.xlu0 %v1771
    %v1803 = vpop.xlane.xlu0 %1802
    %1804 = vadd.xlane.f32.xlu0 %v1773
    %v1805 = vpop.xlane.xlu0 %1804
    %1806 = vadd.xlane.f32.xlu0 %v1775
    %v1807 = vpop.xlane.xlu0 %1806
    %1808 = vadd.xlane.f32.xlu0 %v1777
    %v1809 = vpop.xlane.xlu0 %1808
    %1810 = vadd.xlane.f32.xlu0 %v1779
    %v1811 = vpop.xlane.xlu0 %1810
    %1812 = vadd.xlane.f32.xlu0 %v1781
    %v1813 = vpop.xlane.xlu0 %1812
    %1814 = vadd.xlane.f32.xlu0 %v1783
    %v1815 = vpop.xlane.xlu0 %1814
    %v1816 = vlog2.pop %v1785
    %v1817 = vmul.f32 %v1816, 0.6931472
    %v1818 = vlog2.pop %v1787
    %v1819 = vmul.f32 %v1818, 0.6931472
    %v1820 = vlog2.pop %v1789
    %v1821 = vmul.f32 %v1820, 0.6931472
    %v1822 = vlog2.pop %v1791
    %v1823 = vmul.f32 %v1822, 0.6931472
    %v1824 = vlog2.pop %v1793
    %v1825 = vmul.f32 %v1824, 0.6931472
    %v1826 = vlog2.pop %v1795
    %v1827 = vmul.f32 %v1826, 0.6931472
    %v1828 = vlog2.pop %v1797
    %v1829 = vmul.f32 %v1828, 0.6931472
    %v1830 = vlog2.pop %v1799
    %v1831 = vmul.f32 %v1830, 0.6931472
    %v1832 = vlog2.pop %v1801
    %v1833 = vmul.f32 %v1832, 0.6931472
    %v1834 = vlog2.pop %v1803
    %v1835 = vmul.f32 %v1834, 0.6931472
    %v1836 = vlog2.pop %v1805
    %v1837 = vmul.f32 %v1836, 0.6931472
    %v1838 = vlog2.pop %v1807
    %v1839 = vmul.f32 %v1838, 0.6931472
    %v1840 = vlog2.pop %v1809
    %v1841 = vmul.f32 %v1840, 0.6931472
    %v1842 = vlog2.pop %v1811
    %v1843 = vmul.f32 %v1842, 0.6931472
    %v1844 = vlog2.pop %v1813
    %v1845 = vmul.f32 %v1844, 0.6931472
    %v1846 = vlog2.pop %v1815
    %v1847 = vmul.f32 %v1846, 0.6931472
    %v1848 = vsub.f32 %v1736, %v1817
    %v1849 = vsub.f32 %v1737, %v1819
    %v1850 = vsub.f32 %v1738, %v1821
    %v1851 = vsub.f32 %v1739, %v1823
    %v1852 = vsub.f32 %v1740, %v1825
    %v1853 = vsub.f32 %v1741, %v1827
    %v1854 = vsub.f32 %v1742, %v1829
    %v1855 = vsub.f32 %v1743, %v1831
    %v1856 = vsub.f32 %v1744, %v1833
    %v1857 = vsub.f32 %v1745, %v1835
    %v1858 = vsub.f32 %v1746, %v1837
    %v1859 = vsub.f32 %v1747, %v1839
    %v1860 = vsub.f32 %v1748, %v1841
    %v1861 = vsub.f32 %v1749, %v1843
    %v1862 = vsub.f32 %v1750, %v1845
    %v1863 = vsub.f32 %v1751, %v1847
    %1864 = vst [vmem:[#allocation2] sm:$0xff] %v1848
    %1865 = vst [vmem:[#allocation2 + $0x8] sm:$0xff] %v1849
    %1866 = vst [vmem:[#allocation2 + $0x10] sm:$0xff] %v1850
    %1867 = vst [vmem:[#allocation2 + $0x18] sm:$0xff] %v1851
    %1868 = vst [vmem:[#allocation2 + $0x20] sm:$0xff] %v1852
    %1869 = vst [vmem:[#allocation2 + $0x28] sm:$0xff] %v1853
    %1870 = vst [vmem:[#allocation2 + $0x30] sm:$0xff] %v1854
    %1871 = vst [vmem:[#allocation2 + $0x38] sm:$0xff] %v1855
    %1872 = vst [vmem:[#allocation2 + $0x40] sm:$0xff] %v1856
    %1873 = vst [vmem:[#allocation2 + $0x48] sm:$0xff] %v1857
    %1874 = vst [vmem:[#allocation2 + $0x50] sm:$0xff] %v1858
    %1875 = vst [vmem:[#allocation2 + $0x58] sm:$0xff] %v1859
    %1876 = vst [vmem:[#allocation2 + $0x60] sm:$0xff] %v1860
    %1877 = vst [vmem:[#allocation2 + $0x68] sm:$0xff] %v1861
    %1878 = vst [vmem:[#allocation2 + $0x70] sm:$0xff] %v1862
    %1879 = vst [vmem:[#allocation2 + $0x78] sm:$0xff] %v1863
    // Predicated region
    $region22: #{_fsgnn_pallas.1} parent=1 // pred_check
      _
    $region23: #{_fsgnn_pallas.1} parent=1 // pred_check_branch
      %1881 = sbr.rel (0) target = $region25
    $region24: #{_fsgnn_pallas.1} parent=1 // pred_region
      %s1883 = ssub.s32 2048, 2048
      %1884 = vsyncadd [#allocation3], %s1883
      %s1885 = sshll.u32 [#allocation2], 4
      %s1886 = int_to_ptr.vmem [resolvable:$true] %s1885
      %1891 = dma.vmem_to_hbm [thread:$0]  %s1886, 2048, %s5, [#allocation3], 128, 128, 8
    $region25: #{_fsgnn_pallas.1} parent=1 // pred_fallthru
      _
    // Predicated region
    $region26: #{_fsgnn_pallas.1} parent=1 // pred_check
      _
    $region27: #{_fsgnn_pallas.1} parent=1 // pred_check_branch
      %1893 = sbr.rel (0) target = $region29
    $region28: #{_fsgnn_pallas.1} parent=1 // pred_region
      %1894 = dma.done [#allocation3], 2048
    $region29: #{_fsgnn_pallas.1} parent=1 // pred_fallthru
      _
    %1895 = vsyncpa [#allocation3], 1

</llo_original>
